<compile_context>
chip_gen: v7x
topology: tpu7x:2x2x1
jax: 0.10.0
libtpu: 0.0.40
codegen_flags: <defaults>
</compile_context>

<pallas_src>
import functools

import jax
import jax.numpy as jnp
from jax.experimental import pallas as pl
from jax.experimental.pallas import tpu as pltpu

EPS = 1e-5
LANE = 128
_VMEM_FLOOR = 32 * 1024 * 1024          # never below the compiler default
_VMEM_FALLBACK_CAP = 64 * 1024 * 1024   # per-core VMEM on v7x (smallest generation)


def _ceil_to(x, m):
    return ((x + m - 1) // m) * m


def _row_tile(rows, max_rows=2048):
    """Largest divisor of `rows` that is a multiple of 8 (sublane), <= max_rows and,
    when possible, leaves >= 2 grid steps (pipelining / megacore sharding)."""
    best = None
    for t in range(min(rows, max_rows), 0, -1):
        if rows % t == 0 and t % 8 == 0:
            if rows // t >= 2:
                return t
            if best is None:
                best = t
    return best if best is not None else rows


def _device_vmem_bytes():
    try:
        cap = int(getattr(pltpu.get_tpu_info(), "vmem_capacity_bytes", 0))
        if cap > 0:
            return cap
    except Exception:
        pass
    return _VMEM_FALLBACK_CAP


def _cparams(tile_bytes):
    cap = max((_device_vmem_bytes() * 3) // 4, _VMEM_FLOOR)
    limit = int(min(max(tile_bytes + (16 << 20), _VMEM_FLOOR), cap))
    return pltpu.CompilerParams(dimension_semantics=("parallel",),
                                vmem_limit_bytes=limit)


def _stats_block(y):
    """(rows, C) f32 -> (1, 2, C) per-tile [sum, sum-of-squares] over rows."""
    s = jnp.sum(y, axis=0, keepdims=True)
    ss = jnp.sum(y * y, axis=0, keepdims=True)
    return jnp.concatenate([s, ss], axis=0).reshape(1, 2, y.shape[1])


# --------------------------------------------------------------------------- kernels
def _stage1_kernel(x_ref, w_ref, y1_ref, st1_ref):
    # x_ref / w_ref bf16; f32 accumulation; bf16 activation store, f32 stats.
    y1 = jnp.dot(x_ref[...], w_ref[...], preferred_element_type=jnp.float32)
    y1_ref[...] = y1.astype(y1_ref.dtype)
    st1_ref[...] = _stats_block(y1)


def _stage1_kernel_ds(p_pad):
    def kernel(x_ref, w_ref, y1_ref, r_ref, st1_ref, std_ref):
        # conv1 and the 1x1 downsample share the LHS: one wide matmul, then split.
        y = jnp.dot(x_ref[...], w_ref[...], preferred_element_type=jnp.float32)
        y1 = y[:, :p_pad]
        r = y[:, p_pad:]
        y1_ref[...] = y1.astype(y1_ref.dtype)
        r_ref[...] = r.astype(r_ref.dtype)
        st1_ref[...] = _stats_block(y1)
        std_ref[...] = _stats_block(r)
    return kernel


def _stage2_kernel(H, W, C):
    """bn1 affine+relu, then 3x3 conv as 9 shift-and-accumulate MXU matmuls over a
    zero-padded VMEM scratch (no im2col patches buffer); bn2 partial stats."""
    def kernel(y1_ref, s_ref, t_ref, w_ref, y2_ref, st_ref, ap_ref):
        a = jnp.maximum(y1_ref[0].astype(jnp.float32) * s_ref[...] + t_ref[...], 0.0)
        ap_ref[...] = jnp.zeros_like(ap_ref)                     # zero halo (cheap)
        ap_ref[pl.ds(1, H), pl.ds(1, W), :] = a.reshape(H, W, C).astype(jnp.bfloat16)
        acc = jnp.zeros((H * W, C), jnp.float32)
        for k in range(9):
            kh, kw = k // 3, k % 3
            patch = ap_ref[pl.ds(kh, H), pl.ds(kw, W), :].reshape(H * W, C)
            acc = acc + jnp.dot(patch, w_ref[k], preferred_element_type=jnp.float32)
        y2_ref[...] = acc.reshape(1, H * W, C).astype(y2_ref.dtype)
        st_ref[...] = _stats_block(acc)
    return kernel


def _stage3_kernel(y2_ref, s_ref, t_ref, w_ref, y3_ref, st_ref):
    a = jnp.maximum(y2_ref[...].astype(jnp.float32) * s_ref[...] + t_ref[...], 0.0)
    y3 = jnp.dot(a.astype(jnp.bfloat16), w_ref[...],
                 preferred_element_type=jnp.float32)
    y3_ref[...] = y3.astype(y3_ref.dtype)
    st_ref[...] = _stats_block(y3)


def _stage4_kernel(y3_ref, s3_ref, t3_ref, x_ref, o_ref):
    out = y3_ref[...].astype(jnp.float32) * s3_ref[...] + t3_ref[...]
    o_ref[...] = jnp.maximum(out + x_ref[...].astype(jnp.float32), 0.0)


def _stage4_kernel_ds(y3_ref, s3_ref, t3_ref, r_ref, sd_ref, td_ref, o_ref):
    out = y3_ref[...].astype(jnp.float32) * s3_ref[...] + t3_ref[...]
    res = r_ref[...].astype(jnp.float32) * sd_ref[...] + td_ref[...]
    o_ref[...] = jnp.maximum(out + res, 0.0)


# --------------------------------------------------------------------------- wrapper
def _affine_from_stats(partials, gamma, beta, count):
    """Reduce per-tile [sum, sumsq] partials -> global BN folded into scale/shift."""
    s = jnp.sum(partials[:, 0, :], axis=0)
    ss = jnp.sum(partials[:, 1, :], axis=0)
    mean = s / count
    var = jnp.maximum(ss / count - mean * mean, 0.0)
    scale = gamma * jax.lax.rsqrt(var + EPS)
    shift = beta - mean * scale
    return scale.reshape(1, -1), shift.reshape(1, -1)


@functools.partial(jax.jit, static_argnames=("stride", "row_tile"))
def bottleneck_forward(x_nchw, params, *, stride=1, row_tile=None):
    """params = (w1,g1,b1,w2,g2,b2,w3,g3,b3[,wd,gd,bd]) in PyTorch layouts (NCHW/OIHW)."""
    w1, g1, b1, w2, g2, b2, w3, g3, b3 = params[:9]
    ds = tuple(params[9:]) if len(params) > 9 else None
    has_ds = ds is not None

    assert stride == 1, "TODO(synk): strided conv2/downsample not implemented"
    N, Cin, H, W = x_nchw.shape
    P = w1.shape[0]
    Cout = w3.shape[0]
    if not has_ds:
        assert Cin == Cout, "identity residual requires inplanes == planes * expansion"

    R, HW = N * H * W, H * W
    cin_p = _ceil_to(Cin, LANE)
    p_p = _ceil_to(P, LANE)
    co_p = _ceil_to(Cout, LANE)
    f32, bf16 = jnp.float32, jnp.bfloat16

    def padmat(m, rows, cols):
        return jnp.pad(m.astype(f32), ((0, rows - m.shape[0]), (0, cols - m.shape[1])))

    def padvec(v, c):
        return jnp.pad(v.astype(f32), (0, c - v.shape[0]))

    # ---- channels-last activations; stage-1 LHS cast to bf16 once in the wrapper --
    x_rows = jnp.transpose(x_nchw, (0, 2, 3, 1)).reshape(R, Cin)
    x_flat_bf = jnp.pad(x_rows.astype(bf16), ((0, 0), (0, cin_p - Cin)))
    if not has_ds:
        # f32 copy kept only for the identity residual add in stage 4.
        x_res = jnp.pad(x_rows.astype(f32), ((0, 0), (0, co_p - Cin)))

    # ---- matmul-ready, lane-padded bf16 weights ------------------------------------
    w1m = padmat(w1[:, :, 0, 0].T, cin_p, p_p)
    if has_ds:
        wd, gd, bd = ds
        wcat = jnp.concatenate([w1m, padmat(wd[:, :, 0, 0].T, cin_p, co_p)],
                               axis=1).astype(bf16)            # conv1 ⊕ downsample
    else:
        wcat = w1m.astype(bf16)
    w2t = jnp.transpose(w2, (2, 3, 1, 0)).astype(f32)           # (kh, kw, ci, co)
    w2t = jnp.pad(w2t, ((0, 0), (0, 0), (0, p_p - P), (0, p_p - P)))
    w2m = w2t.reshape(9, p_p, p_p).astype(bf16)                  # 9 separate K-blocks
    w3m = padmat(w3[:, :, 0, 0].T, p_p, co_p).astype(bf16)

    g1p, b1p = padvec(g1, p_p), padvec(b1, p_p)
    g2p, b2p = padvec(g2, p_p), padvec(b2, p_p)
    g3p, b3p = padvec(g3, co_p), padvec(b3, co_p)
    if has_ds:
        gdp, bdp = padvec(gd, co_p), padvec(bd, co_p)

    # ---- row tiling for the pointwise stages ---------------------------------------
    tr = _row_tile(R) if row_tile is None else row_tile
    assert R % tr == 0 and (tr % 8 == 0 or tr == R), \
        "row_tile must divide N*H*W and be a multiple of 8"
    T = R // tr

    # ---- stage 1: conv1 (+ fused downsample) + partial stats -----------------------
    wcat_w = wcat.shape[1]
    bytes1 = 2 * (tr * cin_p * 2 + cin_p * wcat_w * 2 + tr * wcat_w * 2) + tr * wcat_w * 4
    if has_ds:
        out_shape1 = [jax.ShapeDtypeStruct((R, p_p), bf16),
                      jax.ShapeDtypeStruct((R, co_p), bf16),
                      jax.ShapeDtypeStruct((T, 2, p_p), f32),
                      jax.ShapeDtypeStruct((T, 2, co_p), f32)]
        out_specs1 = [pl.BlockSpec((tr, p_p), lambda i: (i, 0)),
                      pl.BlockSpec((tr, co_p), lambda i: (i, 0)),
                      pl.BlockSpec((1, 2, p_p), lambda i: (i, 0, 0)),
                      pl.BlockSpec((1, 2, co_p), lambda i: (i, 0, 0))]
        kernel1 = _stage1_kernel_ds(p_p)
    else:
        out_shape1 = [jax.ShapeDtypeStruct((R, p_p), bf16),
                      jax.ShapeDtypeStruct((T, 2, p_p), f32)]
        out_specs1 = [pl.BlockSpec((tr, p_p), lambda i: (i, 0)),
                      pl.BlockSpec((1, 2, p_p), lambda i: (i, 0, 0))]
        kernel1 = _stage1_kernel

    res1 = pl.pallas_call(
        kernel1, grid=(T,),
        in_specs=[pl.BlockSpec((tr, cin_p), lambda i: (i, 0)),
                  pl.BlockSpec((cin_p, wcat_w), lambda i: (0, 0))],
        out_specs=out_specs1, out_shape=out_shape1,
        compiler_params=_cparams(bytes1),
    )(x_flat_bf, wcat)
    if has_ds:
        y1, rres, st1, std = res1
        scale_d, shift_d = _affine_from_stats(std, gdp, bdp, R)
    else:
        y1, st1 = res1
    scale1, shift1 = _affine_from_stats(st1, g1p, b1p, R)

    # ---- stage 2: bn1+relu, 3x3 conv (9 shifted matmuls), bn2 partial stats --------
    bytes2 = (2 * (2 * HW * p_p * 2 + 9 * p_p * p_p * 2)      # y1 in / y2 out / weights
              + (H + 2) * (W + 2) * p_p * 2                   # padded VMEM scratch
              + 3 * HW * p_p * 4)                             # f32 temporaries
    y2, st2 = pl.pallas_call(
        _stage2_kernel(H, W, p_p), grid=(N,),
        in_specs=[pl.BlockSpec((1, HW, p_p), lambda n: (n, 0, 0)),
                  pl.BlockSpec((1, p_p), lambda n: (0, 0)),
                  pl.BlockSpec((1, p_p), lambda n: (0, 0)),
                  pl.BlockSpec((9, p_p, p_p), lambda n: (0, 0, 0))],
        out_specs=[pl.BlockSpec((1, HW, p_p), lambda n: (n, 0, 0)),
                   pl.BlockSpec((1, 2, p_p), lambda n: (n, 0, 0))],
        out_shape=[jax.ShapeDtypeStruct((N, HW, p_p), bf16),
                   jax.ShapeDtypeStruct((N, 2, p_p), f32)],
        scratch_shapes=[pltpu.VMEM((H + 2, W + 2, p_p), bf16)],
        compiler_params=_cparams(bytes2),
    )(y1.reshape(N, HW, p_p), scale1, shift1, w2m)
    scale2, shift2 = _affine_from_stats(st2, g2p, b2p, R)
    y2 = y2.reshape(R, p_p)

    # ---- stage 3: bn2+relu, conv3, bn3 partial stats --------------------------------
    bytes3 = 2 * (tr * p_p * 2 + p_p * co_p * 2 + tr * co_p * 2) + tr * (p_p + co_p) * 4
    y3, st3 = pl.pallas_call(
        _stage3_kernel, grid=(T,),
        in_specs=[pl.BlockSpec((tr, p_p), lambda i: (i, 0)),
                  pl.BlockSpec((1, p_p), lambda i: (0, 0)),
                  pl.BlockSpec((1, p_p), lambda i: (0, 0)),
                  pl.BlockSpec((p_p, co_p), lambda i: (0, 0))],
        out_specs=[pl.BlockSpec((tr, co_p), lambda i: (i, 0)),
                   pl.BlockSpec((1, 2, co_p), lambda i: (i, 0, 0))],
        out_shape=[jax.ShapeDtypeStruct((R, co_p), bf16),
                   jax.ShapeDtypeStruct((T, 2, co_p), f32)],
        compiler_params=_cparams(bytes3),
    )(y2, scale2, shift2, w3m)
    scale3, shift3 = _affine_from_stats(st3, g3p, b3p, R)

    # ---- stage 4: bn3 affine + residual + relu ---------------------------------------
    bytes4 = 2 * (tr * co_p * 2 + tr * co_p * 4 + tr * co_p * 4) + tr * co_p * 4
    if has_ds:
        out_flat = pl.pallas_call(
            _stage4_kernel_ds, grid=(T,),
            in_specs=[pl.BlockSpec((tr, co_p), lambda i: (i, 0)),
                      pl.BlockSpec((1, co_p), lambda i: (0, 0)),
                      pl.BlockSpec((1, co_p), lambda i: (0, 0)),
                      pl.BlockSpec((tr, co_p), lambda i: (i, 0)),
                      pl.BlockSpec((1, co_p), lambda i: (0, 0)),
                      pl.BlockSpec((1, co_p), lambda i: (0, 0))],
            out_specs=pl.BlockSpec((tr, co_p), lambda i: (i, 0)),
            out_shape=jax.ShapeDtypeStruct((R, co_p), f32),
            compiler_params=_cparams(bytes4),
        )(y3, scale3, shift3, rres, scale_d, shift_d)
    else:
        out_flat = pl.pallas_call(
            _stage4_kernel, grid=(T,),
            in_specs=[pl.BlockSpec((tr, co_p), lambda i: (i, 0)),
                      pl.BlockSpec((1, co_p), lambda i: (0, 0)),
                      pl.BlockSpec((1, co_p), lambda i: (0, 0)),
                      pl.BlockSpec((tr, co_p), lambda i: (i, 0))],
            out_specs=pl.BlockSpec((tr, co_p), lambda i: (i, 0)),
            out_shape=jax.ShapeDtypeStruct((R, co_p), f32),
            compiler_params=_cparams(bytes4),
        )(y3, scale3, shift3, x_res)

    out = out_flat[:, :Cout].reshape(N, H, W, Cout)
    return jnp.transpose(out, (0, 3, 1, 2))


# --------------------------------------------------------------------------- reference
def bottleneck_reference(x, params):
    """Pure-JAX NCHW f32 reference mirroring the PyTorch forward (training-mode BN)."""
    w1, g1, b1, w2, g2, b2, w3, g3, b3 = params[:9]
    ds = params[9:] if len(params) > 9 else None

    def bn(y, g, b):
        mean = y.mean(axis=(0, 2, 3), keepdims=True)
        var = ((y - mean) ** 2).mean(axis=(0, 2, 3), keepdims=True)
        return ((y - mean) / jnp.sqrt(var + EPS) * g.reshape(1, -1, 1, 1)
                + b.reshape(1, -1, 1, 1))

    def conv(y, w, pad):
        return jax.lax.conv_general_dilated(
            y, w, window_strides=(1, 1), padding=((pad, pad), (pad, pad)),
            dimension_numbers=("NCHW", "OIHW", "NCHW"))

    out = jax.nn.relu(bn(conv(x, w1, 0), g1, b1))
    out = jax.nn.relu(bn(conv(out, w2, 1), g2, b2))
    out = bn(conv(out, w3, 0), g3, b3)
    residual = x
    if ds is not None:
        wd, gd, bd = ds
        residual = bn(conv(x, wd, 0), gd, bd)
    return jax.nn.relu(out + residual)


def _check(out, ref, name):
    # Scale-aware tolerance (bf16 matmuls + bf16-stored intermediates vs f32 reference).
    rel = float(jnp.max(jnp.abs(out - ref) / (1.0 + jnp.abs(ref))))
    assert rel < 5e-2, f"{name} max scaled error {rel}"


if __name__ == "__main__":
    key = jax.random.PRNGKey(0)
    ks = jax.random.split(key, 16)

    N, H, W = 2, 8, 8
    planes = 8
    inplanes = planes * 4   # identity residual path (downsample=None)

    def bn_params(kg, kb, c):
        return (1.0 + 0.1 * jax.random.normal(kg, (c,), jnp.float32),
                0.1 * jax.random.normal(kb, (c,), jnp.float32))

    x = jax.random.normal(ks[0], (N, inplanes, H, W), jnp.float32)
    w1 = 0.2 * jax.random.normal(ks[1], (planes, inplanes, 1, 1), jnp.float32)
    g1, b1 = bn_params(ks[2], ks[3], planes)
    w2 = 0.2 * jax.random.normal(ks[4], (planes, planes, 3, 3), jnp.float32)
    g2, b2 = bn_params(ks[5], ks[6], planes)
    w3 = 0.2 * jax.random.normal(ks[7], (planes * 4, planes, 1, 1), jnp.float32)
    g3, b3 = bn_params(ks[8], ks[9], planes * 4)
    params = (w1, g1, b1, w2, g2, b2, w3, g3, b3)

    # Identity residual; force a 4-step row grid to exercise the tiled pipeline.
    out = jax.block_until_ready(bottleneck_forward(x, params, row_tile=32))
    ref = bottleneck_reference(x, params)
    assert out.shape == (N, planes * 4, H, W)
    _check(out, ref, "identity-residual")

    # Downsample residual (inplanes != planes*4), automatic row tiling.
    inplanes2 = 16
    x2 = jax.random.normal(ks[10], (N, inplanes2, H, W), jnp.float32)
    w1b = 0.2 * jax.random.normal(ks[11], (planes, inplanes2, 1, 1), jnp.float32)
    wd = 0.2 * jax.random.normal(ks[12], (planes * 4, inplanes2, 1, 1), jnp.float32)
    gd, bd = bn_params(ks[13], ks[14], planes * 4)
    params2 = (w1b, g1, b1, w2, g2, b2, w3, g3, b3, wd, gd, bd)

    out2 = jax.block_until_ready(bottleneck_forward(x2, params2))
    ref2 = bottleneck_reference(x2, params2)
    _check(out2, ref2, "downsample-residual")

    print("KERNEL_OK")
</pallas_src>

<mosaic_0001>
module attributes {stable_mosaic.version = 11 : i64} {
  func.func @_stage1_kernel(%arg0: i32, %arg1: memref<32x128xbf16, #tpu.memory_space<vmem>>, %arg2: memref<128x128xbf16, #tpu.memory_space<vmem>>, %arg3: memref<32x128xbf16, #tpu.memory_space<vmem>>, %arg4: memref<1x2x128xf32, #tpu.memory_space<vmem>>) attributes {dimension_semantics = [#tpu.dimension_semantics<parallel>], iteration_bounds = array<i64: 4>, scalar_prefetch = 0 : i64, scratch_operands = 0 : i64, tpu.core_type = #tpu.core_type<tc>, window_params = [{transform_indices = @transform_0, window_bounds = array<i64: 32, 128>}, {pipeline_mode = #tpu.pipeline_mode<synchronous>, transform_indices = @transform_1, window_bounds = array<i64: 128, 128>}, {transform_indices = @transform_2, window_bounds = array<i64: 32, 128>}, {transform_indices = @transform_3, window_bounds = array<i64: 1, 2, 128>}]} {
    %c0 = arith.constant 0 : index
    %c0_0 = arith.constant 0 : index
    %0 = vector.load %arg1[%c0, %c0_0] : memref<32x128xbf16, #tpu.memory_space<vmem>>, vector<32x128xbf16>
    %c0_1 = arith.constant 0 : index
    %c0_2 = arith.constant 0 : index
    %1 = vector.load %arg2[%c0_1, %c0_2] : memref<128x128xbf16, #tpu.memory_space<vmem>>, vector<128x128xbf16>
    %cst = arith.constant dense<0.000000e+00> : vector<32x128xf32>
    %2 = tpu.matmul %0, %1, %cst {dimension_numbers = #tpu.dot_dimension_numbers<[1], [0], [0], [1], [0, 0, 1, 1], [], []>} : vector<32x128xbf16>, vector<128x128xbf16>, vector<32x128xf32> -> vector<32x128xf32>
    %3 = arith.truncf %2 : vector<32x128xf32> to vector<32x128xbf16>
    %c0_3 = arith.constant 0 : index
    %c0_4 = arith.constant 0 : index
    %4 = vector.load %arg3[%c0_3, %c0_4] : memref<32x128xbf16, #tpu.memory_space<vmem>>, vector<32x128xbf16>
    tpu.vector_store %arg3[%c0_3, %c0_4], %3 {strides = array<i32>} : memref<32x128xbf16, #tpu.memory_space<vmem>>, vector<32x128xbf16>,
    %cst_5 = arith.constant dense<0.000000e+00> : vector<128xf32>
    %5 = vector.multi_reduction <add>, %2, %cst_5 [0] : vector<32x128xf32> to vector<128xf32>
    %6 = vector.shape_cast %5 : vector<128xf32> to vector<1x128xf32>
    %7 = arith.mulf %2, %2 : vector<32x128xf32>
    %cst_6 = arith.constant dense<0.000000e+00> : vector<128xf32>
    %8 = vector.multi_reduction <add>, %7, %cst_6 [0] : vector<32x128xf32> to vector<128xf32>
    %9 = vector.shape_cast %8 : vector<128xf32> to vector<1x128xf32>
    %10 = tpu.concatenate %6, %9 in 0 : vector<1x128xf32>, vector<1x128xf32> -> vector<2x128xf32>
    %11 = vector.shape_cast %10 : vector<2x128xf32> to vector<1x2x128xf32>
    %c0_7 = arith.constant 0 : index
    %c0_8 = arith.constant 0 : index
    %c0_9 = arith.constant 0 : index
    %12 = vector.load %arg4[%c0_7, %c0_8, %c0_9] : memref<1x2x128xf32, #tpu.memory_space<vmem>>, vector<1x2x128xf32>
    tpu.vector_store %arg4[%c0_7, %c0_8, %c0_9], %11 {strides = array<i32>} : memref<1x2x128xf32, #tpu.memory_space<vmem>>, vector<1x2x128xf32>,
    return
  }
  func.func @transform_0(%arg0: i32) -> (i32, i32) {
    %c0_i32 = arith.constant 0 : i32
    %c0_i32_0 = arith.constant 0 : i32
    return %arg0, %c0_i32 : i32, i32
  }
  func.func @transform_1(%arg0: i32) -> (i32, i32) {
    %c0_i32 = arith.constant 0 : i32
    %c0_i32_0 = arith.constant 0 : i32
    %c0_i32_1 = arith.constant 0 : i32
    return %c0_i32, %c0_i32_0 : i32, i32
  }
  func.func @transform_2(%arg0: i32) -> (i32, i32) {
    %c0_i32 = arith.constant 0 : i32
    %c0_i32_0 = arith.constant 0 : i32
    return %arg0, %c0_i32 : i32, i32
  }
  func.func @transform_3(%arg0: i32) -> (i32, i32, i32) {
    %c0_i32 = arith.constant 0 : i32
    %c0_i32_0 = arith.constant 0 : i32
    %c0_i32_1 = arith.constant 0 : i32
    return %arg0, %c0_i32, %c0_i32_0 : i32, i32, i32
  }
}

module attributes {stable_mosaic.version = 11 : i64} {
  func.func @kernel(%arg0: i32, %arg1: memref<1x64x128xbf16, #tpu.memory_space<vmem>>, %arg2: memref<1x128xf32, #tpu.memory_space<vmem>>, %arg3: memref<1x128xf32, #tpu.memory_space<vmem>>, %arg4: memref<9x128x128xbf16, #tpu.memory_space<vmem>>, %arg5: memref<1x64x128xbf16, #tpu.memory_space<vmem>>, %arg6: memref<1x2x128xf32, #tpu.memory_space<vmem>>, %arg7: memref<10x10x128xbf16, #tpu.memory_space<vmem>>) attributes {dimension_semantics = [#tpu.dimension_semantics<parallel>], iteration_bounds = array<i64: 2>, scalar_prefetch = 0 : i64, scratch_operands = 1 : i64, tpu.core_type = #tpu.core_type<tc>, window_params = [{transform_indices = @transform_0, window_bounds = array<i64: 1, 64, 128>}, {pipeline_mode = #tpu.pipeline_mode<synchronous>, transform_indices = @transform_1, window_bounds = array<i64: 1, 128>}, {pipeline_mode = #tpu.pipeline_mode<synchronous>, transform_indices = @transform_2, window_bounds = array<i64: 1, 128>}, {pipeline_mode = #tpu.pipeline_mode<synchronous>, transform_indices = @transform_3, window_bounds = array<i64: 9, 128, 128>}, {transform_indices = @transform_4, window_bounds = array<i64: 1, 64, 128>}, {transform_indices = @transform_5, window_bounds = array<i64: 1, 2, 128>}]} {
    %c0 = arith.constant 0 : index
    %c0_0 = arith.constant 0 : index
    %c0_1 = arith.constant 0 : index
    %0 = vector.load %arg1[%c0, %c0_0, %c0_1] : memref<1x64x128xbf16, #tpu.memory_space<vmem>>, vector<1x64x128xbf16>
    %1 = vector.shape_cast %0 : vector<1x64x128xbf16> to vector<64x128xbf16>
    %2 = arith.extf %1 : vector<64x128xbf16> to vector<64x128xf32>
    %c0_2 = arith.constant 0 : index
    %c0_3 = arith.constant 0 : index
    %3 = vector.load %arg2[%c0_2, %c0_3] : memref<1x128xf32, #tpu.memory_space<vmem>>, vector<1x128xf32>
    %4 = vector.broadcast %3 : vector<1x128xf32> to vector<64x128xf32>
    %5 = arith.mulf %2, %4 : vector<64x128xf32>
    %c0_4 = arith.constant 0 : index
    %c0_5 = arith.constant 0 : index
    %6 = vector.load %arg3[%c0_4, %c0_5] : memref<1x128xf32, #tpu.memory_space<vmem>>, vector<1x128xf32>
    %7 = vector.broadcast %6 : vector<1x128xf32> to vector<64x128xf32>
    %8 = arith.addf %5, %7 : vector<64x128xf32>
    %cst = arith.constant 0.000000e+00 : f32
    %9 = vector.broadcast %cst : f32 to vector<64x128xf32>
    %10 = arith.maximumf %8, %9 : vector<64x128xf32>
    %cst_6 = arith.constant 0.000000e+00 : bf16
    %11 = vector.broadcast %cst_6 : bf16 to vector<10x10x128xbf16>
    %c0_7 = arith.constant 0 : index
    %c0_8 = arith.constant 0 : index
    %c0_9 = arith.constant 0 : index
    %12 = vector.load %arg7[%c0_7, %c0_8, %c0_9] : memref<10x10x128xbf16, #tpu.memory_space<vmem>>, vector<10x10x128xbf16>
    tpu.vector_store %arg7[%c0_7, %c0_8, %c0_9], %11 {strides = array<i32>} : memref<10x10x128xbf16, #tpu.memory_space<vmem>>, vector<10x10x128xbf16>,
    %13 = vector.shape_cast %10 : vector<64x128xf32> to vector<8x8x128xf32>
    %14 = arith.truncf %13 : vector<8x8x128xf32> to vector<8x8x128xbf16>
    %c1 = arith.constant 1 : index
    %c1_10 = arith.constant 1 : index
    %c0_11 = arith.constant 0 : index
    %15 = vector.load %arg7[%c1, %c1_10, %c0_11] : memref<10x10x128xbf16, #tpu.memory_space<vmem>>, vector<8x8x128xbf16>
    tpu.vector_store %arg7[%c1, %c1_10, %c0_11], %14 {strides = array<i32>} : memref<10x10x128xbf16, #tpu.memory_space<vmem>>, vector<8x8x128xbf16>,
    %cst_12 = arith.constant 0.000000e+00 : f32
    %16 = vector.broadcast %cst_12 : f32 to vector<64x128xf32>
    %c0_13 = arith.constant 0 : index
    %c0_14 = arith.constant 0 : index
    %c0_15 = arith.constant 0 : index
    %17 = vector.load %arg7[%c0_13, %c0_14, %c0_15] : memref<10x10x128xbf16, #tpu.memory_space<vmem>>, vector<8x8x128xbf16>
    %18 = vector.shape_cast %17 : vector<8x8x128xbf16> to vector<64x128xbf16>
    %c0_16 = arith.constant 0 : index
    %c0_17 = arith.constant 0 : index
    %c0_18 = arith.constant 0 : index
    %19 = vector.load %arg4[%c0_16, %c0_17, %c0_18] : memref<9x128x128xbf16, #tpu.memory_space<vmem>>, vector<1x128x128xbf16>
    %20 = vector.shape_cast %19 : vector<1x128x128xbf16> to vector<128x128xbf16>
    %cst_19 = arith.constant dense<0.000000e+00> : vector<64x128xf32>
    %21 = tpu.matmul %18, %20, %cst_19 {dimension_numbers = #tpu.dot_dimension_numbers<[1], [0], [0], [1], [0, 0, 1, 1], [], []>} : vector<64x128xbf16>, vector<128x128xbf16>, vector<64x128xf32> -> vector<64x128xf32>
    %22 = arith.addf %16, %21 : vector<64x128xf32>
    %c0_20 = arith.constant 0 : index
    %c1_21 = arith.constant 1 : index
    %c0_22 = arith.constant 0 : index
    %23 = vector.load %arg7[%c0_20, %c1_21, %c0_22] : memref<10x10x128xbf16, #tpu.memory_space<vmem>>, vector<8x8x128xbf16>
    %24 = vector.shape_cast %23 : vector<8x8x128xbf16> to vector<64x128xbf16>
    %c1_23 = arith.constant 1 : index
    %c0_24 = arith.constant 0 : index
    %c0_25 = arith.constant 0 : index
    %25 = vector.load %arg4[%c1_23, %c0_24, %c0_25] : memref<9x128x128xbf16, #tpu.memory_space<vmem>>, vector<1x128x128xbf16>
    %26 = vector.shape_cast %25 : vector<1x128x128xbf16> to vector<128x128xbf16>
    %cst_26 = arith.constant dense<0.000000e+00> : vector<64x128xf32>
    %27 = tpu.matmul %24, %26, %cst_26 {dimension_numbers = #tpu.dot_dimension_numbers<[1], [0], [0], [1], [0, 0, 1, 1], [], []>} : vector<64x128xbf16>, vector<128x128xbf16>, vector<64x128xf32> -> vector<64x128xf32>
    %28 = arith.addf %22, %27 : vector<64x128xf32>
    %c0_27 = arith.constant 0 : index
    %c2 = arith.constant 2 : index
    %c0_28 = arith.constant 0 : index
    %29 = vector.load %arg7[%c0_27, %c2, %c0_28] : memref<10x10x128xbf16, #tpu.memory_space<vmem>>, vector<8x8x128xbf16>
    %30 = vector.shape_cast %29 : vector<8x8x128xbf16> to vector<64x128xbf16>
    %c2_29 = arith.constant 2 : index
    %c0_30 = arith.constant 0 : index
    %c0_31 = arith.constant 0 : index
    %31 = vector.load %arg4[%c2_29, %c0_30, %c0_31] : memref<9x128x128xbf16, #tpu.memory_space<vmem>>, vector<1x128x128xbf16>
    %32 = vector.shape_cast %31 : vector<1x128x128xbf16> to vector<128x128xbf16>
    %cst_32 = arith.constant dense<0.000000e+00> : vector<64x128xf32>
    %33 = tpu.matmul %30, %32, %cst_32 {dimension_numbers = #tpu.dot_dimension_numbers<[1], [0], [0], [1], [0, 0, 1, 1], [], []>} : vector<64x128xbf16>, vector<128x128xbf16>, vector<64x128xf32> -> vector<64x128xf32>
    %34 = arith.addf %28, %33 : vector<64x128xf32>
    %c1_33 = arith.constant 1 : index
    %c0_34 = arith.constant 0 : index
    %c0_35 = arith.constant 0 : index
    %35 = vector.load %arg7[%c1_33, %c0_34, %c0_35] : memref<10x10x128xbf16, #tpu.memory_space<vmem>>, vector<8x8x128xbf16>
    %36 = vector.shape_cast %35 : vector<8x8x128xbf16> to vector<64x128xbf16>
    %c3 = arith.constant 3 : index
    %c0_36 = arith.constant 0 : index
    %c0_37 = arith.constant 0 : index
    %37 = vector.load %arg4[%c3, %c0_36, %c0_37] : memref<9x128x128xbf16, #tpu.memory_space<vmem>>, vector<1x128x128xbf16>
    %38 = vector.shape_cast %37 : vector<1x128x128xbf16> to vector<128x128xbf16>
    %cst_38 = arith.constant dense<0.000000e+00> : vector<64x128xf32>
    %39 = tpu.matmul %36, %38, %cst_38 {dimension_numbers = #tpu.dot_dimension_numbers<[1], [0], [0], [1], [0, 0, 1, 1], [], []>} : vector<64x128xbf16>, vector<128x128xbf16>, vector<64x128xf32> -> vector<64x128xf32>
    %40 = arith.addf %34, %39 : vector<64x128xf32>
    %c1_39 = arith.constant 1 : index
    %c1_40 = arith.constant 1 : index
    %c0_41 = arith.constant 0 : index
    %41 = vector.load %arg7[%c1_39, %c1_40, %c0_41] : memref<10x10x128xbf16, #tpu.memory_space<vmem>>, vector<8x8x128xbf16>
    %42 = vector.shape_cast %41 : vector<8x8x128xbf16> to vector<64x128xbf16>
    %c4 = arith.constant 4 : index
    %c0_42 = arith.constant 0 : index
    %c0_43 = arith.constant 0 : index
    %43 = vector.load %arg4[%c4, %c0_42, %c0_43] : memref<9x128x128xbf16, #tpu.memory_space<vmem>>, vector<1x128x128xbf16>
    %44 = vector.shape_cast %43 : vector<1x128x128xbf16> to vector<128x128xbf16>
    %cst_44 = arith.constant dense<0.000000e+00> : vector<64x128xf32>
    %45 = tpu.matmul %42, %44, %cst_44 {dimension_numbers = #tpu.dot_dimension_numbers<[1], [0], [0], [1], [0, 0, 1, 1], [], []>} : vector<64x128xbf16>, vector<128x128xbf16>, vector<64x128xf32> -> vector<64x128xf32>
    %46 = arith.addf %40, %45 : vector<64x128xf32>
    %c1_45 = arith.constant 1 : index
    %c2_46 = arith.constant 2 : index
    %c0_47 = arith.constant 0 : index
    %47 = vector.load %arg7[%c1_45, %c2_46, %c0_47] : memref<10x10x128xbf16, #tpu.memory_space<vmem>>, vector<8x8x128xbf16>
    %48 = vector.shape_cast %47 : vector<8x8x128xbf16> to vector<64x128xbf16>
    %c5 = arith.constant 5 : index
    %c0_48 = arith.constant 0 : index
    %c0_49 = arith.constant 0 : index
    %49 = vector.load %arg4[%c5, %c0_48, %c0_49] : memref<9x128x128xbf16, #tpu.memory_space<vmem>>, vector<1x128x128xbf16>
    %50 = vector.shape_cast %49 : vector<1x128x128xbf16> to vector<128x128xbf16>
    %cst_50 = arith.constant dense<0.000000e+00> : vector<64x128xf32>
    %51 = tpu.matmul %48, %50, %cst_50 {dimension_numbers = #tpu.dot_dimension_numbers<[1], [0], [0], [1], [0, 0, 1, 1], [], []>} : vector<64x128xbf16>, vector<128x128xbf16>, vector<64x128xf32> -> vector<64x128xf32>
    %52 = arith.addf %46, %51 : vector<64x128xf32>
    %c2_51 = arith.constant 2 : index
    %c0_52 = arith.constant 0 : index
    %c0_53 = arith.constant 0 : index
    %53 = vector.load %arg7[%c2_51, %c0_52, %c0_53] : memref<10x10x128xbf16, #tpu.memory_space<vmem>>, vector<8x8x128xbf16>
    %54 = vector.shape_cast %53 : vector<8x8x128xbf16> to vector<64x128xbf16>
    %c6 = arith.constant 6 : index
    %c0_54 = arith.constant 0 : index
    %c0_55 = arith.constant 0 : index
    %55 = vector.load %arg4[%c6, %c0_54, %c0_55] : memref<9x128x128xbf16, #tpu.memory_space<vmem>>, vector<1x128x128xbf16>
    %56 = vector.shape_cast %55 : vector<1x128x128xbf16> to vector<128x128xbf16>
    %cst_56 = arith.constant dense<0.000000e+00> : vector<64x128xf32>
    %57 = tpu.matmul %54, %56, %cst_56 {dimension_numbers = #tpu.dot_dimension_numbers<[1], [0], [0], [1], [0, 0, 1, 1], [], []>} : vector<64x128xbf16>, vector<128x128xbf16>, vector<64x128xf32> -> vector<64x128xf32>
    %58 = arith.addf %52, %57 : vector<64x128xf32>
    %c2_57 = arith.constant 2 : index
    %c1_58 = arith.constant 1 : index
    %c0_59 = arith.constant 0 : index
    %59 = vector.load %arg7[%c2_57, %c1_58, %c0_59] : memref<10x10x128xbf16, #tpu.memory_space<vmem>>, vector<8x8x128xbf16>
    %60 = vector.shape_cast %59 : vector<8x8x128xbf16> to vector<64x128xbf16>
    %c7 = arith.constant 7 : index
    %c0_60 = arith.constant 0 : index
    %c0_61 = arith.constant 0 : index
    %61 = vector.load %arg4[%c7, %c0_60, %c0_61] : memref<9x128x128xbf16, #tpu.memory_space<vmem>>, vector<1x128x128xbf16>
    %62 = vector.shape_cast %61 : vector<1x128x128xbf16> to vector<128x128xbf16>
    %cst_62 = arith.constant dense<0.000000e+00> : vector<64x128xf32>
    %63 = tpu.matmul %60, %62, %cst_62 {dimension_numbers = #tpu.dot_dimension_numbers<[1], [0], [0], [1], [0, 0, 1, 1], [], []>} : vector<64x128xbf16>, vector<128x128xbf16>, vector<64x128xf32> -> vector<64x128xf32>
    %64 = arith.addf %58, %63 : vector<64x128xf32>
    %c2_63 = arith.constant 2 : index
    %c2_64 = arith.constant 2 : index
    %c0_65 = arith.constant 0 : index
    %65 = vector.load %arg7[%c2_63, %c2_64, %c0_65] : memref<10x10x128xbf16, #tpu.memory_space<vmem>>, vector<8x8x128xbf16>
    %66 = vector.shape_cast %65 : vector<8x8x128xbf16> to vector<64x128xbf16>
    %c8 = arith.constant 8 : index
    %c0_66 = arith.constant 0 : index
    %c0_67 = arith.constant 0 : index
    %67 = vector.load %arg4[%c8, %c0_66, %c0_67] : memref<9x128x128xbf16, #tpu.memory_space<vmem>>, vector<1x128x128xbf16>
    %68 = vector.shape_cast %67 : vector<1x128x128xbf16> to vector<128x128xbf16>
    %cst_68 = arith.constant dense<0.000000e+00> : vector<64x128xf32>
    %69 = tpu.matmul %66, %68, %cst_68 {dimension_numbers = #tpu.dot_dimension_numbers<[1], [0], [0], [1], [0, 0, 1, 1], [], []>} : vector<64x128xbf16>, vector<128x128xbf16>, vector<64x128xf32> -> vector<64x128xf32>
    %70 = arith.addf %64, %69 : vector<64x128xf32>
    %71 = vector.shape_cast %70 : vector<64x128xf32> to vector<1x64x128xf32>
    %72 = arith.truncf %71 : vector<1x64x128xf32> to vector<1x64x128xbf16>
    %c0_69 = arith.constant 0 : index
    %c0_70 = arith.constant 0 : index
    %c0_71 = arith.constant 0 : index
    %73 = vector.load %arg5[%c0_69, %c0_70, %c0_71] : memref<1x64x128xbf16, #tpu.memory_space<vmem>>, vector<1x64x128xbf16>
    tpu.vector_store %arg5[%c0_69, %c0_70, %c0_71], %72 {strides = array<i32>} : memref<1x64x128xbf16, #tpu.memory_space<vmem>>, vector<1x64x128xbf16>,
    %cst_72 = arith.constant dense<0.000000e+00> : vector<128xf32>
    %74 = vector.multi_reduction <add>, %70, %cst_72 [0] : vector<64x128xf32> to vector<128xf32>
    %75 = vector.shape_cast %74 : vector<128xf32> to vector<1x128xf32>
    %76 = arith.mulf %70, %70 : vector<64x128xf32>
    %cst_73 = arith.constant dense<0.000000e+00> : vector<128xf32>
    %77 = vector.multi_reduction <add>, %76, %cst_73 [0] : vector<64x128xf32> to vector<128xf32>
    %78 = vector.shape_cast %77 : vector<128xf32> to vector<1x128xf32>
    %79 = tpu.concatenate %75, %78 in 0 : vector<1x128xf32>, vector<1x128xf32> -> vector<2x128xf32>
    %80 = vector.shape_cast %79 : vector<2x128xf32> to vector<1x2x128xf32>
    %c0_74 = arith.constant 0 : index
    %c0_75 = arith.constant 0 : index
    %c0_76 = arith.constant 0 : index
    %81 = vector.load %arg6[%c0_74, %c0_75, %c0_76] : memref<1x2x128xf32, #tpu.memory_space<vmem>>, vector<1x2x128xf32>
    tpu.vector_store %arg6[%c0_74, %c0_75, %c0_76], %80 {strides = array<i32>} : memref<1x2x128xf32, #tpu.memory_space<vmem>>, vector<1x2x128xf32>,
    return
  }
  func.func @transform_0(%arg0: i32) -> (i32, i32, i32) {
    %c0_i32 = arith.constant 0 : i32
    %c0_i32_0 = arith.constant 0 : i32
    %c0_i32_1 = arith.constant 0 : i32
    return %arg0, %c0_i32, %c0_i32_0 : i32, i32, i32
  }
  func.func @transform_1(%arg0: i32) -> (i32, i32) {
    %c0_i32 = arith.constant 0 : i32
    %c0_i32_0 = arith.constant 0 : i32
    %c0_i32_1 = arith.constant 0 : i32
    return %c0_i32, %c0_i32_0 : i32, i32
  }
  func.func @transform_2(%arg0: i32) -> (i32, i32) {
    %c0_i32 = arith.constant 0 : i32
    %c0_i32_0 = arith.constant 0 : i32
    %c0_i32_1 = arith.constant 0 : i32
    return %c0_i32, %c0_i32_0 : i32, i32
  }
  func.func @transform_3(%arg0: i32) -> (i32, i32, i32) {
    %c0_i32 = arith.constant 0 : i32
    %c0_i32_0 = arith.constant 0 : i32
    %c0_i32_1 = arith.constant 0 : i32
    %c0_i32_2 = arith.constant 0 : i32
    return %c0_i32, %c0_i32_0, %c0_i32_1 : i32, i32, i32
  }
  func.func @transform_4(%arg0: i32) -> (i32, i32, i32) {
    %c0_i32 = arith.constant 0 : i32
    %c0_i32_0 = arith.constant 0 : i32
    %c0_i32_1 = arith.constant 0 : i32
    return %arg0, %c0_i32, %c0_i32_0 : i32, i32, i32
  }
  func.func @transform_5(%arg0: i32) -> (i32, i32, i32) {
    %c0_i32 = arith.constant 0 : i32
    %c0_i32_0 = arith.constant 0 : i32
    %c0_i32_1 = arith.constant 0 : i32
    return %arg0, %c0_i32, %c0_i32_0 : i32, i32, i32
  }
}

module attributes {stable_mosaic.version = 11 : i64} {
  func.func @_stage3_kernel(%arg0: i32, %arg1: memref<32x128xbf16, #tpu.memory_space<vmem>>, %arg2: memref<1x128xf32, #tpu.memory_space<vmem>>, %arg3: memref<1x128xf32, #tpu.memory_space<vmem>>, %arg4: memref<128x128xbf16, #tpu.memory_space<vmem>>, %arg5: memref<32x128xbf16, #tpu.memory_space<vmem>>, %arg6: memref<1x2x128xf32, #tpu.memory_space<vmem>>) attributes {dimension_semantics = [#tpu.dimension_semantics<parallel>], iteration_bounds = array<i64: 4>, scalar_prefetch = 0 : i64, scratch_operands = 0 : i64, tpu.core_type = #tpu.core_type<tc>, window_params = [{transform_indices = @transform_0, window_bounds = array<i64: 32, 128>}, {pipeline_mode = #tpu.pipeline_mode<synchronous>, transform_indices = @transform_1, window_bounds = array<i64: 1, 128>}, {pipeline_mode = #tpu.pipeline_mode<synchronous>, transform_indices = @transform_2, window_bounds = array<i64: 1, 128>}, {pipeline_mode = #tpu.pipeline_mode<synchronous>, transform_indices = @transform_3, window_bounds = array<i64: 128, 128>}, {transform_indices = @transform_4, window_bounds = array<i64: 32, 128>}, {transform_indices = @transform_5, window_bounds = array<i64: 1, 2, 128>}]} {
    %c0 = arith.constant 0 : index
    %c0_0 = arith.constant 0 : index
    %0 = vector.load %arg1[%c0, %c0_0] : memref<32x128xbf16, #tpu.memory_space<vmem>>, vector<32x128xbf16>
    %1 = arith.extf %0 : vector<32x128xbf16> to vector<32x128xf32>
    %c0_1 = arith.constant 0 : index
    %c0_2 = arith.constant 0 : index
    %2 = vector.load %arg2[%c0_1, %c0_2] : memref<1x128xf32, #tpu.memory_space<vmem>>, vector<1x128xf32>
    %3 = vector.broadcast %2 : vector<1x128xf32> to vector<32x128xf32>
    %4 = arith.mulf %1, %3 : vector<32x128xf32>
    %c0_3 = arith.constant 0 : index
    %c0_4 = arith.constant 0 : index
    %5 = vector.load %arg3[%c0_3, %c0_4] : memref<1x128xf32, #tpu.memory_space<vmem>>, vector<1x128xf32>
    %6 = vector.broadcast %5 : vector<1x128xf32> to vector<32x128xf32>
    %7 = arith.addf %4, %6 : vector<32x128xf32>
    %cst = arith.constant 0.000000e+00 : f32
    %8 = vector.broadcast %cst : f32 to vector<32x128xf32>
    %9 = arith.maximumf %7, %8 : vector<32x128xf32>
    %10 = arith.truncf %9 : vector<32x128xf32> to vector<32x128xbf16>
    %c0_5 = arith.constant 0 : index
    %c0_6 = arith.constant 0 : index
    %11 = vector.load %arg4[%c0_5, %c0_6] : memref<128x128xbf16, #tpu.memory_space<vmem>>, vector<128x128xbf16>
    %cst_7 = arith.constant dense<0.000000e+00> : vector<32x128xf32>
    %12 = tpu.matmul %10, %11, %cst_7 {dimension_numbers = #tpu.dot_dimension_numbers<[1], [0], [0], [1], [0, 0, 1, 1], [], []>} : vector<32x128xbf16>, vector<128x128xbf16>, vector<32x128xf32> -> vector<32x128xf32>
    %13 = arith.truncf %12 : vector<32x128xf32> to vector<32x128xbf16>
    %c0_8 = arith.constant 0 : index
    %c0_9 = arith.constant 0 : index
    %14 = vector.load %arg5[%c0_8, %c0_9] : memref<32x128xbf16, #tpu.memory_space<vmem>>, vector<32x128xbf16>
    tpu.vector_store %arg5[%c0_8, %c0_9], %13 {strides = array<i32>} : memref<32x128xbf16, #tpu.memory_space<vmem>>, vector<32x128xbf16>,
    %cst_10 = arith.constant dense<0.000000e+00> : vector<128xf32>
    %15 = vector.multi_reduction <add>, %12, %cst_10 [0] : vector<32x128xf32> to vector<128xf32>
    %16 = vector.shape_cast %15 : vector<128xf32> to vector<1x128xf32>
    %17 = arith.mulf %12, %12 : vector<32x128xf32>
    %cst_11 = arith.constant dense<0.000000e+00> : vector<128xf32>
    %18 = vector.multi_reduction <add>, %17, %cst_11 [0] : vector<32x128xf32> to vector<128xf32>
    %19 = vector.shape_cast %18 : vector<128xf32> to vector<1x128xf32>
    %20 = tpu.concatenate %16, %19 in 0 : vector<1x128xf32>, vector<1x128xf32> -> vector<2x128xf32>
    %21 = vector.shape_cast %20 : vector<2x128xf32> to vector<1x2x128xf32>
    %c0_12 = arith.constant 0 : index
    %c0_13 = arith.constant 0 : index
    %c0_14 = arith.constant 0 : index
    %22 = vector.load %arg6[%c0_12, %c0_13, %c0_14] : memref<1x2x128xf32, #tpu.memory_space<vmem>>, vector<1x2x128xf32>
    tpu.vector_store %arg6[%c0_12, %c0_13, %c0_14], %21 {strides = array<i32>} : memref<1x2x128xf32, #tpu.memory_space<vmem>>, vector<1x2x128xf32>,
    return
  }
  func.func @transform_0(%arg0: i32) -> (i32, i32) {
    %c0_i32 = arith.constant 0 : i32
    %c0_i32_0 = arith.constant 0 : i32
    return %arg0, %c0_i32 : i32, i32
  }
  func.func @transform_1(%arg0: i32) -> (i32, i32) {
    %c0_i32 = arith.constant 0 : i32
    %c0_i32_0 = arith.constant 0 : i32
    %c0_i32_1 = arith.constant 0 : i32
    return %c0_i32, %c0_i32_0 : i32, i32
  }
  func.func @transform_2(%arg0: i32) -> (i32, i32) {
    %c0_i32 = arith.constant 0 : i32
    %c0_i32_0 = arith.constant 0 : i32
    %c0_i32_1 = arith.constant 0 : i32
    return %c0_i32, %c0_i32_0 : i32, i32
  }
  func.func @transform_3(%arg0: i32) -> (i32, i32) {
    %c0_i32 = arith.constant 0 : i32
    %c0_i32_0 = arith.constant 0 : i32
    %c0_i32_1 = arith.constant 0 : i32
    return %c0_i32, %c0_i32_0 : i32, i32
  }
  func.func @transform_4(%arg0: i32) -> (i32, i32) {
    %c0_i32 = arith.constant 0 : i32
    %c0_i32_0 = arith.constant 0 : i32
    return %arg0, %c0_i32 : i32, i32
  }
  func.func @transform_5(%arg0: i32) -> (i32, i32, i32) {
    %c0_i32 = arith.constant 0 : i32
    %c0_i32_0 = arith.constant 0 : i32
    %c0_i32_1 = arith.constant 0 : i32
    return %arg0, %c0_i32, %c0_i32_0 : i32, i32, i32
  }
}

module attributes {stable_mosaic.version = 11 : i64} {
  func.func @_stage4_kernel(%arg0: i32, %arg1: memref<32x128xbf16, #tpu.memory_space<vmem>>, %arg2: memref<1x128xf32, #tpu.memory_space<vmem>>, %arg3: memref<1x128xf32, #tpu.memory_space<vmem>>, %arg4: memref<32x128xf32, #tpu.memory_space<vmem>>, %arg5: memref<32x128xf32, #tpu.memory_space<vmem>>) attributes {dimension_semantics = [#tpu.dimension_semantics<parallel>], iteration_bounds = array<i64: 4>, scalar_prefetch = 0 : i64, scratch_operands = 0 : i64, tpu.core_type = #tpu.core_type<tc>, window_params = [{transform_indices = @transform_0, window_bounds = array<i64: 32, 128>}, {pipeline_mode = #tpu.pipeline_mode<synchronous>, transform_indices = @transform_1, window_bounds = array<i64: 1, 128>}, {pipeline_mode = #tpu.pipeline_mode<synchronous>, transform_indices = @transform_2, window_bounds = array<i64: 1, 128>}, {transform_indices = @transform_3, window_bounds = array<i64: 32, 128>}, {transform_indices = @transform_4, window_bounds = array<i64: 32, 128>}]} {
    %c0 = arith.constant 0 : index
    %c0_0 = arith.constant 0 : index
    %0 = vector.load %arg1[%c0, %c0_0] : memref<32x128xbf16, #tpu.memory_space<vmem>>, vector<32x128xbf16>
    %1 = arith.extf %0 : vector<32x128xbf16> to vector<32x128xf32>
    %c0_1 = arith.constant 0 : index
    %c0_2 = arith.constant 0 : index
    %2 = vector.load %arg2[%c0_1, %c0_2] : memref<1x128xf32, #tpu.memory_space<vmem>>, vector<1x128xf32>
    %3 = vector.broadcast %2 : vector<1x128xf32> to vector<32x128xf32>
    %4 = arith.mulf %1, %3 : vector<32x128xf32>
    %c0_3 = arith.constant 0 : index
    %c0_4 = arith.constant 0 : index
    %5 = vector.load %arg3[%c0_3, %c0_4] : memref<1x128xf32, #tpu.memory_space<vmem>>, vector<1x128xf32>
    %6 = vector.broadcast %5 : vector<1x128xf32> to vector<32x128xf32>
    %7 = arith.addf %4, %6 : vector<32x128xf32>
    %c0_5 = arith.constant 0 : index
    %c0_6 = arith.constant 0 : index
    %8 = vector.load %arg4[%c0_5, %c0_6] : memref<32x128xf32, #tpu.memory_space<vmem>>, vector<32x128xf32>
    %9 = arith.addf %7, %8 : vector<32x128xf32>
    %cst = arith.constant 0.000000e+00 : f32
    %10 = vector.broadcast %cst : f32 to vector<32x128xf32>
    %11 = arith.maximumf %9, %10 : vector<32x128xf32>
    %c0_7 = arith.constant 0 : index
    %c0_8 = arith.constant 0 : index
    %12 = vector.load %arg5[%c0_7, %c0_8] : memref<32x128xf32, #tpu.memory_space<vmem>>, vector<32x128xf32>
    tpu.vector_store %arg5[%c0_7, %c0_8], %11 {strides = array<i32>} : memref<32x128xf32, #tpu.memory_space<vmem>>, vector<32x128xf32>,
    return
  }
  func.func @transform_0(%arg0: i32) -> (i32, i32) {
    %c0_i32 = arith.constant 0 : i32
    %c0_i32_0 = arith.constant 0 : i32
    return %arg0, %c0_i32 : i32, i32
  }
  func.func @transform_1(%arg0: i32) -> (i32, i32) {
    %c0_i32 = arith.constant 0 : i32
    %c0_i32_0 = arith.constant 0 : i32
    %c0_i32_1 = arith.constant 0 : i32
    return %c0_i32, %c0_i32_0 : i32, i32
  }
  func.func @transform_2(%arg0: i32) -> (i32, i32) {
    %c0_i32 = arith.constant 0 : i32
    %c0_i32_0 = arith.constant 0 : i32
    %c0_i32_1 = arith.constant 0 : i32
    return %c0_i32, %c0_i32_0 : i32, i32
  }
  func.func @transform_3(%arg0: i32) -> (i32, i32) {
    %c0_i32 = arith.constant 0 : i32
    %c0_i32_0 = arith.constant 0 : i32
    return %arg0, %c0_i32 : i32, i32
  }
  func.func @transform_4(%arg0: i32) -> (i32, i32) {
    %c0_i32 = arith.constant 0 : i32
    %c0_i32_0 = arith.constant 0 : i32
    return %arg0, %c0_i32 : i32, i32
  }
}

</mosaic_0001>

<llo_original>
// kernel: bottleneck_forward.4
$region0: #{bottleneck_forward.4}
  #allocation0 [shape = 'u32[]', space=smem, size = 0x4, offset = 0x4, fixed_abs, tag = 'smem constant byte address 0x4 - core index']
  #allocation1 [shape = 'u32[144,128]{1,0:T(1,128)}', space=vmem, size = 0x12000, scoped, tag = 'internal scratch']
  %s0 = inlined_call_operand.vmem [shape: bf16[128,128], index: 0, kind: input, shape index: {}]
  %s1 = inlined_call_operand.vmem [shape: bf16[128,128], index: 1, kind: input, shape index: {}]
  %s2 = inlined_call_operand.vmem [shape: bf16[128,128], index: 2, kind: output, shape index: {0}]
  %s3 = inlined_call_operand.vmem [shape: f32[4,2,128], index: 3, kind: output, shape index: {1}]
  %4 = xla_tuple %s2, %s3
  %s5 = sld [smem:[#allocation0]]
  $region49: #{bottleneck_forward.4} parent=0
    _
  %s7 = ssub.s32 1, %s5
  %s8 = scalar_select 0, %s7, %s5
  loop: start=0, step=1, limit=6
  $region2: #{bottleneck_forward.4} parent=0 // loop_pre_header
    _
  $region3: #{bottleneck_forward.4} parent=0 // loop_header
    %s10 = sphi 0, %s14
    %p11 = scmp.ge.s32.totalorder %s10, 6
    %s20 = sphi 0, %s22
    %s23 = sphi 0, %s20
    %s24 = sphi 0, %s23
    %s40 = sphi 0, %s24
    %s44 = sphi 0, %s44
    %s46 = sphi 0, %s44
    %s47 = sphi 0, %s46
    %s61 = sphi 0, %s47
    %s67 = sphi 0, %s69
    %s70 = sphi 0, %s67
    %s71 = sphi 0, %s70
    %s87 = sphi 0, %s71
    %s93 = sphi 0, %s95
    %s96 = sphi 0, %s93
    %s97 = sphi 0, %s96
    %s113 = sphi 0, %s97
  $region4: #{bottleneck_forward.4} parent=0 // loop_header_branch
    %13 = sbr.rel (%p11) target = $region8
  $region5: #{bottleneck_forward.4} parent=0 // loop_body
    %s15 = ssub.s32 %s10, 1
    %s16 = ssub.s32 %s10, 2
    %s17 = sadd.s32 %s10, 1
    %s18 = ssub.s32 %s10, %s17
    %p19 = scmp.eq.s32.totalorder %s18, 0
    %s21 = sadd.s32 %s20, 1
    %s22 = scalar_select %p19, %s20, %s21
    %p25 = pneg %p19
    %p26 = scmp.eq.s32.totalorder %s10, 3
    %p27 = por %p25, %p26
    %p28 = scmp.ne.s32.totalorder %s20, %s23
    %p29 = scmp.eq.s32.totalorder %s10, 0
    %p30 = por %p28, %p29
    %p31 = scmp.ne.s32.totalorder %s20, %s23
    %p32 = scmp.eq.s32.totalorder %s15, 3
    %p33 = por %p31, %p32
    %p34 = scmp.ne.s32.totalorder %s23, %s24
    %p35 = scmp.eq.s32.totalorder %s15, 0
    %p36 = por %p34, %p35
    %p37 = scmp.ne.s32.totalorder %s23, %s24
    %p38 = scmp.eq.s32.totalorder %s16, 3
    %p39 = por %p37, %p38
    %p41 = scmp.ne.s32.totalorder %s24, %s40
    %p42 = scmp.eq.s32.totalorder %s16, 0
    %p43 = por %p41, %p42
    %s45 = sadd.s32 %s44, 1
    %p48 = scmp.eq.s32.totalorder %s10, 3
    %p49 = scmp.ne.s32.totalorder %s44, %s46
    %p50 = scmp.eq.s32.totalorder %s10, 0
    %p51 = por %p49, %p50
    %p52 = scmp.ne.s32.totalorder %s44, %s46
    %p53 = scmp.eq.s32.totalorder %s15, 3
    %p54 = por %p52, %p53
    %p55 = scmp.ne.s32.totalorder %s46, %s47
    %p56 = scmp.eq.s32.totalorder %s15, 0
    %p57 = por %p55, %p56
    %p58 = scmp.ne.s32.totalorder %s46, %s47
    %p59 = scmp.eq.s32.totalorder %s16, 3
    %p60 = por %p58, %p59
    %p62 = scmp.ne.s32.totalorder %s47, %s61
    %p63 = scmp.eq.s32.totalorder %s16, 0
    %p64 = por %p62, %p63
    %s65 = ssub.s32 %s10, %s17
    %p66 = scmp.eq.s32.totalorder %s65, 0
    %s68 = sadd.s32 %s67, 1
    %s69 = scalar_select %p66, %s67, %s68
    %p72 = pneg %p66
    %p73 = scmp.eq.s32.totalorder %s10, 3
    %p74 = por %p72, %p73
    %p75 = scmp.ne.s32.totalorder %s67, %s70
    %p76 = scmp.eq.s32.totalorder %s10, 0
    %p77 = por %p75, %p76
    %p78 = scmp.ne.s32.totalorder %s67, %s70
    %p79 = scmp.eq.s32.totalorder %s15, 3
    %p80 = por %p78, %p79
    %p81 = scmp.ne.s32.totalorder %s70, %s71
    %p82 = scmp.eq.s32.totalorder %s15, 0
    %p83 = por %p81, %p82
    %p84 = scmp.ne.s32.totalorder %s70, %s71
    %p85 = scmp.eq.s32.totalorder %s16, 3
    %p86 = por %p84, %p85
    %p88 = scmp.ne.s32.totalorder %s71, %s87
    %p89 = scmp.eq.s32.totalorder %s16, 0
    %p90 = por %p88, %p89
    %s91 = ssub.s32 %s10, %s17
    %p92 = scmp.eq.s32.totalorder %s91, 0
    %s94 = sadd.s32 %s93, 1
    %s95 = scalar_select %p92, %s93, %s94
    %p98 = pneg %p92
    %p99 = scmp.eq.s32.totalorder %s10, 3
    %p100 = por %p98, %p99
    %p101 = scmp.ne.s32.totalorder %s93, %s96
    %p102 = scmp.eq.s32.totalorder %s10, 0
    %p103 = por %p101, %p102
    %p104 = scmp.ne.s32.totalorder %s93, %s96
    %p105 = scmp.eq.s32.totalorder %s15, 3
    %p106 = por %p104, %p105
    %p107 = scmp.ne.s32.totalorder %s96, %s97
    %p108 = scmp.eq.s32.totalorder %s15, 0
    %p109 = por %p107, %p108
    %p110 = scmp.ne.s32.totalorder %s96, %s97
    %p111 = scmp.eq.s32.totalorder %s16, 3
    %p112 = por %p110, %p111
    %p114 = scmp.ne.s32.totalorder %s97, %s113
    %p115 = scmp.eq.s32.totalorder %s16, 0
    %p116 = por %p114, %p115
    %p117 = scmp.le.s32.totalorder 1, %s10
    %p118 = scmp.lt.s32.totalorder %s10, 5
    %p119 = pnand %p117, %p118
    %p120 = pneg %p119
    // Predicated region
    $region9: #{bottleneck_forward.4} parent=5 // pred_check
      _
    $region10: #{bottleneck_forward.4} parent=5 // pred_check_branch
      %122 = sbr.rel (%p119) target = $region12
    $region11: #{bottleneck_forward.4} parent=5 // pred_region
      %s123 = ssub.s32 %s10, 1
      // Predicated region
      $region13: #{bottleneck_forward.4} parent=11 // pred_check
        %p124 = pneg %p57
      $region14: #{bottleneck_forward.4} parent=11 // pred_check_branch
        %126 = sbr.rel (%p124) target = $region16
      $region15: #{bottleneck_forward.4} parent=11 // pred_region
        _
      $region16: #{bottleneck_forward.4} parent=11 // pred_fallthru
        _
    $region12: #{bottleneck_forward.4} parent=5 // pred_fallthru
      _
    %p127 = scmp.lt.s32.totalorder %s10, 4
    // Predicated region
    $region17: #{bottleneck_forward.4} parent=5 // pred_check
      %p128 = pneg %p127
    $region18: #{bottleneck_forward.4} parent=5 // pred_check_branch
      %130 = sbr.rel (%p128) target = $region20
    $region19: #{bottleneck_forward.4} parent=5 // pred_region
      // Predicated region
      $region21: #{bottleneck_forward.4} parent=19 // pred_check
        %p131 = pneg %p30
      $region22: #{bottleneck_forward.4} parent=19 // pred_check_branch
        %133 = sbr.rel (%p131) target = $region24
      $region23: #{bottleneck_forward.4} parent=19 // pred_region
        %s134 = smul.u32 4, %s10
        %p135 = scmp.lt.s32.totalorder %s134, 15
        %s136 = scalar_select %p135, %s134, 15
        %s137 = smul.addr %s136, 4
        %s138 = scalar_lea.vmem %s0, %s137
        %s139 = smul.u32 4, %s10
      $region24: #{bottleneck_forward.4} parent=19 // pred_fallthru
        _
    $region20: #{bottleneck_forward.4} parent=5 // pred_fallthru
      _
    %p140 = scmp.le.s32.totalorder 1, %s10
    %p141 = scmp.lt.s32.totalorder %s10, 5
    %p142 = pnand %p140, %p141
    %p143 = pneg %p142
    // Predicated region
    $region25: #{bottleneck_forward.4} parent=5 // pred_check
      _
    $region26: #{bottleneck_forward.4} parent=5 // pred_check_branch
      %145 = sbr.rel (%p142) target = $region28
    $region27: #{bottleneck_forward.4} parent=5 // pred_region
      %s146 = ssub.s32 %s10, 1
      %s147 = smul.u32 4, %s15
      %p148 = scmp.lt.s32.totalorder %s147, 15
      %s149 = scalar_select %p148, %s147, 15
      %s150 = smul.addr %s149, 4
      %s151 = scalar_lea.vmem %s0, %s150
      %p152 = pneg %p36
      %p153 = pneg %p33
      %p154 = pneg %p57
      %p155 = pneg %p54
      %p156 = pneg %p83
      %p157 = pneg %p80
      %s158 = smul.u32 4, %s15
      %p159 = scmp.lt.s32.totalorder %s158, 15
      %s160 = scalar_select %p159, %s158, 15
      %s161 = smul.addr %s160, 4
      %s162 = scalar_lea.vmem %s2, %s161
      %p163 = pneg %p109
      %p164 = pneg %p106
      %p165 = scmp.lt.s32.totalorder %s15, 3
      %s166 = scalar_select %p165, %s15, 3
      %s167 = smul.addr %s166, 2
      %s168 = scalar_lea.vmem %s3, %s167
      %s169 = smul.u32 4, %s15
      %p170 = scmp.lt.s32.totalorder %s169, 15
      %s171 = scalar_select %p170, %s169, 15
      %s172 = smul.addr %s171, 4
      %s173 = scalar_lea.vmem %s0, %s172
      %s174 = smul.u32 4, %s15
      %s175 = smul.u32 4, %s15
      %p176 = scmp.lt.s32.totalorder %s175, 15
      %s177 = scalar_select %p176, %s175, 15
      %s178 = smul.addr %s177, 4
      %s179 = scalar_lea.vmem %s2, %s178
      %s180 = smul.u32 4, %s15
      %p181 = scmp.lt.s32.totalorder %s15, 3
      %s182 = scalar_select %p181, %s15, 3
      %s183 = smul.addr %s182, 2
      %s184 = scalar_lea.vmem %s3, %s183
      %v186 = vld [vmem:[%s173] sm:$0xf]
      %v187 = vld [vmem:[%s173 + $0x4] sm:$0xf]
      %v188 = vld [vmem:[%s173 + $0x8] sm:$0xf]
      %v189 = vld [vmem:[%s173 + $0xc] sm:$0xf]
      %v190 = vld [vmem:[%s1] sm:$0xf]
      %v191 = vld [vmem:[%s1 + $0x4] sm:$0xf]
      %v192 = vld [vmem:[%s1 + $0x8] sm:$0xf]
      %v193 = vld [vmem:[%s1 + $0xc] sm:$0xf]
      %v194 = vld [vmem:[%s1 + $0x10] sm:$0xf]
      %v195 = vld [vmem:[%s1 + $0x14] sm:$0xf]
      %v196 = vld [vmem:[%s1 + $0x18] sm:$0xf]
      %v197 = vld [vmem:[%s1 + $0x1c] sm:$0xf]
      %v198 = vld [vmem:[%s1 + $0x20] sm:$0xf]
      %v199 = vld [vmem:[%s1 + $0x24] sm:$0xf]
      %v200 = vld [vmem:[%s1 + $0x28] sm:$0xf]
      %v201 = vld [vmem:[%s1 + $0x2c] sm:$0xf]
      %v202 = vld [vmem:[%s1 + $0x30] sm:$0xf]
      %v203 = vld [vmem:[%s1 + $0x34] sm:$0xf]
      %v204 = vld [vmem:[%s1 + $0x38] sm:$0xf]
      %v205 = vld [vmem:[%s1 + $0x3c] sm:$0xf]
      %v210 = vunpack.c.l.b16 %v186
      %v211 = vunpack.c.l.b16 %v187
      %v212 = vunpack.c.l.b16 %v188
      %v213 = vunpack.c.l.b16 %v189
      %v214 = vpack.c.b16 %v211, %v210
      %v215 = vpack.c.b16 %v213, %v212
      %v234 = vunpack.c.l.b16 %v190
      %v235 = vunpack.c.l.b16 %v191
      %v236 = vunpack.c.l.b16 %v192
      %v237 = vunpack.c.l.b16 %v193
      %v238 = vunpack.c.l.b16 %v194
      %v239 = vunpack.c.l.b16 %v195
      %v240 = vunpack.c.l.b16 %v196
      %v241 = vunpack.c.l.b16 %v197
      %v242 = vunpack.c.l.b16 %v198
      %v243 = vunpack.c.l.b16 %v199
      %v244 = vunpack.c.l.b16 %v200
      %v245 = vunpack.c.l.b16 %v201
      %v246 = vunpack.c.l.b16 %v202
      %v247 = vunpack.c.l.b16 %v203
      %v248 = vunpack.c.l.b16 %v204
      %v249 = vunpack.c.l.b16 %v205
      %v250 = vpack.c.b16 %v235, %v234
      %v251 = vpack.c.b16 %v237, %v236
      %v252 = vpack.c.b16 %v239, %v238
      %v253 = vpack.c.b16 %v241, %v240
      %v254 = vpack.c.b16 %v243, %v242
      %v255 = vpack.c.b16 %v245, %v244
      %v256 = vpack.c.b16 %v247, %v246
      %v257 = vpack.c.b16 %v249, %v248
      %266 = vmatprep.subr.bf16.mxu0 0
      %267 = vmatpush1.bf16.msra.mxu0 %v250
      %268 = vmatprep.subr.bf16.mxu0 0
      %269 = vmatpush1.bf16.msra.mxu0 %v251
      %270 = vmatprep.subr.bf16.mxu0 0
      %271 = vmatpush1.bf16.msra.mxu0 %v252
      %272 = vmatprep.subr.bf16.mxu0 0
      %273 = vmatpush1.bf16.msra.mxu0 %v253
      %274 = vmatprep.subr.bf16.mxu0 0
      %275 = vmatpush1.bf16.msra.mxu0 %v254
      %276 = vmatprep.subr.bf16.mxu0 0
      %277 = vmatpush1.bf16.msra.mxu0 %v255
      %278 = vmatprep.subr.bf16.mxu0 0
      %279 = vmatpush1.bf16.msra.mxu0 %v256
      %280 = vmatprep.subr.bf16.mxu0 0
      %281 = vmatpush1.bf16.msra.mxu0 %v257
      %282 = vmatprep.subr.bf16.mxu0 0
      %283 = vmatpush1.bf16.msra.mxu0 0
      %284 = vmatprep.subr.bf16.mxu0 0
      %285 = vmatpush1.bf16.msra.mxu0 0
      %286 = vmatprep.subr.bf16.mxu0 0
      %287 = vmatpush1.bf16.msra.mxu0 0
      %288 = vmatprep.subr.bf16.mxu0 0
      %289 = vmatpush1.bf16.msra.mxu0 0
      %290 = vmatprep.subr.bf16.mxu0 0
      %291 = vmatpush1.bf16.msra.mxu0 0
      %292 = vmatprep.subr.bf16.mxu0 0
      %293 = vmatpush1.bf16.msra.mxu0 0
      %294 = vmatprep.subr.bf16.mxu0 0
      %295 = vmatpush1.bf16.msra.mxu0 0
      %296 = vmatprep.subr.bf16.mxu0 0
      %297 = vmatpush1.bf16.msra.mxu0 0
      %298 = vmatprep.mubr.bf16.mxu0 0
      %299 = vmatmul.mubr.bf16.gmra.mrb[0].mxu0 %v214
      %v300 = vpop.f32.mrb[0].mxu0
      %v301 = vadd.f32 0.0, %v300
      %v302 = vpop.f32.mrb[0].mxu0
      %v303 = vpop.f32.mrb[0].mxu0
      %v304 = vadd.f32 0.0, %v303
      %v305 = vpop.f32.mrb[0].mxu0
      %306 = vmatprep.mubr.bf16.mxu0 0
      %307 = vmatmul.mubr.bf16.gmra.mrb[0].mxu0 %v215
      %v308 = vpop.f32.mrb[0].mxu0
      %v309 = vadd.f32 0.0, %v308
      %v310 = vpop.f32.mrb[0].mxu0
      %v311 = vpop.f32.mrb[0].mxu0
      %v312 = vadd.f32 0.0, %v311
      %v313 = vpop.f32.mrb[0].mxu0
      %314 = vdwg.mxu0
      %v315 = vpack.c.bf16 %v304, %v301
      %v316 = vpack.c.bf16 %v312, %v309
      %v319 = vunpack.c.l.b16 %v315
      %v320 = vunpack.c.h.b16 %v315
      %v321 = vunpack.c.l.b16 %v316
      %v322 = vunpack.c.h.b16 %v316
      %v323 = vpack.c.b16 %v319, %v319
      %v324 = vpack.c.b16 %v320, %v320
      %v325 = vpack.c.b16 %v321, %v321
      %v326 = vpack.c.b16 %v322, %v322
      %331 = vst [vmem:[%s179] sm:$0xf] %v323
      %332 = vst [vmem:[%s179 + $0x4] sm:$0xf] %v324
      %333 = vst [vmem:[%s179 + $0x8] sm:$0xf] %v325
      %334 = vst [vmem:[%s179 + $0xc] sm:$0xf] %v326
      %v335 = vadd.f32 %v301, %v304
      %v336 = vadd.f32 %v335, %v309
      %v337 = vadd.f32 %v336, %v312
      %v338 = vrot.slane %v337, 4
      %v339 = vadd.f32 %v337, %v338
      %v340 = vrot.slane %v339, 2
      %v341 = vadd.f32 %v339, %v340
      %v342 = vrot.slane %v341, 1
      %v343 = vadd.f32 %v341, %v342
      %v344 = vmul.f32 %v301, %v301
      %v345 = vmul.f32 %v304, %v304
      %v346 = vmul.f32 %v309, %v309
      %v347 = vmul.f32 %v312, %v312
      %v348 = vadd.f32 %v344, %v345
      %v349 = vadd.f32 %v348, %v346
      %v350 = vadd.f32 %v349, %v347
      %v351 = vrot.slane %v350, 4
      %v352 = vadd.f32 %v350, %v351
      %v353 = vrot.slane %v352, 2
      %v354 = vadd.f32 %v352, %v353
      %v355 = vrot.slane %v354, 1
      %v356 = vadd.f32 %v354, %v355
      %vm357 = vcmask 1040384
      %v358 = vsel %vm357, %v343, %v356
      %359 = vst [vmem:[%s184] sm:$0x3] %v358
      %s360 = smul.u32 4, %s15
      %p361 = scmp.lt.s32.totalorder %s360, 15
      %s362 = scalar_select %p361, %s360, 15
      %s363 = smul.addr %s362, 4
      %s364 = scalar_lea.vmem %s2, %s363
      %p365 = scmp.lt.s32.totalorder %s15, 3
      %s366 = scalar_select %p365, %s15, 3
      %s367 = smul.addr %s366, 2
      %s368 = scalar_lea.vmem %s3, %s367
      // Predicated region
      $region29: #{bottleneck_forward.4} parent=27 // pred_check
        %p369 = pneg %p80
      $region30: #{bottleneck_forward.4} parent=27 // pred_check_branch
        %371 = sbr.rel (%p369) target = $region32
      $region31: #{bottleneck_forward.4} parent=27 // pred_region
        %s372 = smul.u32 4, %s15
      $region32: #{bottleneck_forward.4} parent=27 // pred_fallthru
        _
      // Predicated region
      $region33: #{bottleneck_forward.4} parent=27 // pred_check
        %p373 = pneg %p106
      $region34: #{bottleneck_forward.4} parent=27 // pred_check_branch
        %375 = sbr.rel (%p373) target = $region36
      $region35: #{bottleneck_forward.4} parent=27 // pred_region
        _
      $region36: #{bottleneck_forward.4} parent=27 // pred_fallthru
        _
    $region28: #{bottleneck_forward.4} parent=5 // pred_fallthru
      _
    %p376 = scmp.le.s32.totalorder 2, %s10
    // Predicated region
    $region37: #{bottleneck_forward.4} parent=5 // pred_check
      %p377 = pneg %p376
    $region38: #{bottleneck_forward.4} parent=5 // pred_check_branch
      %379 = sbr.rel (%p377) target = $region40
    $region39: #{bottleneck_forward.4} parent=5 // pred_region
      %s380 = ssub.s32 %s10, 2
      // Predicated region
      $region41: #{bottleneck_forward.4} parent=39 // pred_check
        %p381 = pneg %p86
      $region42: #{bottleneck_forward.4} parent=39 // pred_check_branch
        %383 = sbr.rel (%p381) target = $region44
      $region43: #{bottleneck_forward.4} parent=39 // pred_region
        %s384 = smul.u32 4, %s16
        %p385 = scmp.lt.s32.totalorder %s384, 15
        %s386 = scalar_select %p385, %s384, 15
        %s387 = smul.addr %s386, 4
        %s388 = scalar_lea.vmem %s2, %s387
      $region44: #{bottleneck_forward.4} parent=39 // pred_fallthru
        _
      // Predicated region
      $region45: #{bottleneck_forward.4} parent=39 // pred_check
        %p389 = pneg %p112
      $region46: #{bottleneck_forward.4} parent=39 // pred_check_branch
        %391 = sbr.rel (%p389) target = $region48
      $region47: #{bottleneck_forward.4} parent=39 // pred_region
        %p392 = scmp.lt.s32.totalorder %s16, 3
        %s393 = scalar_select %p392, %s16, 3
        %s394 = smul.addr %s393, 2
        %s395 = scalar_lea.vmem %s3, %s394
      $region48: #{bottleneck_forward.4} parent=39 // pred_fallthru
        _
    $region40: #{bottleneck_forward.4} parent=5 // pred_fallthru
      _
  $region6: #{bottleneck_forward.4} parent=0 // loop_footer
    %s14 = sadd.s32 1, %s10
  $region7: #{bottleneck_forward.4} parent=0 // loop_footer_branch
    %9 = sbr.rel target = $region3
  $region8: #{bottleneck_forward.4} parent=0 // loop_exit
    _

// kernel: bottleneck_forward.6
$region0: #{bottleneck_forward.6}
  #allocation0 [shape = 'u32[]', space=smem, size = 0x4, offset = 0x4, fixed_abs, tag = 'smem constant byte address 0x4 - core index']
  #allocation1 [shape = 'u32[144,128]{1,0:T(1,128)}', space=vmem, size = 0x12000, scoped, tag = 'internal scratch']
  %s0 = inlined_call_operand.vmem [shape: bf16[128,128], index: 0, kind: input, shape index: {}]
  %s1 = inlined_call_operand.vmem [shape: f32[1,128], index: 1, kind: input, shape index: {}]
  %s2 = inlined_call_operand.vmem [shape: f32[1,128], index: 2, kind: input, shape index: {}]
  %s3 = inlined_call_operand.vmem [shape: bf16[128,128], index: 3, kind: input, shape index: {}]
  %s4 = inlined_call_operand.vmem [shape: bf16[128,128], index: 4, kind: output, shape index: {0}]
  %s5 = inlined_call_operand.vmem [shape: f32[4,2,128], index: 5, kind: output, shape index: {1}]
  %6 = xla_tuple %s4, %s5
  %s7 = sld [smem:[#allocation0]]
  $region57: #{bottleneck_forward.6} parent=0
    _
  %s9 = ssub.s32 1, %s7
  %s10 = scalar_select 0, %s9, %s7
  loop: start=0, step=1, limit=6
  $region2: #{bottleneck_forward.6} parent=0 // loop_pre_header
    _
  $region3: #{bottleneck_forward.6} parent=0 // loop_header
    %s12 = sphi 0, %s16
    %p13 = scmp.ge.s32.totalorder %s12, 6
    %s22 = sphi 0, %s24
    %s25 = sphi 0, %s22
    %s26 = sphi 0, %s25
    %s42 = sphi 0, %s26
    %s46 = sphi 0, %s46
    %s48 = sphi 0, %s46
    %s49 = sphi 0, %s48
    %s63 = sphi 0, %s49
    %s67 = sphi 0, %s67
    %s69 = sphi 0, %s67
    %s70 = sphi 0, %s69
    %s84 = sphi 0, %s70
    %s88 = sphi 0, %s88
    %s90 = sphi 0, %s88
    %s91 = sphi 0, %s90
    %s105 = sphi 0, %s91
    %s111 = sphi 0, %s113
    %s114 = sphi 0, %s111
    %s115 = sphi 0, %s114
    %s131 = sphi 0, %s115
    %s137 = sphi 0, %s139
    %s140 = sphi 0, %s137
    %s141 = sphi 0, %s140
    %s157 = sphi 0, %s141
  $region4: #{bottleneck_forward.6} parent=0 // loop_header_branch
    %15 = sbr.rel (%p13) target = $region8
  $region5: #{bottleneck_forward.6} parent=0 // loop_body
    %s17 = ssub.s32 %s12, 1
    %s18 = ssub.s32 %s12, 2
    %s19 = sadd.s32 %s12, 1
    %s20 = ssub.s32 %s12, %s19
    %p21 = scmp.eq.s32.totalorder %s20, 0
    %s23 = sadd.s32 %s22, 1
    %s24 = scalar_select %p21, %s22, %s23
    %p27 = pneg %p21
    %p28 = scmp.eq.s32.totalorder %s12, 3
    %p29 = por %p27, %p28
    %p30 = scmp.ne.s32.totalorder %s22, %s25
    %p31 = scmp.eq.s32.totalorder %s12, 0
    %p32 = por %p30, %p31
    %p33 = scmp.ne.s32.totalorder %s22, %s25
    %p34 = scmp.eq.s32.totalorder %s17, 3
    %p35 = por %p33, %p34
    %p36 = scmp.ne.s32.totalorder %s25, %s26
    %p37 = scmp.eq.s32.totalorder %s17, 0
    %p38 = por %p36, %p37
    %p39 = scmp.ne.s32.totalorder %s25, %s26
    %p40 = scmp.eq.s32.totalorder %s18, 3
    %p41 = por %p39, %p40
    %p43 = scmp.ne.s32.totalorder %s26, %s42
    %p44 = scmp.eq.s32.totalorder %s18, 0
    %p45 = por %p43, %p44
    %s47 = sadd.s32 %s46, 1
    %p50 = scmp.eq.s32.totalorder %s12, 3
    %p51 = scmp.ne.s32.totalorder %s46, %s48
    %p52 = scmp.eq.s32.totalorder %s12, 0
    %p53 = por %p51, %p52
    %p54 = scmp.ne.s32.totalorder %s46, %s48
    %p55 = scmp.eq.s32.totalorder %s17, 3
    %p56 = por %p54, %p55
    %p57 = scmp.ne.s32.totalorder %s48, %s49
    %p58 = scmp.eq.s32.totalorder %s17, 0
    %p59 = por %p57, %p58
    %p60 = scmp.ne.s32.totalorder %s48, %s49
    %p61 = scmp.eq.s32.totalorder %s18, 3
    %p62 = por %p60, %p61
    %p64 = scmp.ne.s32.totalorder %s49, %s63
    %p65 = scmp.eq.s32.totalorder %s18, 0
    %p66 = por %p64, %p65
    %s68 = sadd.s32 %s67, 1
    %p71 = scmp.eq.s32.totalorder %s12, 3
    %p72 = scmp.ne.s32.totalorder %s67, %s69
    %p73 = scmp.eq.s32.totalorder %s12, 0
    %p74 = por %p72, %p73
    %p75 = scmp.ne.s32.totalorder %s67, %s69
    %p76 = scmp.eq.s32.totalorder %s17, 3
    %p77 = por %p75, %p76
    %p78 = scmp.ne.s32.totalorder %s69, %s70
    %p79 = scmp.eq.s32.totalorder %s17, 0
    %p80 = por %p78, %p79
    %p81 = scmp.ne.s32.totalorder %s69, %s70
    %p82 = scmp.eq.s32.totalorder %s18, 3
    %p83 = por %p81, %p82
    %p85 = scmp.ne.s32.totalorder %s70, %s84
    %p86 = scmp.eq.s32.totalorder %s18, 0
    %p87 = por %p85, %p86
    %s89 = sadd.s32 %s88, 1
    %p92 = scmp.eq.s32.totalorder %s12, 3
    %p93 = scmp.ne.s32.totalorder %s88, %s90
    %p94 = scmp.eq.s32.totalorder %s12, 0
    %p95 = por %p93, %p94
    %p96 = scmp.ne.s32.totalorder %s88, %s90
    %p97 = scmp.eq.s32.totalorder %s17, 3
    %p98 = por %p96, %p97
    %p99 = scmp.ne.s32.totalorder %s90, %s91
    %p100 = scmp.eq.s32.totalorder %s17, 0
    %p101 = por %p99, %p100
    %p102 = scmp.ne.s32.totalorder %s90, %s91
    %p103 = scmp.eq.s32.totalorder %s18, 3
    %p104 = por %p102, %p103
    %p106 = scmp.ne.s32.totalorder %s91, %s105
    %p107 = scmp.eq.s32.totalorder %s18, 0
    %p108 = por %p106, %p107
    %s109 = ssub.s32 %s12, %s19
    %p110 = scmp.eq.s32.totalorder %s109, 0
    %s112 = sadd.s32 %s111, 1
    %s113 = scalar_select %p110, %s111, %s112
    %p116 = pneg %p110
    %p117 = scmp.eq.s32.totalorder %s12, 3
    %p118 = por %p116, %p117
    %p119 = scmp.ne.s32.totalorder %s111, %s114
    %p120 = scmp.eq.s32.totalorder %s12, 0
    %p121 = por %p119, %p120
    %p122 = scmp.ne.s32.totalorder %s111, %s114
    %p123 = scmp.eq.s32.totalorder %s17, 3
    %p124 = por %p122, %p123
    %p125 = scmp.ne.s32.totalorder %s114, %s115
    %p126 = scmp.eq.s32.totalorder %s17, 0
    %p127 = por %p125, %p126
    %p128 = scmp.ne.s32.totalorder %s114, %s115
    %p129 = scmp.eq.s32.totalorder %s18, 3
    %p130 = por %p128, %p129
    %p132 = scmp.ne.s32.totalorder %s115, %s131
    %p133 = scmp.eq.s32.totalorder %s18, 0
    %p134 = por %p132, %p133
    %s135 = ssub.s32 %s12, %s19
    %p136 = scmp.eq.s32.totalorder %s135, 0
    %s138 = sadd.s32 %s137, 1
    %s139 = scalar_select %p136, %s137, %s138
    %p142 = pneg %p136
    %p143 = scmp.eq.s32.totalorder %s12, 3
    %p144 = por %p142, %p143
    %p145 = scmp.ne.s32.totalorder %s137, %s140
    %p146 = scmp.eq.s32.totalorder %s12, 0
    %p147 = por %p145, %p146
    %p148 = scmp.ne.s32.totalorder %s137, %s140
    %p149 = scmp.eq.s32.totalorder %s17, 3
    %p150 = por %p148, %p149
    %p151 = scmp.ne.s32.totalorder %s140, %s141
    %p152 = scmp.eq.s32.totalorder %s17, 0
    %p153 = por %p151, %p152
    %p154 = scmp.ne.s32.totalorder %s140, %s141
    %p155 = scmp.eq.s32.totalorder %s18, 3
    %p156 = por %p154, %p155
    %p158 = scmp.ne.s32.totalorder %s141, %s157
    %p159 = scmp.eq.s32.totalorder %s18, 0
    %p160 = por %p158, %p159
    %p161 = scmp.le.s32.totalorder 1, %s12
    %p162 = scmp.lt.s32.totalorder %s12, 5
    %p163 = pnand %p161, %p162
    %p164 = pneg %p163
    // Predicated region
    $region9: #{bottleneck_forward.6} parent=5 // pred_check
      _
    $region10: #{bottleneck_forward.6} parent=5 // pred_check_branch
      %166 = sbr.rel (%p163) target = $region12
    $region11: #{bottleneck_forward.6} parent=5 // pred_region
      %s167 = ssub.s32 %s12, 1
      // Predicated region
      $region13: #{bottleneck_forward.6} parent=11 // pred_check
        %p168 = pneg %p59
      $region14: #{bottleneck_forward.6} parent=11 // pred_check_branch
        %170 = sbr.rel (%p168) target = $region16
      $region15: #{bottleneck_forward.6} parent=11 // pred_region
        _
      $region16: #{bottleneck_forward.6} parent=11 // pred_fallthru
        _
      // Predicated region
      $region17: #{bottleneck_forward.6} parent=11 // pred_check
        %p171 = pneg %p80
      $region18: #{bottleneck_forward.6} parent=11 // pred_check_branch
        %173 = sbr.rel (%p171) target = $region20
      $region19: #{bottleneck_forward.6} parent=11 // pred_region
        _
      $region20: #{bottleneck_forward.6} parent=11 // pred_fallthru
        _
      // Predicated region
      $region21: #{bottleneck_forward.6} parent=11 // pred_check
        %p174 = pneg %p101
      $region22: #{bottleneck_forward.6} parent=11 // pred_check_branch
        %176 = sbr.rel (%p174) target = $region24
      $region23: #{bottleneck_forward.6} parent=11 // pred_region
        _
      $region24: #{bottleneck_forward.6} parent=11 // pred_fallthru
        _
    $region12: #{bottleneck_forward.6} parent=5 // pred_fallthru
      _
    %p177 = scmp.lt.s32.totalorder %s12, 4
    // Predicated region
    $region25: #{bottleneck_forward.6} parent=5 // pred_check
      %p178 = pneg %p177
    $region26: #{bottleneck_forward.6} parent=5 // pred_check_branch
      %180 = sbr.rel (%p178) target = $region28
    $region27: #{bottleneck_forward.6} parent=5 // pred_region
      // Predicated region
      $region29: #{bottleneck_forward.6} parent=27 // pred_check
        %p181 = pneg %p32
      $region30: #{bottleneck_forward.6} parent=27 // pred_check_branch
        %183 = sbr.rel (%p181) target = $region32
      $region31: #{bottleneck_forward.6} parent=27 // pred_region
        %s184 = smul.u32 4, %s12
        %p185 = scmp.lt.s32.totalorder %s184, 15
        %s186 = scalar_select %p185, %s184, 15
        %s187 = smul.addr %s186, 4
        %s188 = scalar_lea.vmem %s0, %s187
        %s189 = smul.u32 4, %s12
      $region32: #{bottleneck_forward.6} parent=27 // pred_fallthru
        _
    $region28: #{bottleneck_forward.6} parent=5 // pred_fallthru
      _
    %p190 = scmp.le.s32.totalorder 1, %s12
    %p191 = scmp.lt.s32.totalorder %s12, 5
    %p192 = pnand %p190, %p191
    %p193 = pneg %p192
    // Predicated region
    $region33: #{bottleneck_forward.6} parent=5 // pred_check
      _
    $region34: #{bottleneck_forward.6} parent=5 // pred_check_branch
      %195 = sbr.rel (%p192) target = $region36
    $region35: #{bottleneck_forward.6} parent=5 // pred_region
      %s196 = ssub.s32 %s12, 1
      %s197 = smul.u32 4, %s17
      %p198 = scmp.lt.s32.totalorder %s197, 15
      %s199 = scalar_select %p198, %s197, 15
      %s200 = smul.addr %s199, 4
      %s201 = scalar_lea.vmem %s0, %s200
      %p202 = pneg %p38
      %p203 = pneg %p35
      %p204 = pneg %p59
      %p205 = pneg %p56
      %p206 = pneg %p80
      %p207 = pneg %p77
      %p208 = pneg %p101
      %p209 = pneg %p98
      %p210 = pneg %p127
      %p211 = pneg %p124
      %s212 = smul.u32 4, %s17
      %p213 = scmp.lt.s32.totalorder %s212, 15
      %s214 = scalar_select %p213, %s212, 15
      %s215 = smul.addr %s214, 4
      %s216 = scalar_lea.vmem %s4, %s215
      %p217 = pneg %p153
      %p218 = pneg %p150
      %p219 = scmp.lt.s32.totalorder %s17, 3
      %s220 = scalar_select %p219, %s17, 3
      %s221 = smul.addr %s220, 2
      %s222 = scalar_lea.vmem %s5, %s221
      %s223 = smul.u32 4, %s17
      %p224 = scmp.lt.s32.totalorder %s223, 15
      %s225 = scalar_select %p224, %s223, 15
      %s226 = smul.addr %s225, 4
      %s227 = scalar_lea.vmem %s0, %s226
      %s228 = smul.u32 4, %s17
      %s229 = smul.u32 4, %s17
      %p230 = scmp.lt.s32.totalorder %s229, 15
      %s231 = scalar_select %p230, %s229, 15
      %s232 = smul.addr %s231, 4
      %s233 = scalar_lea.vmem %s4, %s232
      %s234 = smul.u32 4, %s17
      %p235 = scmp.lt.s32.totalorder %s17, 3
      %s236 = scalar_select %p235, %s17, 3
      %s237 = smul.addr %s236, 2
      %s238 = scalar_lea.vmem %s5, %s237
      %v240 = vld [vmem:[%s227] sm:$0xf]
      %v241 = vld [vmem:[%s227 + $0x4] sm:$0xf]
      %v242 = vld [vmem:[%s227 + $0x8] sm:$0xf]
      %v243 = vld [vmem:[%s227 + $0xc] sm:$0xf]
      %v244 = vunpack.c.l.bf16 %v240
      %v245 = vunpack.c.l.bf16 %v241
      %v246 = vunpack.c.l.bf16 %v242
      %v247 = vunpack.c.l.bf16 %v243
      %v248 = vld [vmem:[%s1] sm:$0x1]
      %v250 = vlaneseq
      %v251 = vshrl.u32 %v250, 7
      %v252 = vsub.s32 0, %v251
      %v253 = vrot.slane %v248, %v252
      %v255 = vmul.f32 %v244, %v253
      %v256 = vmul.f32 %v245, %v253
      %v257 = vmul.f32 %v246, %v253
      %v258 = vmul.f32 %v247, %v253
      %v259 = vld [vmem:[%s2] sm:$0x1]
      %v261 = vlaneseq
      %v262 = vshrl.u32 %v261, 7
      %v263 = vsub.s32 0, %v262
      %v264 = vrot.slane %v259, %v263
      %v266 = vadd.f32 %v255, %v264
      %v267 = vadd.f32 %v256, %v264
      %v268 = vadd.f32 %v257, %v264
      %v269 = vadd.f32 %v258, %v264
      %v270 = vmax.f32 %v266, 0.0
      %v271 = vmax.f32 %v267, 0.0
      %v272 = vmax.f32 %v268, 0.0
      %v273 = vmax.f32 %v269, 0.0
      %v274 = vpack.c.bf16 %v271, %v270
      %v275 = vpack.c.bf16 %v273, %v272
      %v276 = vld [vmem:[%s3] sm:$0xf]
      %v277 = vld [vmem:[%s3 + $0x4] sm:$0xf]
      %v278 = vld [vmem:[%s3 + $0x8] sm:$0xf]
      %v279 = vld [vmem:[%s3 + $0xc] sm:$0xf]
      %v280 = vld [vmem:[%s3 + $0x10] sm:$0xf]
      %v281 = vld [vmem:[%s3 + $0x14] sm:$0xf]
      %v282 = vld [vmem:[%s3 + $0x18] sm:$0xf]
      %v283 = vld [vmem:[%s3 + $0x1c] sm:$0xf]
      %v284 = vld [vmem:[%s3 + $0x20] sm:$0xf]
      %v285 = vld [vmem:[%s3 + $0x24] sm:$0xf]
      %v286 = vld [vmem:[%s3 + $0x28] sm:$0xf]
      %v287 = vld [vmem:[%s3 + $0x2c] sm:$0xf]
      %v288 = vld [vmem:[%s3 + $0x30] sm:$0xf]
      %v289 = vld [vmem:[%s3 + $0x34] sm:$0xf]
      %v290 = vld [vmem:[%s3 + $0x38] sm:$0xf]
      %v291 = vld [vmem:[%s3 + $0x3c] sm:$0xf]
      %v308 = vunpack.c.l.b16 %v276
      %v309 = vunpack.c.l.b16 %v277
      %v310 = vunpack.c.l.b16 %v278
      %v311 = vunpack.c.l.b16 %v279
      %v312 = vunpack.c.l.b16 %v280
      %v313 = vunpack.c.l.b16 %v281
      %v314 = vunpack.c.l.b16 %v282
      %v315 = vunpack.c.l.b16 %v283
      %v316 = vunpack.c.l.b16 %v284
      %v317 = vunpack.c.l.b16 %v285
      %v318 = vunpack.c.l.b16 %v286
      %v319 = vunpack.c.l.b16 %v287
      %v320 = vunpack.c.l.b16 %v288
      %v321 = vunpack.c.l.b16 %v289
      %v322 = vunpack.c.l.b16 %v290
      %v323 = vunpack.c.l.b16 %v291
      %v324 = vpack.c.b16 %v309, %v308
      %v325 = vpack.c.b16 %v311, %v310
      %v326 = vpack.c.b16 %v313, %v312
      %v327 = vpack.c.b16 %v315, %v314
      %v328 = vpack.c.b16 %v317, %v316
      %v329 = vpack.c.b16 %v319, %v318
      %v330 = vpack.c.b16 %v321, %v320
      %v331 = vpack.c.b16 %v323, %v322
      %340 = vmatprep.subr.bf16.mxu0 0
      %341 = vmatpush1.bf16.msra.mxu0 %v324
      %342 = vmatprep.subr.bf16.mxu0 0
      %343 = vmatpush1.bf16.msra.mxu0 %v325
      %344 = vmatprep.subr.bf16.mxu0 0
      %345 = vmatpush1.bf16.msra.mxu0 %v326
      %346 = vmatprep.subr.bf16.mxu0 0
      %347 = vmatpush1.bf16.msra.mxu0 %v327
      %348 = vmatprep.subr.bf16.mxu0 0
      %349 = vmatpush1.bf16.msra.mxu0 %v328
      %350 = vmatprep.subr.bf16.mxu0 0
      %351 = vmatpush1.bf16.msra.mxu0 %v329
      %352 = vmatprep.subr.bf16.mxu0 0
      %353 = vmatpush1.bf16.msra.mxu0 %v330
      %354 = vmatprep.subr.bf16.mxu0 0
      %355 = vmatpush1.bf16.msra.mxu0 %v331
      %356 = vmatprep.subr.bf16.mxu0 0
      %357 = vmatpush1.bf16.msra.mxu0 0
      %358 = vmatprep.subr.bf16.mxu0 0
      %359 = vmatpush1.bf16.msra.mxu0 0
      %360 = vmatprep.subr.bf16.mxu0 0
      %361 = vmatpush1.bf16.msra.mxu0 0
      %362 = vmatprep.subr.bf16.mxu0 0
      %363 = vmatpush1.bf16.msra.mxu0 0
      %364 = vmatprep.subr.bf16.mxu0 0
      %365 = vmatpush1.bf16.msra.mxu0 0
      %366 = vmatprep.subr.bf16.mxu0 0
      %367 = vmatpush1.bf16.msra.mxu0 0
      %368 = vmatprep.subr.bf16.mxu0 0
      %369 = vmatpush1.bf16.msra.mxu0 0
      %370 = vmatprep.subr.bf16.mxu0 0
      %371 = vmatpush1.bf16.msra.mxu0 0
      %372 = vmatprep.mubr.bf16.mxu0 0
      %373 = vmatmul.mubr.bf16.gmra.mrb[0].mxu0 %v274
      %v374 = vpop.f32.mrb[0].mxu0
      %v375 = vadd.f32 0.0, %v374
      %v376 = vpop.f32.mrb[0].mxu0
      %v377 = vpop.f32.mrb[0].mxu0
      %v378 = vadd.f32 0.0, %v377
      %v379 = vpop.f32.mrb[0].mxu0
      %380 = vmatprep.mubr.bf16.mxu0 0
      %381 = vmatmul.mubr.bf16.gmra.mrb[0].mxu0 %v275
      %v382 = vpop.f32.mrb[0].mxu0
      %v383 = vadd.f32 0.0, %v382
      %v384 = vpop.f32.mrb[0].mxu0
      %v385 = vpop.f32.mrb[0].mxu0
      %v386 = vadd.f32 0.0, %v385
      %v387 = vpop.f32.mrb[0].mxu0
      %388 = vdwg.mxu0
      %v389 = vpack.c.bf16 %v378, %v375
      %v390 = vpack.c.bf16 %v386, %v383
      %v393 = vunpack.c.l.b16 %v389
      %v394 = vunpack.c.h.b16 %v389
      %v395 = vunpack.c.l.b16 %v390
      %v396 = vunpack.c.h.b16 %v390
      %v397 = vpack.c.b16 %v393, %v393
      %v398 = vpack.c.b16 %v394, %v394
      %v399 = vpack.c.b16 %v395, %v395
      %v400 = vpack.c.b16 %v396, %v396
      %405 = vst [vmem:[%s233] sm:$0xf] %v397
      %406 = vst [vmem:[%s233 + $0x4] sm:$0xf] %v398
      %407 = vst [vmem:[%s233 + $0x8] sm:$0xf] %v399
      %408 = vst [vmem:[%s233 + $0xc] sm:$0xf] %v400
      %v409 = vadd.f32 %v375, %v378
      %v410 = vadd.f32 %v409, %v383
      %v411 = vadd.f32 %v410, %v386
      %v412 = vrot.slane %v411, 4
      %v413 = vadd.f32 %v411, %v412
      %v414 = vrot.slane %v413, 2
      %v415 = vadd.f32 %v413, %v414
      %v416 = vrot.slane %v415, 1
      %v417 = vadd.f32 %v415, %v416
      %v418 = vmul.f32 %v375, %v375
      %v419 = vmul.f32 %v378, %v378
      %v420 = vmul.f32 %v383, %v383
      %v421 = vmul.f32 %v386, %v386
      %v422 = vadd.f32 %v418, %v419
      %v423 = vadd.f32 %v422, %v420
      %v424 = vadd.f32 %v423, %v421
      %v425 = vrot.slane %v424, 4
      %v426 = vadd.f32 %v424, %v425
      %v427 = vrot.slane %v426, 2
      %v428 = vadd.f32 %v426, %v427
      %v429 = vrot.slane %v428, 1
      %v430 = vadd.f32 %v428, %v429
      %vm431 = vcmask 1040384
      %v432 = vsel %vm431, %v417, %v430
      %433 = vst [vmem:[%s238] sm:$0x3] %v432
      %s434 = smul.u32 4, %s17
      %p435 = scmp.lt.s32.totalorder %s434, 15
      %s436 = scalar_select %p435, %s434, 15
      %s437 = smul.addr %s436, 4
      %s438 = scalar_lea.vmem %s4, %s437
      %p439 = scmp.lt.s32.totalorder %s17, 3
      %s440 = scalar_select %p439, %s17, 3
      %s441 = smul.addr %s440, 2
      %s442 = scalar_lea.vmem %s5, %s441
      // Predicated region
      $region37: #{bottleneck_forward.6} parent=35 // pred_check
        %p443 = pneg %p124
      $region38: #{bottleneck_forward.6} parent=35 // pred_check_branch
        %445 = sbr.rel (%p443) target = $region40
      $region39: #{bottleneck_forward.6} parent=35 // pred_region
        %s446 = smul.u32 4, %s17
      $region40: #{bottleneck_forward.6} parent=35 // pred_fallthru
        _
      // Predicated region
      $region41: #{bottleneck_forward.6} parent=35 // pred_check
        %p447 = pneg %p150
      $region42: #{bottleneck_forward.6} parent=35 // pred_check_branch
        %449 = sbr.rel (%p447) target = $region44
      $region43: #{bottleneck_forward.6} parent=35 // pred_region
        _
      $region44: #{bottleneck_forward.6} parent=35 // pred_fallthru
        _
    $region36: #{bottleneck_forward.6} parent=5 // pred_fallthru
      _
    %p450 = scmp.le.s32.totalorder 2, %s12
    // Predicated region
    $region45: #{bottleneck_forward.6} parent=5 // pred_check
      %p451 = pneg %p450
    $region46: #{bottleneck_forward.6} parent=5 // pred_check_branch
      %453 = sbr.rel (%p451) target = $region48
    $region47: #{bottleneck_forward.6} parent=5 // pred_region
      %s454 = ssub.s32 %s12, 2
      // Predicated region
      $region49: #{bottleneck_forward.6} parent=47 // pred_check
        %p455 = pneg %p130
      $region50: #{bottleneck_forward.6} parent=47 // pred_check_branch
        %457 = sbr.rel (%p455) target = $region52
      $region51: #{bottleneck_forward.6} parent=47 // pred_region
        %s458 = smul.u32 4, %s18
        %p459 = scmp.lt.s32.totalorder %s458, 15
        %s460 = scalar_select %p459, %s458, 15
        %s461 = smul.addr %s460, 4
        %s462 = scalar_lea.vmem %s4, %s461
      $region52: #{bottleneck_forward.6} parent=47 // pred_fallthru
        _
      // Predicated region
      $region53: #{bottleneck_forward.6} parent=47 // pred_check
        %p463 = pneg %p156
      $region54: #{bottleneck_forward.6} parent=47 // pred_check_branch
        %465 = sbr.rel (%p463) target = $region56
      $region55: #{bottleneck_forward.6} parent=47 // pred_region
        %p466 = scmp.lt.s32.totalorder %s18, 3
        %s467 = scalar_select %p466, %s18, 3
        %s468 = smul.addr %s467, 2
        %s469 = scalar_lea.vmem %s5, %s468
      $region56: #{bottleneck_forward.6} parent=47 // pred_fallthru
        _
    $region48: #{bottleneck_forward.6} parent=5 // pred_fallthru
      _
  $region6: #{bottleneck_forward.6} parent=0 // loop_footer
    %s16 = sadd.s32 1, %s12
  $region7: #{bottleneck_forward.6} parent=0 // loop_footer_branch
    %11 = sbr.rel target = $region3
  $region8: #{bottleneck_forward.6} parent=0 // loop_exit
    _

// kernel: bottleneck_forward.7
$region0: #{bottleneck_forward.7}
  #allocation0 [shape = 'u32[]', space=smem, size = 0x4, offset = 0x4, fixed_abs, tag = 'smem constant byte address 0x4 - core index']
  #allocation1 [shape = 'u32[144,128]{1,0:T(1,128)}', space=vmem, size = 0x12000, scoped, tag = 'internal scratch']
  %s0 = inlined_call_operand.vmem [shape: bf16[128,128], index: 0, kind: input, shape index: {}]
  %s1 = inlined_call_operand.vmem [shape: f32[1,128], index: 1, kind: input, shape index: {}]
  %s2 = inlined_call_operand.vmem [shape: f32[1,128], index: 2, kind: input, shape index: {}]
  %s3 = inlined_call_operand.vmem [shape: f32[128,128], index: 3, kind: input, shape index: {}]
  %s4 = inlined_call_operand.hbm [shape: f32[128,128], index: 4, kind: output, shape index: {}]
  %s5 = sld [smem:[#allocation0]]
  $region49: #{bottleneck_forward.7} parent=0
    _
  %s7 = ssub.s32 1, %s5
  %s8 = scalar_select 0, %s7, %s5
  $region1: #{bottleneck_forward.7} parent=0
    #allocation2 [shape = 'u8[32768]{0}', space=vmem, size = 0x8000, scoped, tag = 'output window, operand 0']
    #allocation3 [shape = 's32[2]{0}', space=sflag, size = 0x8, scoped, tag = 'scoped memory for bottleneck_forward.7']
    %9 = vsyncpa [#allocation3], 0
    %s10 = scalar_lea.sflag [#allocation3], 1
    %11 = vsyncpa %s10, 0
    loop: start=0, step=1, limit=6
    $region2: #{bottleneck_forward.7} parent=1 // loop_pre_header
      _
    $region3: #{bottleneck_forward.7} parent=1 // loop_header
      %s13 = sphi 0, %s17
      %p14 = scmp.ge.s32.totalorder %s13, 6
      %s23 = sphi 0, %s25
      %s26 = sphi 0, %s23
      %s27 = sphi 0, %s26
      %s43 = sphi 0, %s27
      %s47 = sphi 0, %s47
      %s49 = sphi 0, %s47
      %s50 = sphi 0, %s49
      %s64 = sphi 0, %s50
      %s68 = sphi 0, %s68
      %s70 = sphi 0, %s68
      %s71 = sphi 0, %s70
      %s85 = sphi 0, %s71
      %s91 = sphi 0, %s93
      %s94 = sphi 0, %s91
      %s95 = sphi 0, %s94
      %s111 = sphi 0, %s95
      %s117 = sphi 0, %s119
      %s120 = sphi 0, %s117
      %s121 = sphi 0, %s120
      %s137 = sphi 0, %s121
    $region4: #{bottleneck_forward.7} parent=1 // loop_header_branch
      %16 = sbr.rel (%p14) target = $region8
    $region5: #{bottleneck_forward.7} parent=1 // loop_body
      %s18 = ssub.s32 %s13, 1
      %s19 = ssub.s32 %s13, 2
      %s20 = sadd.s32 %s13, 1
      %s21 = ssub.s32 %s13, %s20
      %p22 = scmp.eq.s32.totalorder %s21, 0
      %s24 = sadd.s32 %s23, 1
      %s25 = scalar_select %p22, %s23, %s24
      %p28 = pneg %p22
      %p29 = scmp.eq.s32.totalorder %s13, 3
      %p30 = por %p28, %p29
      %p31 = scmp.ne.s32.totalorder %s23, %s26
      %p32 = scmp.eq.s32.totalorder %s13, 0
      %p33 = por %p31, %p32
      %p34 = scmp.ne.s32.totalorder %s23, %s26
      %p35 = scmp.eq.s32.totalorder %s18, 3
      %p36 = por %p34, %p35
      %p37 = scmp.ne.s32.totalorder %s26, %s27
      %p38 = scmp.eq.s32.totalorder %s18, 0
      %p39 = por %p37, %p38
      %p40 = scmp.ne.s32.totalorder %s26, %s27
      %p41 = scmp.eq.s32.totalorder %s19, 3
      %p42 = por %p40, %p41
      %p44 = scmp.ne.s32.totalorder %s27, %s43
      %p45 = scmp.eq.s32.totalorder %s19, 0
      %p46 = por %p44, %p45
      %s48 = sadd.s32 %s47, 1
      %p51 = scmp.eq.s32.totalorder %s13, 3
      %p52 = scmp.ne.s32.totalorder %s47, %s49
      %p53 = scmp.eq.s32.totalorder %s13, 0
      %p54 = por %p52, %p53
      %p55 = scmp.ne.s32.totalorder %s47, %s49
      %p56 = scmp.eq.s32.totalorder %s18, 3
      %p57 = por %p55, %p56
      %p58 = scmp.ne.s32.totalorder %s49, %s50
      %p59 = scmp.eq.s32.totalorder %s18, 0
      %p60 = por %p58, %p59
      %p61 = scmp.ne.s32.totalorder %s49, %s50
      %p62 = scmp.eq.s32.totalorder %s19, 3
      %p63 = por %p61, %p62
      %p65 = scmp.ne.s32.totalorder %s50, %s64
      %p66 = scmp.eq.s32.totalorder %s19, 0
      %p67 = por %p65, %p66
      %s69 = sadd.s32 %s68, 1
      %p72 = scmp.eq.s32.totalorder %s13, 3
      %p73 = scmp.ne.s32.totalorder %s68, %s70
      %p74 = scmp.eq.s32.totalorder %s13, 0
      %p75 = por %p73, %p74
      %p76 = scmp.ne.s32.totalorder %s68, %s70
      %p77 = scmp.eq.s32.totalorder %s18, 3
      %p78 = por %p76, %p77
      %p79 = scmp.ne.s32.totalorder %s70, %s71
      %p80 = scmp.eq.s32.totalorder %s18, 0
      %p81 = por %p79, %p80
      %p82 = scmp.ne.s32.totalorder %s70, %s71
      %p83 = scmp.eq.s32.totalorder %s19, 3
      %p84 = por %p82, %p83
      %p86 = scmp.ne.s32.totalorder %s71, %s85
      %p87 = scmp.eq.s32.totalorder %s19, 0
      %p88 = por %p86, %p87
      %s89 = ssub.s32 %s13, %s20
      %p90 = scmp.eq.s32.totalorder %s89, 0
      %s92 = sadd.s32 %s91, 1
      %s93 = scalar_select %p90, %s91, %s92
      %p96 = pneg %p90
      %p97 = scmp.eq.s32.totalorder %s13, 3
      %p98 = por %p96, %p97
      %p99 = scmp.ne.s32.totalorder %s91, %s94
      %p100 = scmp.eq.s32.totalorder %s13, 0
      %p101 = por %p99, %p100
      %p102 = scmp.ne.s32.totalorder %s91, %s94
      %p103 = scmp.eq.s32.totalorder %s18, 3
      %p104 = por %p102, %p103
      %p105 = scmp.ne.s32.totalorder %s94, %s95
      %p106 = scmp.eq.s32.totalorder %s18, 0
      %p107 = por %p105, %p106
      %p108 = scmp.ne.s32.totalorder %s94, %s95
      %p109 = scmp.eq.s32.totalorder %s19, 3
      %p110 = por %p108, %p109
      %p112 = scmp.ne.s32.totalorder %s95, %s111
      %p113 = scmp.eq.s32.totalorder %s19, 0
      %p114 = por %p112, %p113
      %s115 = ssub.s32 %s13, %s20
      %p116 = scmp.eq.s32.totalorder %s115, 0
      %s118 = sadd.s32 %s117, 1
      %s119 = scalar_select %p116, %s117, %s118
      %p122 = pneg %p116
      %p123 = scmp.eq.s32.totalorder %s13, 3
      %p124 = por %p122, %p123
      %p125 = scmp.ne.s32.totalorder %s117, %s120
      %p126 = scmp.eq.s32.totalorder %s13, 0
      %p127 = por %p125, %p126
      %p128 = scmp.ne.s32.totalorder %s117, %s120
      %p129 = scmp.eq.s32.totalorder %s18, 3
      %p130 = por %p128, %p129
      %p131 = scmp.ne.s32.totalorder %s120, %s121
      %p132 = scmp.eq.s32.totalorder %s18, 0
      %p133 = por %p131, %p132
      %p134 = scmp.ne.s32.totalorder %s120, %s121
      %p135 = scmp.eq.s32.totalorder %s19, 3
      %p136 = por %p134, %p135
      %p138 = scmp.ne.s32.totalorder %s121, %s137
      %p139 = scmp.eq.s32.totalorder %s19, 0
      %p140 = por %p138, %p139
      %p141 = scmp.le.s32.totalorder 1, %s13
      %p142 = scmp.lt.s32.totalorder %s13, 5
      %p143 = pnand %p141, %p142
      %p144 = pneg %p143
      // Predicated region
      $region9: #{bottleneck_forward.7} parent=5 // pred_check
        _
      $region10: #{bottleneck_forward.7} parent=5 // pred_check_branch
        %146 = sbr.rel (%p143) target = $region12
      $region11: #{bottleneck_forward.7} parent=5 // pred_region
        %s147 = ssub.s32 %s13, 1
        // Predicated region
        $region13: #{bottleneck_forward.7} parent=11 // pred_check
          %p148 = pneg %p60
        $region14: #{bottleneck_forward.7} parent=11 // pred_check_branch
          %150 = sbr.rel (%p148) target = $region16
        $region15: #{bottleneck_forward.7} parent=11 // pred_region
          _
        $region16: #{bottleneck_forward.7} parent=11 // pred_fallthru
          _
        // Predicated region
        $region17: #{bottleneck_forward.7} parent=11 // pred_check
          %p151 = pneg %p81
        $region18: #{bottleneck_forward.7} parent=11 // pred_check_branch
          %153 = sbr.rel (%p151) target = $region20
        $region19: #{bottleneck_forward.7} parent=11 // pred_region
          _
        $region20: #{bottleneck_forward.7} parent=11 // pred_fallthru
          _
      $region12: #{bottleneck_forward.7} parent=5 // pred_fallthru
        _
      %p154 = scmp.lt.s32.totalorder %s13, 4
      // Predicated region
      $region21: #{bottleneck_forward.7} parent=5 // pred_check
        %p155 = pneg %p154
      $region22: #{bottleneck_forward.7} parent=5 // pred_check_branch
        %157 = sbr.rel (%p155) target = $region24
      $region23: #{bottleneck_forward.7} parent=5 // pred_region
        // Predicated region
        $region25: #{bottleneck_forward.7} parent=23 // pred_check
          %p158 = pneg %p33
        $region26: #{bottleneck_forward.7} parent=23 // pred_check_branch
          %160 = sbr.rel (%p158) target = $region28
        $region27: #{bottleneck_forward.7} parent=23 // pred_region
          %s161 = smul.u32 4, %s13
          %p162 = scmp.lt.s32.totalorder %s161, 15
          %s163 = scalar_select %p162, %s161, 15
          %s164 = smul.addr %s163, 4
          %s165 = scalar_lea.vmem %s0, %s164
          %s166 = smul.u32 4, %s13
        $region28: #{bottleneck_forward.7} parent=23 // pred_fallthru
          _
        // Predicated region
        $region29: #{bottleneck_forward.7} parent=23 // pred_check
          %p167 = pneg %p101
        $region30: #{bottleneck_forward.7} parent=23 // pred_check_branch
          %169 = sbr.rel (%p167) target = $region32
        $region31: #{bottleneck_forward.7} parent=23 // pred_region
          %s170 = smul.u32 4, %s13
          %p171 = scmp.lt.s32.totalorder %s170, 15
          %s172 = scalar_select %p171, %s170, 15
          %s173 = smul.addr %s172, 8
          %s174 = scalar_lea.vmem %s3, %s173
          %s175 = smul.u32 4, %s13
        $region32: #{bottleneck_forward.7} parent=23 // pred_fallthru
          _
      $region24: #{bottleneck_forward.7} parent=5 // pred_fallthru
        _
      %p176 = scmp.le.s32.totalorder 1, %s13
      %p177 = scmp.lt.s32.totalorder %s13, 5
      %p178 = pnand %p176, %p177
      %p179 = pneg %p178
      // Predicated region
      $region33: #{bottleneck_forward.7} parent=5 // pred_check
        _
      $region34: #{bottleneck_forward.7} parent=5 // pred_check_branch
        %181 = sbr.rel (%p178) target = $region36
      $region35: #{bottleneck_forward.7} parent=5 // pred_region
        %s182 = ssub.s32 %s13, 1
        %s183 = smul.u32 4, %s18
        %p184 = scmp.lt.s32.totalorder %s183, 15
        %s185 = scalar_select %p184, %s183, 15
        %s186 = smul.addr %s185, 4
        %s187 = scalar_lea.vmem %s0, %s186
        %p188 = pneg %p39
        %p189 = pneg %p36
        %p190 = pneg %p60
        %p191 = pneg %p57
        %p192 = pneg %p81
        %p193 = pneg %p78
        %s194 = smul.u32 4, %s18
        %p195 = scmp.lt.s32.totalorder %s194, 15
        %s196 = scalar_select %p195, %s194, 15
        %s197 = smul.addr %s196, 8
        %s198 = scalar_lea.vmem %s3, %s197
        %p199 = pneg %p107
        %p200 = pneg %p104
        %p201 = pneg %p133
        %p202 = pneg %p130
        %s203 = sand.u32 %s120, 1
        %s204 = scalar_lea.sflag [#allocation3], %s203
        %s205 = sand.u32 %s120, 1
        %s206 = smul.addr %s205, 32
        %s207 = scalar_lea.vmem [#allocation2], %s206
        %s208 = smul.u32 4, %s18
        %p209 = scmp.lt.s32.totalorder %s208, 15
        %s210 = scalar_select %p209, %s208, 15
        %s211 = smul.addr %s210, 4
        %s212 = scalar_lea.vmem %s0, %s211
        %s213 = smul.u32 4, %s18
        %s214 = smul.u32 4, %s18
        %p215 = scmp.lt.s32.totalorder %s214, 15
        %s216 = scalar_select %p215, %s214, 15
        %s217 = smul.addr %s216, 8
        %s218 = scalar_lea.vmem %s3, %s217
        %s219 = smul.u32 4, %s18
        %s220 = smul.u32 4, %s18
        %v221 = vld [vmem:[%s212] sm:$0xf]
        %v222 = vld [vmem:[%s212 + $0x4] sm:$0xf]
        %v223 = vld [vmem:[%s212 + $0x8] sm:$0xf]
        %v224 = vld [vmem:[%s212 + $0xc] sm:$0xf]
        %v225 = vunpack.c.l.bf16 %v221
        %v226 = vunpack.c.l.bf16 %v222
        %v227 = vunpack.c.l.bf16 %v223
        %v228 = vunpack.c.l.bf16 %v224
        %v229 = vld [vmem:[%s1] sm:$0x1]
        %v231 = vlaneseq
        %v232 = vshrl.u32 %v231, 7
        %v233 = vsub.s32 0, %v232
        %v234 = vrot.slane %v229, %v233
        %v236 = vmul.f32 %v225, %v234
        %v237 = vmul.f32 %v226, %v234
        %v238 = vmul.f32 %v227, %v234
        %v239 = vmul.f32 %v228, %v234
        %v240 = vld [vmem:[%s2] sm:$0x1]
        %v242 = vlaneseq
        %v243 = vshrl.u32 %v242, 7
        %v244 = vsub.s32 0, %v243
        %v245 = vrot.slane %v240, %v244
        %v247 = vadd.f32 %v236, %v245
        %v248 = vadd.f32 %v237, %v245
        %v249 = vadd.f32 %v238, %v245
        %v250 = vadd.f32 %v239, %v245
        %v251 = vld [vmem:[%s218] sm:$0xff]
        %v252 = vld [vmem:[%s218 + $0x8] sm:$0xff]
        %v253 = vld [vmem:[%s218 + $0x10] sm:$0xff]
        %v254 = vld [vmem:[%s218 + $0x18] sm:$0xff]
        %v255 = vadd.f32 %v247, %v251
        %v256 = vadd.f32 %v248, %v252
        %v257 = vadd.f32 %v249, %v253
        %v258 = vadd.f32 %v250, %v254
        %v259 = vmax.f32 %v255, 0.0
        %v260 = vmax.f32 %v256, 0.0
        %v261 = vmax.f32 %v257, 0.0
        %v262 = vmax.f32 %v258, 0.0
        %263 = vst [vmem:[%s207] sm:$0xff] %v259
        %264 = vst [vmem:[%s207 + $0x8] sm:$0xff] %v260
        %265 = vst [vmem:[%s207 + $0x10] sm:$0xff] %v261
        %266 = vst [vmem:[%s207 + $0x18] sm:$0xff] %v262
        %s267 = sand.u32 %s120, 1
        %s268 = scalar_lea.sflag [#allocation3], %s267
        %s269 = sand.u32 %s120, 1
        %s270 = smul.addr %s269, 32
        %s271 = scalar_lea.vmem [#allocation2], %s270
        // Predicated region
        $region37: #{bottleneck_forward.7} parent=35 // pred_check
          %p272 = pneg %p130
        $region38: #{bottleneck_forward.7} parent=35 // pred_check_branch
          %274 = sbr.rel (%p272) target = $region40
        $region39: #{bottleneck_forward.7} parent=35 // pred_region
          %s275 = smul.u32 4, %s18
          %s277 = ssub.s32 512, 512
          %278 = vsyncadd %s268, %s277
          %s279 = smul.addr %s275, 128
          %s280 = scalar_lea.hbm %s4, %s279
          %s281 = sshll.u32 %s271, 4
          %s282 = int_to_ptr.vmem [resolvable:$true] %s281
          %287 = dma.vmem_to_hbm [thread:$0]  %s282, 512, %s280, %s268, 128, 128, 8
        $region40: #{bottleneck_forward.7} parent=35 // pred_fallthru
          _
      $region36: #{bottleneck_forward.7} parent=5 // pred_fallthru
        _
      %p288 = scmp.le.s32.totalorder 2, %s13
      // Predicated region
      $region41: #{bottleneck_forward.7} parent=5 // pred_check
        %p289 = pneg %p288
      $region42: #{bottleneck_forward.7} parent=5 // pred_check_branch
        %291 = sbr.rel (%p289) target = $region44
      $region43: #{bottleneck_forward.7} parent=5 // pred_region
        %s292 = ssub.s32 %s13, 2
        // Predicated region
        $region45: #{bottleneck_forward.7} parent=43 // pred_check
          %p293 = pneg %p136
        $region46: #{bottleneck_forward.7} parent=43 // pred_check_branch
          %295 = sbr.rel (%p293) target = $region48
        $region47: #{bottleneck_forward.7} parent=43 // pred_region
          %s296 = sand.u32 %s121, 1
          %s297 = scalar_lea.sflag [#allocation3], %s296
          %s298 = sand.u32 %s121, 1
          %s299 = smul.addr %s298, 32
          %s300 = scalar_lea.vmem [#allocation2], %s299
          %301 = dma.done %s297, 512
        $region48: #{bottleneck_forward.7} parent=43 // pred_fallthru
          _
      $region44: #{bottleneck_forward.7} parent=5 // pred_fallthru
        _
    $region6: #{bottleneck_forward.7} parent=1 // loop_footer
      %s17 = sadd.s32 1, %s13
    $region7: #{bottleneck_forward.7} parent=1 // loop_footer_branch
      %12 = sbr.rel target = $region3
    $region8: #{bottleneck_forward.7} parent=1 // loop_exit
      _
    %302 = vsyncpa [#allocation3], 1
    %s303 = scalar_lea.sflag [#allocation3], 1
    %304 = vsyncpa %s303, 1

// kernel: bottleneck_forward.5
$region0: #{bottleneck_forward.5}
  #allocation0 [shape = 'u32[]', space=smem, size = 0x4, offset = 0x4, fixed_abs, tag = 'smem constant byte address 0x4 - core index']
  #allocation1 [shape = 'u32[144,128]{1,0:T(1,128)}', space=vmem, size = 0x12000, scoped, tag = 'internal scratch']
  #allocation2 [shape = 'bf16[10,10,128]{2,1,0:T(8,128)(2,1)}', space=vmem, size = 0xa000, scoped, tag = 'scratch operand']
  %s0 = inlined_call_operand.vmem [shape: bf16[2,64,128], index: 0, kind: input, shape index: {}]
  %s1 = inlined_call_operand.vmem [shape: f32[1,128], index: 1, kind: input, shape index: {}]
  %s2 = inlined_call_operand.vmem [shape: f32[1,128], index: 2, kind: input, shape index: {}]
  %s3 = inlined_call_operand.vmem [shape: bf16[9,128,128], index: 3, kind: input, shape index: {}]
  %s4 = inlined_call_operand.vmem [shape: bf16[2,64,128], index: 4, kind: output, shape index: {0}]
  %s5 = inlined_call_operand.vmem [shape: f32[2,2,128], index: 5, kind: output, shape index: {1}]
  %6 = xla_tuple %s4, %s5
  %s7 = sld [smem:[#allocation0]]
  $region57: #{bottleneck_forward.5} parent=0
    _
  %s9 = ssub.s32 1, %s7
  %s10 = scalar_select 0, %s9, %s7
  loop: start=0, step=1, limit=4
  $region2: #{bottleneck_forward.5} parent=0 // loop_pre_header
    _
  $region3: #{bottleneck_forward.5} parent=0 // loop_header
    %s12 = sphi 0, %s16
    %p13 = scmp.ge.s32.totalorder %s12, 4
    %s22 = sphi 0, %s24
    %s25 = sphi 0, %s22
    %s26 = sphi 0, %s25
    %s42 = sphi 0, %s26
    %s46 = sphi 0, %s46
    %s48 = sphi 0, %s46
    %s49 = sphi 0, %s48
    %s63 = sphi 0, %s49
    %s67 = sphi 0, %s67
    %s69 = sphi 0, %s67
    %s70 = sphi 0, %s69
    %s84 = sphi 0, %s70
    %s88 = sphi 0, %s88
    %s90 = sphi 0, %s88
    %s91 = sphi 0, %s90
    %s105 = sphi 0, %s91
    %s111 = sphi 0, %s113
    %s114 = sphi 0, %s111
    %s115 = sphi 0, %s114
    %s131 = sphi 0, %s115
    %s137 = sphi 0, %s139
    %s140 = sphi 0, %s137
    %s141 = sphi 0, %s140
    %s157 = sphi 0, %s141
  $region4: #{bottleneck_forward.5} parent=0 // loop_header_branch
    %15 = sbr.rel (%p13) target = $region8
  $region5: #{bottleneck_forward.5} parent=0 // loop_body
    %s17 = ssub.s32 %s12, 1
    %s18 = ssub.s32 %s12, 2
    %s19 = sadd.s32 %s12, 1
    %s20 = ssub.s32 %s12, %s19
    %p21 = scmp.eq.s32.totalorder %s20, 0
    %s23 = sadd.s32 %s22, 1
    %s24 = scalar_select %p21, %s22, %s23
    %p27 = pneg %p21
    %p28 = scmp.eq.s32.totalorder %s12, 1
    %p29 = por %p27, %p28
    %p30 = scmp.ne.s32.totalorder %s22, %s25
    %p31 = scmp.eq.s32.totalorder %s12, 0
    %p32 = por %p30, %p31
    %p33 = scmp.ne.s32.totalorder %s22, %s25
    %p34 = scmp.eq.s32.totalorder %s17, 1
    %p35 = por %p33, %p34
    %p36 = scmp.ne.s32.totalorder %s25, %s26
    %p37 = scmp.eq.s32.totalorder %s17, 0
    %p38 = por %p36, %p37
    %p39 = scmp.ne.s32.totalorder %s25, %s26
    %p40 = scmp.eq.s32.totalorder %s18, 1
    %p41 = por %p39, %p40
    %p43 = scmp.ne.s32.totalorder %s26, %s42
    %p44 = scmp.eq.s32.totalorder %s18, 0
    %p45 = por %p43, %p44
    %s47 = sadd.s32 %s46, 1
    %p50 = scmp.eq.s32.totalorder %s12, 1
    %p51 = scmp.ne.s32.totalorder %s46, %s48
    %p52 = scmp.eq.s32.totalorder %s12, 0
    %p53 = por %p51, %p52
    %p54 = scmp.ne.s32.totalorder %s46, %s48
    %p55 = scmp.eq.s32.totalorder %s17, 1
    %p56 = por %p54, %p55
    %p57 = scmp.ne.s32.totalorder %s48, %s49
    %p58 = scmp.eq.s32.totalorder %s17, 0
    %p59 = por %p57, %p58
    %p60 = scmp.ne.s32.totalorder %s48, %s49
    %p61 = scmp.eq.s32.totalorder %s18, 1
    %p62 = por %p60, %p61
    %p64 = scmp.ne.s32.totalorder %s49, %s63
    %p65 = scmp.eq.s32.totalorder %s18, 0
    %p66 = por %p64, %p65
    %s68 = sadd.s32 %s67, 1
    %p71 = scmp.eq.s32.totalorder %s12, 1
    %p72 = scmp.ne.s32.totalorder %s67, %s69
    %p73 = scmp.eq.s32.totalorder %s12, 0
    %p74 = por %p72, %p73
    %p75 = scmp.ne.s32.totalorder %s67, %s69
    %p76 = scmp.eq.s32.totalorder %s17, 1
    %p77 = por %p75, %p76
    %p78 = scmp.ne.s32.totalorder %s69, %s70
    %p79 = scmp.eq.s32.totalorder %s17, 0
    %p80 = por %p78, %p79
    %p81 = scmp.ne.s32.totalorder %s69, %s70
    %p82 = scmp.eq.s32.totalorder %s18, 1
    %p83 = por %p81, %p82
    %p85 = scmp.ne.s32.totalorder %s70, %s84
    %p86 = scmp.eq.s32.totalorder %s18, 0
    %p87 = por %p85, %p86
    %s89 = sadd.s32 %s88, 1
    %p92 = scmp.eq.s32.totalorder %s12, 1
    %p93 = scmp.ne.s32.totalorder %s88, %s90
    %p94 = scmp.eq.s32.totalorder %s12, 0
    %p95 = por %p93, %p94
    %p96 = scmp.ne.s32.totalorder %s88, %s90
    %p97 = scmp.eq.s32.totalorder %s17, 1
    %p98 = por %p96, %p97
    %p99 = scmp.ne.s32.totalorder %s90, %s91
    %p100 = scmp.eq.s32.totalorder %s17, 0
    %p101 = por %p99, %p100
    %p102 = scmp.ne.s32.totalorder %s90, %s91
    %p103 = scmp.eq.s32.totalorder %s18, 1
    %p104 = por %p102, %p103
    %p106 = scmp.ne.s32.totalorder %s91, %s105
    %p107 = scmp.eq.s32.totalorder %s18, 0
    %p108 = por %p106, %p107
    %s109 = ssub.s32 %s12, %s19
    %p110 = scmp.eq.s32.totalorder %s109, 0
    %s112 = sadd.s32 %s111, 1
    %s113 = scalar_select %p110, %s111, %s112
    %p116 = pneg %p110
    %p117 = scmp.eq.s32.totalorder %s12, 1
    %p118 = por %p116, %p117
    %p119 = scmp.ne.s32.totalorder %s111, %s114
    %p120 = scmp.eq.s32.totalorder %s12, 0
    %p121 = por %p119, %p120
    %p122 = scmp.ne.s32.totalorder %s111, %s114
    %p123 = scmp.eq.s32.totalorder %s17, 1
    %p124 = por %p122, %p123
    %p125 = scmp.ne.s32.totalorder %s114, %s115
    %p126 = scmp.eq.s32.totalorder %s17, 0
    %p127 = por %p125, %p126
    %p128 = scmp.ne.s32.totalorder %s114, %s115
    %p129 = scmp.eq.s32.totalorder %s18, 1
    %p130 = por %p128, %p129
    %p132 = scmp.ne.s32.totalorder %s115, %s131
    %p133 = scmp.eq.s32.totalorder %s18, 0
    %p134 = por %p132, %p133
    %s135 = ssub.s32 %s12, %s19
    %p136 = scmp.eq.s32.totalorder %s135, 0
    %s138 = sadd.s32 %s137, 1
    %s139 = scalar_select %p136, %s137, %s138
    %p142 = pneg %p136
    %p143 = scmp.eq.s32.totalorder %s12, 1
    %p144 = por %p142, %p143
    %p145 = scmp.ne.s32.totalorder %s137, %s140
    %p146 = scmp.eq.s32.totalorder %s12, 0
    %p147 = por %p145, %p146
    %p148 = scmp.ne.s32.totalorder %s137, %s140
    %p149 = scmp.eq.s32.totalorder %s17, 1
    %p150 = por %p148, %p149
    %p151 = scmp.ne.s32.totalorder %s140, %s141
    %p152 = scmp.eq.s32.totalorder %s17, 0
    %p153 = por %p151, %p152
    %p154 = scmp.ne.s32.totalorder %s140, %s141
    %p155 = scmp.eq.s32.totalorder %s18, 1
    %p156 = por %p154, %p155
    %p158 = scmp.ne.s32.totalorder %s141, %s157
    %p159 = scmp.eq.s32.totalorder %s18, 0
    %p160 = por %p158, %p159
    %p161 = scmp.le.s32.totalorder 1, %s12
    %p162 = scmp.lt.s32.totalorder %s12, 3
    %p163 = pnand %p161, %p162
    %p164 = pneg %p163
    // Predicated region
    $region9: #{bottleneck_forward.5} parent=5 // pred_check
      _
    $region10: #{bottleneck_forward.5} parent=5 // pred_check_branch
      %166 = sbr.rel (%p163) target = $region12
    $region11: #{bottleneck_forward.5} parent=5 // pred_region
      %s167 = ssub.s32 %s12, 1
      // Predicated region
      $region13: #{bottleneck_forward.5} parent=11 // pred_check
        %p168 = pneg %p59
      $region14: #{bottleneck_forward.5} parent=11 // pred_check_branch
        %170 = sbr.rel (%p168) target = $region16
      $region15: #{bottleneck_forward.5} parent=11 // pred_region
        _
      $region16: #{bottleneck_forward.5} parent=11 // pred_fallthru
        _
      // Predicated region
      $region17: #{bottleneck_forward.5} parent=11 // pred_check
        %p171 = pneg %p80
      $region18: #{bottleneck_forward.5} parent=11 // pred_check_branch
        %173 = sbr.rel (%p171) target = $region20
      $region19: #{bottleneck_forward.5} parent=11 // pred_region
        _
      $region20: #{bottleneck_forward.5} parent=11 // pred_fallthru
        _
      // Predicated region
      $region21: #{bottleneck_forward.5} parent=11 // pred_check
        %p174 = pneg %p101
      $region22: #{bottleneck_forward.5} parent=11 // pred_check_branch
        %176 = sbr.rel (%p174) target = $region24
      $region23: #{bottleneck_forward.5} parent=11 // pred_region
        _
      $region24: #{bottleneck_forward.5} parent=11 // pred_fallthru
        _
    $region12: #{bottleneck_forward.5} parent=5 // pred_fallthru
      _
    %p177 = scmp.lt.s32.totalorder %s12, 2
    // Predicated region
    $region25: #{bottleneck_forward.5} parent=5 // pred_check
      %p178 = pneg %p177
    $region26: #{bottleneck_forward.5} parent=5 // pred_check_branch
      %180 = sbr.rel (%p178) target = $region28
    $region27: #{bottleneck_forward.5} parent=5 // pred_region
      // Predicated region
      $region29: #{bottleneck_forward.5} parent=27 // pred_check
        %p181 = pneg %p32
      $region30: #{bottleneck_forward.5} parent=27 // pred_check_branch
        %183 = sbr.rel (%p181) target = $region32
      $region31: #{bottleneck_forward.5} parent=27 // pred_region
        %p184 = scmp.lt.s32.totalorder %s12, 1
        %s185 = scalar_select %p184, %s12, 1
        %s186 = smul.addr %s185, 8
        %s187 = smul.addr %s186, 4
        %s188 = scalar_lea.vmem %s0, %s187
      $region32: #{bottleneck_forward.5} parent=27 // pred_fallthru
        _
    $region28: #{bottleneck_forward.5} parent=5 // pred_fallthru
      _
    %p189 = scmp.le.s32.totalorder 1, %s12
    %p190 = scmp.lt.s32.totalorder %s12, 3
    %p191 = pnand %p189, %p190
    %p192 = pneg %p191
    // Predicated region
    $region33: #{bottleneck_forward.5} parent=5 // pred_check
      _
    $region34: #{bottleneck_forward.5} parent=5 // pred_check_branch
      %194 = sbr.rel (%p191) target = $region36
    $region35: #{bottleneck_forward.5} parent=5 // pred_region
      %s195 = ssub.s32 %s12, 1
      %p196 = scmp.lt.s32.totalorder %s17, 1
      %s197 = scalar_select %p196, %s17, 1
      %s198 = smul.addr %s197, 8
      %s199 = smul.addr %s198, 4
      %s200 = scalar_lea.vmem %s0, %s199
      %p201 = pneg %p38
      %p202 = pneg %p35
      %p203 = pneg %p59
      %p204 = pneg %p56
      %p205 = pneg %p80
      %p206 = pneg %p77
      %p207 = pneg %p101
      %p208 = pneg %p98
      %p209 = pneg %p127
      %p210 = pneg %p124
      %p211 = scmp.lt.s32.totalorder %s17, 1
      %s212 = scalar_select %p211, %s17, 1
      %s213 = smul.addr %s212, 8
      %s214 = smul.addr %s213, 4
      %s215 = scalar_lea.vmem %s4, %s214
      %p216 = pneg %p153
      %p217 = pneg %p150
      %p218 = scmp.lt.s32.totalorder %s17, 1
      %s219 = scalar_select %p218, %s17, 1
      %s220 = smul.addr %s219, 2
      %s221 = scalar_lea.vmem %s5, %s220
      %p222 = scmp.lt.s32.totalorder %s17, 1
      %s223 = scalar_select %p222, %s17, 1
      %s224 = smul.addr %s223, 8
      %s225 = smul.addr %s224, 4
      %s226 = scalar_lea.vmem %s0, %s225
      %p227 = scmp.lt.s32.totalorder %s17, 1
      %s228 = scalar_select %p227, %s17, 1
      %s229 = smul.addr %s228, 8
      %s230 = smul.addr %s229, 4
      %s231 = scalar_lea.vmem %s4, %s230
      %p232 = scmp.lt.s32.totalorder %s17, 1
      %s233 = scalar_select %p232, %s17, 1
      %s234 = smul.addr %s233, 2
      %s235 = scalar_lea.vmem %s5, %s234
      %v237 = vld [vmem:[%s226] sm:$0xf]
      %v238 = vld [vmem:[%s226 + $0x4] sm:$0xf]
      %v239 = vld [vmem:[%s226 + $0x8] sm:$0xf]
      %v240 = vld [vmem:[%s226 + $0xc] sm:$0xf]
      %v241 = vld [vmem:[%s226 + $0x10] sm:$0xf]
      %v242 = vld [vmem:[%s226 + $0x14] sm:$0xf]
      %v243 = vld [vmem:[%s226 + $0x18] sm:$0xf]
      %v244 = vld [vmem:[%s226 + $0x1c] sm:$0xf]
      %v245 = vunpack.c.l.bf16 %v237
      %v246 = vunpack.c.l.bf16 %v238
      %v247 = vunpack.c.l.bf16 %v239
      %v248 = vunpack.c.l.bf16 %v240
      %v249 = vunpack.c.l.bf16 %v241
      %v250 = vunpack.c.l.bf16 %v242
      %v251 = vunpack.c.l.bf16 %v243
      %v252 = vunpack.c.l.bf16 %v244
      %v253 = vld [vmem:[%s1] sm:$0x1]
      %v255 = vlaneseq
      %v256 = vshrl.u32 %v255, 7
      %v257 = vsub.s32 0, %v256
      %v258 = vrot.slane %v253, %v257
      %v260 = vmul.f32 %v245, %v258
      %v261 = vmul.f32 %v246, %v258
      %v262 = vmul.f32 %v247, %v258
      %v263 = vmul.f32 %v248, %v258
      %v264 = vmul.f32 %v249, %v258
      %v265 = vmul.f32 %v250, %v258
      %v266 = vmul.f32 %v251, %v258
      %v267 = vmul.f32 %v252, %v258
      %v268 = vld [vmem:[%s2] sm:$0x1]
      %v270 = vlaneseq
      %v271 = vshrl.u32 %v270, 7
      %v272 = vsub.s32 0, %v271
      %v273 = vrot.slane %v268, %v272
      %v275 = vadd.f32 %v260, %v273
      %v276 = vadd.f32 %v261, %v273
      %v277 = vadd.f32 %v262, %v273
      %v278 = vadd.f32 %v263, %v273
      %v279 = vadd.f32 %v264, %v273
      %v280 = vadd.f32 %v265, %v273
      %v281 = vadd.f32 %v266, %v273
      %v282 = vadd.f32 %v267, %v273
      %v283 = vmax.f32 %v275, 0.0
      %v284 = vmax.f32 %v276, 0.0
      %v285 = vmax.f32 %v277, 0.0
      %v286 = vmax.f32 %v278, 0.0
      %v287 = vmax.f32 %v279, 0.0
      %v288 = vmax.f32 %v280, 0.0
      %v289 = vmax.f32 %v281, 0.0
      %v290 = vmax.f32 %v282, 0.0
      %291 = vst [vmem:[#allocation2] sm:$0xf] 0
      %292 = vst [vmem:[#allocation2 + $0x4] sm:$0x1] 0
      %293 = vst [vmem:[#allocation2 + $0x8] sm:$0xf] 0
      %294 = vst [vmem:[#allocation2 + $0xc] sm:$0x1] 0
      %295 = vst [vmem:[#allocation2 + $0x10] sm:$0xf] 0
      %296 = vst [vmem:[#allocation2 + $0x14] sm:$0x1] 0
      %297 = vst [vmem:[#allocation2 + $0x18] sm:$0xf] 0
      %298 = vst [vmem:[#allocation2 + $0x1c] sm:$0x1] 0
      %299 = vst [vmem:[#allocation2 + $0x20] sm:$0xf] 0
      %300 = vst [vmem:[#allocation2 + $0x24] sm:$0x1] 0
      %301 = vst [vmem:[#allocation2 + $0x28] sm:$0xf] 0
      %302 = vst [vmem:[#allocation2 + $0x2c] sm:$0x1] 0
      %303 = vst [vmem:[#allocation2 + $0x30] sm:$0xf] 0
      %304 = vst [vmem:[#allocation2 + $0x34] sm:$0x1] 0
      %305 = vst [vmem:[#allocation2 + $0x38] sm:$0xf] 0
      %306 = vst [vmem:[#allocation2 + $0x3c] sm:$0x1] 0
      %307 = vst [vmem:[#allocation2 + $0x40] sm:$0xf] 0
      %308 = vst [vmem:[#allocation2 + $0x44] sm:$0x1] 0
      %309 = vst [vmem:[#allocation2 + $0x48] sm:$0xf] 0
      %310 = vst [vmem:[#allocation2 + $0x4c] sm:$0x1] 0
      %v311 = vpack.c.bf16 %v283, %v283
      %v312 = vpack.c.bf16 %v284, %v284
      %v313 = vpack.c.bf16 %v285, %v285
      %v314 = vpack.c.bf16 %v286, %v286
      %v315 = vpack.c.bf16 %v287, %v287
      %v316 = vpack.c.bf16 %v288, %v288
      %v317 = vpack.c.bf16 %v289, %v289
      %v318 = vpack.c.bf16 %v290, %v290
      %v327 = vunpack.c.l.b16 %v311
      %v328 = vunpack.c.l.b16 %v312
      %v329 = vunpack.c.l.b16 %v313
      %v330 = vunpack.c.l.b16 %v314
      %v331 = vunpack.c.l.b16 %v315
      %v332 = vunpack.c.l.b16 %v316
      %v333 = vunpack.c.l.b16 %v317
      %v334 = vunpack.c.l.b16 %v318
      %v335 = vpack.c.b16 %v327, %v327
      %v336 = vpack.c.b16 %v328, %v328
      %v337 = vpack.c.b16 %v329, %v329
      %v338 = vpack.c.b16 %v330, %v330
      %v339 = vpack.c.b16 %v331, %v331
      %v340 = vpack.c.b16 %v332, %v332
      %v341 = vpack.c.b16 %v333, %v333
      %v342 = vpack.c.b16 %v334, %v334
      %v344 = vshrl.u32 %v335, 16
      %v346 = vrot.slane %v344, 7
      %v347 = vshll.u32 %v335, 16
      %v349 = vor.u32 %v346, %v347
      %v350 = vrot.slane %v346, 4
      %v352 = vshrl.u32 %v336, 16
      %v354 = vrot.slane %v352, 7
      %v355 = vshll.u32 %v336, 16
      %v357 = vor.u32 %v354, %v355
      %v358 = vrot.slane %v354, 4
      %v360 = vshrl.u32 %v337, 16
      %v362 = vrot.slane %v360, 7
      %v363 = vshll.u32 %v337, 16
      %v365 = vor.u32 %v362, %v363
      %v366 = vrot.slane %v362, 4
      %v368 = vshrl.u32 %v338, 16
      %v370 = vrot.slane %v368, 7
      %v371 = vshll.u32 %v338, 16
      %v373 = vor.u32 %v370, %v371
      %v374 = vrot.slane %v370, 4
      %v376 = vshrl.u32 %v339, 16
      %v378 = vrot.slane %v376, 7
      %v379 = vshll.u32 %v339, 16
      %v381 = vor.u32 %v378, %v379
      %v382 = vrot.slane %v378, 4
      %v384 = vshrl.u32 %v340, 16
      %v386 = vrot.slane %v384, 7
      %v387 = vshll.u32 %v340, 16
      %v389 = vor.u32 %v386, %v387
      %v390 = vrot.slane %v386, 4
      %v392 = vshrl.u32 %v341, 16
      %v394 = vrot.slane %v392, 7
      %v395 = vshll.u32 %v341, 16
      %v397 = vor.u32 %v394, %v395
      %v398 = vrot.slane %v394, 4
      %v400 = vshrl.u32 %v342, 16
      %v402 = vrot.slane %v400, 7
      %v403 = vshll.u32 %v342, 16
      %v405 = vor.u32 %v402, %v403
      %v406 = vrot.slane %v402, 4
      %s423 = scalar_lea.vmem [#allocation2], 8
      %vm424 = vcmask 1043456
      %vm425 = vsmask.f32 7938
      %vm426 = vmand %vm424, %vm425
      %v427 = vld [vmem:[%s423] sm:$0xf]
      %v428 = vsel %vm426, %v349, %v427
      %429 = vst [vmem:[%s423] sm:$0xf] %v428
      %vm430 = vcmask 1040384
      %vm431 = vsmask.f32 256
      %vm432 = vmand %vm430, %vm431
      %v433 = vld [vmem:[%s423 + $0x4] sm:$0x1]
      %v434 = vsel %vm432, %v350, %v433
      %435 = vst [vmem:[%s423 + $0x4] sm:$0x1] %v434
      %v436 = vld [vmem:[%s423 + $0x8] sm:$0xf]
      %v437 = vsel %vm426, %v357, %v436
      %438 = vst [vmem:[%s423 + $0x8] sm:$0xf] %v437
      %v439 = vld [vmem:[%s423 + $0xc] sm:$0x1]
      %v440 = vsel %vm432, %v358, %v439
      %441 = vst [vmem:[%s423 + $0xc] sm:$0x1] %v440
      %v442 = vld [vmem:[%s423 + $0x10] sm:$0xf]
      %v443 = vsel %vm426, %v365, %v442
      %444 = vst [vmem:[%s423 + $0x10] sm:$0xf] %v443
      %v445 = vld [vmem:[%s423 + $0x14] sm:$0x1]
      %v446 = vsel %vm432, %v366, %v445
      %447 = vst [vmem:[%s423 + $0x14] sm:$0x1] %v446
      %v448 = vld [vmem:[%s423 + $0x18] sm:$0xf]
      %v449 = vsel %vm426, %v373, %v448
      %450 = vst [vmem:[%s423 + $0x18] sm:$0xf] %v449
      %v451 = vld [vmem:[%s423 + $0x1c] sm:$0x1]
      %v452 = vsel %vm432, %v374, %v451
      %453 = vst [vmem:[%s423 + $0x1c] sm:$0x1] %v452
      %v454 = vld [vmem:[%s423 + $0x20] sm:$0xf]
      %v455 = vsel %vm426, %v381, %v454
      %456 = vst [vmem:[%s423 + $0x20] sm:$0xf] %v455
      %v457 = vld [vmem:[%s423 + $0x24] sm:$0x1]
      %v458 = vsel %vm432, %v382, %v457
      %459 = vst [vmem:[%s423 + $0x24] sm:$0x1] %v458
      %v460 = vld [vmem:[%s423 + $0x28] sm:$0xf]
      %v461 = vsel %vm426, %v389, %v460
      %462 = vst [vmem:[%s423 + $0x28] sm:$0xf] %v461
      %v463 = vld [vmem:[%s423 + $0x2c] sm:$0x1]
      %v464 = vsel %vm432, %v390, %v463
      %465 = vst [vmem:[%s423 + $0x2c] sm:$0x1] %v464
      %v466 = vld [vmem:[%s423 + $0x30] sm:$0xf]
      %v467 = vsel %vm426, %v397, %v466
      %468 = vst [vmem:[%s423 + $0x30] sm:$0xf] %v467
      %v469 = vld [vmem:[%s423 + $0x34] sm:$0x1]
      %v470 = vsel %vm432, %v398, %v469
      %471 = vst [vmem:[%s423 + $0x34] sm:$0x1] %v470
      %v472 = vld [vmem:[%s423 + $0x38] sm:$0xf]
      %v473 = vsel %vm426, %v405, %v472
      %474 = vst [vmem:[%s423 + $0x38] sm:$0xf] %v473
      %v475 = vld [vmem:[%s423 + $0x3c] sm:$0x1]
      %v476 = vsel %vm432, %v406, %v475
      %477 = vst [vmem:[%s423 + $0x3c] sm:$0x1] %v476
      %v478 = vld [vmem:[#allocation2] sm:$0xf]
      %v479 = vld [vmem:[#allocation2 + $0x8] sm:$0xf]
      %v480 = vld [vmem:[#allocation2 + $0x10] sm:$0xf]
      %v481 = vld [vmem:[#allocation2 + $0x18] sm:$0xf]
      %v482 = vld [vmem:[#allocation2 + $0x20] sm:$0xf]
      %v483 = vld [vmem:[#allocation2 + $0x28] sm:$0xf]
      %v484 = vld [vmem:[#allocation2 + $0x30] sm:$0xf]
      %v485 = vld [vmem:[#allocation2 + $0x38] sm:$0xf]
      %v486 = vld [vmem:[%s3] sm:$0xf]
      %v487 = vld [vmem:[%s3 + $0x4] sm:$0xf]
      %v488 = vld [vmem:[%s3 + $0x8] sm:$0xf]
      %v489 = vld [vmem:[%s3 + $0xc] sm:$0xf]
      %v490 = vld [vmem:[%s3 + $0x10] sm:$0xf]
      %v491 = vld [vmem:[%s3 + $0x14] sm:$0xf]
      %v492 = vld [vmem:[%s3 + $0x18] sm:$0xf]
      %v493 = vld [vmem:[%s3 + $0x1c] sm:$0xf]
      %v494 = vld [vmem:[%s3 + $0x20] sm:$0xf]
      %v495 = vld [vmem:[%s3 + $0x24] sm:$0xf]
      %v496 = vld [vmem:[%s3 + $0x28] sm:$0xf]
      %v497 = vld [vmem:[%s3 + $0x2c] sm:$0xf]
      %v498 = vld [vmem:[%s3 + $0x30] sm:$0xf]
      %v499 = vld [vmem:[%s3 + $0x34] sm:$0xf]
      %v500 = vld [vmem:[%s3 + $0x38] sm:$0xf]
      %v501 = vld [vmem:[%s3 + $0x3c] sm:$0xf]
      %v502 = vld [vmem:[#allocation2 + $0x4] sm:$0x1]
      %v503 = vld [vmem:[#allocation2 + $0xc] sm:$0x1]
      %v504 = vld [vmem:[#allocation2 + $0x14] sm:$0x1]
      %v505 = vld [vmem:[#allocation2 + $0x1c] sm:$0x1]
      %v506 = vld [vmem:[#allocation2 + $0x24] sm:$0x1]
      %v507 = vld [vmem:[#allocation2 + $0x2c] sm:$0x1]
      %v508 = vld [vmem:[#allocation2 + $0x34] sm:$0x1]
      %v509 = vld [vmem:[#allocation2 + $0x3c] sm:$0x1]
      %vm510 = vsmask.f32 3328
      %vm511 = vsmask.f32 7440
      %vm512 = vmor %vm510, %vm511
      %v514 = vshrl.u32 %v478, 16
      %v516 = vrot.slane %v514, 4
      %v517 = vshll.u32 %v478, 16
      %v519 = vrot.slane %v517, 5
      %v520 = vor.u32 %v516, %v519
      %v521 = vrot.slane %v520, 4
      %v523 = vshll.u32 %v502, 16
      %v525 = vrot.slane %v523, 5
      %v526 = vsel %vm512, %v521, %v525
      %v528 = vshrl.u32 %v479, 16
      %v530 = vrot.slane %v528, 4
      %v531 = vshll.u32 %v479, 16
      %v533 = vrot.slane %v531, 5
      %v534 = vor.u32 %v530, %v533
      %v535 = vrot.slane %v534, 4
      %v537 = vshll.u32 %v503, 16
      %v539 = vrot.slane %v537, 5
      %v540 = vsel %vm512, %v535, %v539
      %v542 = vshrl.u32 %v480, 16
      %v544 = vrot.slane %v542, 4
      %v545 = vshll.u32 %v480, 16
      %v547 = vrot.slane %v545, 5
      %v548 = vor.u32 %v544, %v547
      %v549 = vrot.slane %v548, 4
      %v551 = vshll.u32 %v504, 16
      %v553 = vrot.slane %v551, 5
      %v554 = vsel %vm512, %v549, %v553
      %v556 = vshrl.u32 %v481, 16
      %v558 = vrot.slane %v556, 4
      %v559 = vshll.u32 %v481, 16
      %v561 = vrot.slane %v559, 5
      %v562 = vor.u32 %v558, %v561
      %v563 = vrot.slane %v562, 4
      %v565 = vshll.u32 %v505, 16
      %v567 = vrot.slane %v565, 5
      %v568 = vsel %vm512, %v563, %v567
      %v570 = vshrl.u32 %v482, 16
      %v572 = vrot.slane %v570, 4
      %v573 = vshll.u32 %v482, 16
      %v575 = vrot.slane %v573, 5
      %v576 = vor.u32 %v572, %v575
      %v577 = vrot.slane %v576, 4
      %v579 = vshll.u32 %v506, 16
      %v581 = vrot.slane %v579, 5
      %v582 = vsel %vm512, %v577, %v581
      %v584 = vshrl.u32 %v483, 16
      %v586 = vrot.slane %v584, 4
      %v587 = vshll.u32 %v483, 16
      %v589 = vrot.slane %v587, 5
      %v590 = vor.u32 %v586, %v589
      %v591 = vrot.slane %v590, 4
      %v593 = vshll.u32 %v507, 16
      %v595 = vrot.slane %v593, 5
      %v596 = vsel %vm512, %v591, %v595
      %v598 = vshrl.u32 %v484, 16
      %v600 = vrot.slane %v598, 4
      %v601 = vshll.u32 %v484, 16
      %v603 = vrot.slane %v601, 5
      %v604 = vor.u32 %v600, %v603
      %v605 = vrot.slane %v604, 4
      %v607 = vshll.u32 %v508, 16
      %v609 = vrot.slane %v607, 5
      %v610 = vsel %vm512, %v605, %v609
      %v612 = vshrl.u32 %v485, 16
      %v614 = vrot.slane %v612, 4
      %v615 = vshll.u32 %v485, 16
      %v617 = vrot.slane %v615, 5
      %v618 = vor.u32 %v614, %v617
      %v619 = vrot.slane %v618, 4
      %v621 = vshll.u32 %v509, 16
      %v623 = vrot.slane %v621, 5
      %v624 = vsel %vm512, %v619, %v623
      %s625 = scalar_lea.vmem %s3, 64
      %v626 = vld [vmem:[%s625] sm:$0xf]
      %v627 = vld [vmem:[%s625 + $0x4] sm:$0xf]
      %v628 = vld [vmem:[%s625 + $0x8] sm:$0xf]
      %v629 = vld [vmem:[%s625 + $0xc] sm:$0xf]
      %v630 = vld [vmem:[%s625 + $0x10] sm:$0xf]
      %v631 = vld [vmem:[%s625 + $0x14] sm:$0xf]
      %v632 = vld [vmem:[%s625 + $0x18] sm:$0xf]
      %v633 = vld [vmem:[%s625 + $0x1c] sm:$0xf]
      %v634 = vld [vmem:[%s625 + $0x20] sm:$0xf]
      %v635 = vld [vmem:[%s625 + $0x24] sm:$0xf]
      %v636 = vld [vmem:[%s625 + $0x28] sm:$0xf]
      %v637 = vld [vmem:[%s625 + $0x2c] sm:$0xf]
      %v638 = vld [vmem:[%s625 + $0x30] sm:$0xf]
      %v639 = vld [vmem:[%s625 + $0x34] sm:$0xf]
      %v640 = vld [vmem:[%s625 + $0x38] sm:$0xf]
      %v641 = vld [vmem:[%s625 + $0x3c] sm:$0xf]
      %v642 = vunpack.c.l.b16 %v526
      %v643 = vunpack.c.l.b16 %v540
      %v644 = vunpack.c.l.b16 %v554
      %v645 = vunpack.c.l.b16 %v568
      %v646 = vunpack.c.l.b16 %v582
      %v647 = vunpack.c.l.b16 %v596
      %v648 = vunpack.c.l.b16 %v610
      %v649 = vunpack.c.l.b16 %v624
      %v650 = vpack.c.b16 %v643, %v642
      %v651 = vpack.c.b16 %v645, %v644
      %v652 = vpack.c.b16 %v647, %v646
      %v653 = vpack.c.b16 %v649, %v648
      %v674 = vunpack.c.l.b16 %v626
      %v675 = vunpack.c.l.b16 %v627
      %v676 = vunpack.c.l.b16 %v628
      %v677 = vunpack.c.l.b16 %v629
      %v678 = vunpack.c.l.b16 %v630
      %v679 = vunpack.c.l.b16 %v631
      %v680 = vunpack.c.l.b16 %v632
      %v681 = vunpack.c.l.b16 %v633
      %v682 = vunpack.c.l.b16 %v634
      %v683 = vunpack.c.l.b16 %v635
      %v684 = vunpack.c.l.b16 %v636
      %v685 = vunpack.c.l.b16 %v637
      %v686 = vunpack.c.l.b16 %v638
      %v687 = vunpack.c.l.b16 %v639
      %v688 = vunpack.c.l.b16 %v640
      %v689 = vunpack.c.l.b16 %v641
      %v690 = vpack.c.b16 %v675, %v674
      %v691 = vpack.c.b16 %v677, %v676
      %v692 = vpack.c.b16 %v679, %v678
      %v693 = vpack.c.b16 %v681, %v680
      %v694 = vpack.c.b16 %v683, %v682
      %v695 = vpack.c.b16 %v685, %v684
      %v696 = vpack.c.b16 %v687, %v686
      %v697 = vpack.c.b16 %v689, %v688
      %706 = vmatprep.subr.bf16.mxu0 0
      %707 = vmatpush1.bf16.msra.mxu0 %v690
      %708 = vmatprep.subr.bf16.mxu0 0
      %709 = vmatpush1.bf16.msra.mxu0 %v691
      %710 = vmatprep.subr.bf16.mxu0 0
      %711 = vmatpush1.bf16.msra.mxu0 %v692
      %712 = vmatprep.subr.bf16.mxu0 0
      %713 = vmatpush1.bf16.msra.mxu0 %v693
      %714 = vmatprep.subr.bf16.mxu0 0
      %715 = vmatpush1.bf16.msra.mxu0 %v694
      %716 = vmatprep.subr.bf16.mxu0 0
      %717 = vmatpush1.bf16.msra.mxu0 %v695
      %718 = vmatprep.subr.bf16.mxu0 0
      %719 = vmatpush1.bf16.msra.mxu0 %v696
      %720 = vmatprep.subr.bf16.mxu0 0
      %721 = vmatpush1.bf16.msra.mxu0 %v697
      %722 = vmatprep.subr.bf16.mxu0 0
      %723 = vmatpush1.bf16.msra.mxu0 0
      %724 = vmatprep.subr.bf16.mxu0 0
      %725 = vmatpush1.bf16.msra.mxu0 0
      %726 = vmatprep.subr.bf16.mxu0 0
      %727 = vmatpush1.bf16.msra.mxu0 0
      %728 = vmatprep.subr.bf16.mxu0 0
      %729 = vmatpush1.bf16.msra.mxu0 0
      %730 = vmatprep.subr.bf16.mxu0 0
      %731 = vmatpush1.bf16.msra.mxu0 0
      %732 = vmatprep.subr.bf16.mxu0 0
      %733 = vmatpush1.bf16.msra.mxu0 0
      %734 = vmatprep.subr.bf16.mxu0 0
      %735 = vmatpush1.bf16.msra.mxu0 0
      %736 = vmatprep.subr.bf16.mxu0 0
      %737 = vmatpush1.bf16.msra.mxu0 0
      %738 = vmatprep.mubr.bf16.mxu0 0
      %739 = vmatmul.mubr.bf16.gmra.mrb[0].mxu0 %v650
      %v740 = vpop.f32.mrb[0].mxu0
      %v741 = vadd.f32 0.0, %v740
      %v742 = vpop.f32.mrb[0].mxu0
      %v743 = vpop.f32.mrb[0].mxu0
      %v744 = vadd.f32 0.0, %v743
      %v745 = vpop.f32.mrb[0].mxu0
      %746 = vmatprep.mubr.bf16.mxu0 0
      %747 = vmatmul.mubr.bf16.gmra.mrb[0].mxu0 %v651
      %v748 = vpop.f32.mrb[0].mxu0
      %v749 = vadd.f32 0.0, %v748
      %v750 = vpop.f32.mrb[0].mxu0
      %v751 = vpop.f32.mrb[0].mxu0
      %v752 = vadd.f32 0.0, %v751
      %v753 = vpop.f32.mrb[0].mxu0
      %754 = vmatprep.mubr.bf16.mxu0 0
      %755 = vmatmul.mubr.bf16.gmra.mrb[0].mxu0 %v652
      %v756 = vpop.f32.mrb[0].mxu0
      %v757 = vadd.f32 0.0, %v756
      %v758 = vpop.f32.mrb[0].mxu0
      %v759 = vpop.f32.mrb[0].mxu0
      %v760 = vadd.f32 0.0, %v759
      %v761 = vpop.f32.mrb[0].mxu0
      %762 = vmatprep.mubr.bf16.mxu0 0
      %763 = vmatmul.mubr.bf16.gmra.mrb[0].mxu0 %v653
      %v764 = vpop.f32.mrb[0].mxu0
      %v765 = vadd.f32 0.0, %v764
      %v766 = vpop.f32.mrb[0].mxu0
      %v767 = vpop.f32.mrb[0].mxu0
      %v768 = vadd.f32 0.0, %v767
      %v769 = vpop.f32.mrb[0].mxu0
      %770 = vdwg.mxu0
      %v779 = vunpack.c.l.b16 %v478
      %v780 = vunpack.c.l.b16 %v479
      %v781 = vunpack.c.l.b16 %v480
      %v782 = vunpack.c.l.b16 %v481
      %v783 = vunpack.c.l.b16 %v482
      %v784 = vunpack.c.l.b16 %v483
      %v785 = vunpack.c.l.b16 %v484
      %v786 = vunpack.c.l.b16 %v485
      %v787 = vpack.c.b16 %v780, %v779
      %v788 = vpack.c.b16 %v782, %v781
      %v789 = vpack.c.b16 %v784, %v783
      %v790 = vpack.c.b16 %v786, %v785
      %v811 = vunpack.c.l.b16 %v486
      %v812 = vunpack.c.l.b16 %v487
      %v813 = vunpack.c.l.b16 %v488
      %v814 = vunpack.c.l.b16 %v489
      %v815 = vunpack.c.l.b16 %v490
      %v816 = vunpack.c.l.b16 %v491
      %v817 = vunpack.c.l.b16 %v492
      %v818 = vunpack.c.l.b16 %v493
      %v819 = vunpack.c.l.b16 %v494
      %v820 = vunpack.c.l.b16 %v495
      %v821 = vunpack.c.l.b16 %v496
      %v822 = vunpack.c.l.b16 %v497
      %v823 = vunpack.c.l.b16 %v498
      %v824 = vunpack.c.l.b16 %v499
      %v825 = vunpack.c.l.b16 %v500
      %v826 = vunpack.c.l.b16 %v501
      %v827 = vpack.c.b16 %v812, %v811
      %v828 = vpack.c.b16 %v814, %v813
      %v829 = vpack.c.b16 %v816, %v815
      %v830 = vpack.c.b16 %v818, %v817
      %v831 = vpack.c.b16 %v820, %v819
      %v832 = vpack.c.b16 %v822, %v821
      %v833 = vpack.c.b16 %v824, %v823
      %v834 = vpack.c.b16 %v826, %v825
      %843 = vmatprep.subr.bf16.mxu0 0
      %844 = vmatpush1.bf16.msra.mxu0 %v827
      %845 = vmatprep.subr.bf16.mxu0 0
      %846 = vmatpush1.bf16.msra.mxu0 %v828
      %847 = vmatprep.subr.bf16.mxu0 0
      %848 = vmatpush1.bf16.msra.mxu0 %v829
      %849 = vmatprep.subr.bf16.mxu0 0
      %850 = vmatpush1.bf16.msra.mxu0 %v830
      %851 = vmatprep.subr.bf16.mxu0 0
      %852 = vmatpush1.bf16.msra.mxu0 %v831
      %853 = vmatprep.subr.bf16.mxu0 0
      %854 = vmatpush1.bf16.msra.mxu0 %v832
      %855 = vmatprep.subr.bf16.mxu0 0
      %856 = vmatpush1.bf16.msra.mxu0 %v833
      %857 = vmatprep.subr.bf16.mxu0 0
      %858 = vmatpush1.bf16.msra.mxu0 %v834
      %859 = vmatprep.subr.bf16.mxu0 0
      %860 = vmatpush1.bf16.msra.mxu0 0
      %861 = vmatprep.subr.bf16.mxu0 0
      %862 = vmatpush1.bf16.msra.mxu0 0
      %863 = vmatprep.subr.bf16.mxu0 0
      %864 = vmatpush1.bf16.msra.mxu0 0
      %865 = vmatprep.subr.bf16.mxu0 0
      %866 = vmatpush1.bf16.msra.mxu0 0
      %867 = vmatprep.subr.bf16.mxu0 0
      %868 = vmatpush1.bf16.msra.mxu0 0
      %869 = vmatprep.subr.bf16.mxu0 0
      %870 = vmatpush1.bf16.msra.mxu0 0
      %871 = vmatprep.subr.bf16.mxu0 0
      %872 = vmatpush1.bf16.msra.mxu0 0
      %873 = vmatprep.subr.bf16.mxu0 0
      %874 = vmatpush1.bf16.msra.mxu0 0
      %875 = vmatprep.mubr.bf16.mxu0 0
      %876 = vmatmul.mubr.bf16.gmra.mrb[0].mxu0 %v787
      %v877 = vpop.f32.mrb[0].mxu0
      %v878 = vadd.f32 %v741, %v877
      %v879 = vpop.f32.mrb[0].mxu0
      %v880 = vpop.f32.mrb[0].mxu0
      %v881 = vadd.f32 %v744, %v880
      %v882 = vpop.f32.mrb[0].mxu0
      %883 = vmatprep.mubr.bf16.mxu0 0
      %884 = vmatmul.mubr.bf16.gmra.mrb[0].mxu0 %v788
      %v885 = vpop.f32.mrb[0].mxu0
      %v886 = vadd.f32 %v749, %v885
      %v887 = vpop.f32.mrb[0].mxu0
      %v888 = vpop.f32.mrb[0].mxu0
      %v889 = vadd.f32 %v752, %v888
      %v890 = vpop.f32.mrb[0].mxu0
      %891 = vmatprep.mubr.bf16.mxu0 0
      %892 = vmatmul.mubr.bf16.gmra.mrb[0].mxu0 %v789
      %v893 = vpop.f32.mrb[0].mxu0
      %v894 = vadd.f32 %v757, %v893
      %v895 = vpop.f32.mrb[0].mxu0
      %v896 = vpop.f32.mrb[0].mxu0
      %v897 = vadd.f32 %v760, %v896
      %v898 = vpop.f32.mrb[0].mxu0
      %899 = vmatprep.mubr.bf16.mxu0 0
      %900 = vmatmul.mubr.bf16.gmra.mrb[0].mxu0 %v790
      %v901 = vpop.f32.mrb[0].mxu0
      %v902 = vadd.f32 %v765, %v901
      %v903 = vpop.f32.mrb[0].mxu0
      %v904 = vpop.f32.mrb[0].mxu0
      %v905 = vadd.f32 %v768, %v904
      %v906 = vpop.f32.mrb[0].mxu0
      %907 = vdwg.mxu0
      %v908 = vld [vmem:[#allocation2] sm:$0xe]
      %v909 = vld [vmem:[#allocation2 + $0x8] sm:$0xe]
      %v910 = vld [vmem:[#allocation2 + $0x10] sm:$0xe]
      %v911 = vld [vmem:[#allocation2 + $0x18] sm:$0xe]
      %v912 = vld [vmem:[#allocation2 + $0x20] sm:$0xe]
      %v913 = vld [vmem:[#allocation2 + $0x28] sm:$0xe]
      %v914 = vld [vmem:[#allocation2 + $0x30] sm:$0xe]
      %v915 = vld [vmem:[#allocation2 + $0x38] sm:$0xe]
      %vm932 = vcmask 1042432
      %vm933 = vcmask 1046532
      %vm934 = vmor %vm932, %vm933
      %v935 = vrot.slane %v908, 5
      %v936 = vrot.slane %v935, 4
      %v937 = vrot.slane %v502, 5
      %v938 = vsel %vm934, %v936, %v937
      %v939 = vrot.slane %v909, 5
      %v940 = vrot.slane %v939, 4
      %v941 = vrot.slane %v503, 5
      %v942 = vsel %vm934, %v940, %v941
      %v943 = vrot.slane %v910, 5
      %v944 = vrot.slane %v943, 4
      %v945 = vrot.slane %v504, 5
      %v946 = vsel %vm934, %v944, %v945
      %v947 = vrot.slane %v911, 5
      %v948 = vrot.slane %v947, 4
      %v949 = vrot.slane %v505, 5
      %v950 = vsel %vm934, %v948, %v949
      %v951 = vrot.slane %v912, 5
      %v952 = vrot.slane %v951, 4
      %v953 = vrot.slane %v506, 5
      %v954 = vsel %vm934, %v952, %v953
      %v955 = vrot.slane %v913, 5
      %v956 = vrot.slane %v955, 4
      %v957 = vrot.slane %v507, 5
      %v958 = vsel %vm934, %v956, %v957
      %v959 = vrot.slane %v914, 5
      %v960 = vrot.slane %v959, 4
      %v961 = vrot.slane %v508, 5
      %v962 = vsel %vm934, %v960, %v961
      %v963 = vrot.slane %v915, 5
      %v964 = vrot.slane %v963, 4
      %v965 = vrot.slane %v509, 5
      %v966 = vsel %vm934, %v964, %v965
      %s967 = scalar_lea.vmem %s3, 128
      %v968 = vld [vmem:[%s967] sm:$0xf]
      %v969 = vld [vmem:[%s967 + $0x4] sm:$0xf]
      %v970 = vld [vmem:[%s967 + $0x8] sm:$0xf]
      %v971 = vld [vmem:[%s967 + $0xc] sm:$0xf]
      %v972 = vld [vmem:[%s967 + $0x10] sm:$0xf]
      %v973 = vld [vmem:[%s967 + $0x14] sm:$0xf]
      %v974 = vld [vmem:[%s967 + $0x18] sm:$0xf]
      %v975 = vld [vmem:[%s967 + $0x1c] sm:$0xf]
      %v976 = vld [vmem:[%s967 + $0x20] sm:$0xf]
      %v977 = vld [vmem:[%s967 + $0x24] sm:$0xf]
      %v978 = vld [vmem:[%s967 + $0x28] sm:$0xf]
      %v979 = vld [vmem:[%s967 + $0x2c] sm:$0xf]
      %v980 = vld [vmem:[%s967 + $0x30] sm:$0xf]
      %v981 = vld [vmem:[%s967 + $0x34] sm:$0xf]
      %v982 = vld [vmem:[%s967 + $0x38] sm:$0xf]
      %v983 = vld [vmem:[%s967 + $0x3c] sm:$0xf]
      %v984 = vunpack.c.l.b16 %v938
      %v985 = vunpack.c.l.b16 %v942
      %v986 = vunpack.c.l.b16 %v946
      %v987 = vunpack.c.l.b16 %v950
      %v988 = vunpack.c.l.b16 %v954
      %v989 = vunpack.c.l.b16 %v958
      %v990 = vunpack.c.l.b16 %v962
      %v991 = vunpack.c.l.b16 %v966
      %v992 = vpack.c.b16 %v985, %v984
      %v993 = vpack.c.b16 %v987, %v986
      %v994 = vpack.c.b16 %v989, %v988
      %v995 = vpack.c.b16 %v991, %v990
      %v1016 = vunpack.c.l.b16 %v968
      %v1017 = vunpack.c.l.b16 %v969
      %v1018 = vunpack.c.l.b16 %v970
      %v1019 = vunpack.c.l.b16 %v971
      %v1020 = vunpack.c.l.b16 %v972
      %v1021 = vunpack.c.l.b16 %v973
      %v1022 = vunpack.c.l.b16 %v974
      %v1023 = vunpack.c.l.b16 %v975
      %v1024 = vunpack.c.l.b16 %v976
      %v1025 = vunpack.c.l.b16 %v977
      %v1026 = vunpack.c.l.b16 %v978
      %v1027 = vunpack.c.l.b16 %v979
      %v1028 = vunpack.c.l.b16 %v980
      %v1029 = vunpack.c.l.b16 %v981
      %v1030 = vunpack.c.l.b16 %v982
      %v1031 = vunpack.c.l.b16 %v983
      %v1032 = vpack.c.b16 %v1017, %v1016
      %v1033 = vpack.c.b16 %v1019, %v1018
      %v1034 = vpack.c.b16 %v1021, %v1020
      %v1035 = vpack.c.b16 %v1023, %v1022
      %v1036 = vpack.c.b16 %v1025, %v1024
      %v1037 = vpack.c.b16 %v1027, %v1026
      %v1038 = vpack.c.b16 %v1029, %v1028
      %v1039 = vpack.c.b16 %v1031, %v1030
      %1048 = vmatprep.subr.bf16.mxu0 0
      %1049 = vmatpush1.bf16.msra.mxu0 %v1032
      %1050 = vmatprep.subr.bf16.mxu0 0
      %1051 = vmatpush1.bf16.msra.mxu0 %v1033
      %1052 = vmatprep.subr.bf16.mxu0 0
      %1053 = vmatpush1.bf16.msra.mxu0 %v1034
      %1054 = vmatprep.subr.bf16.mxu0 0
      %1055 = vmatpush1.bf16.msra.mxu0 %v1035
      %1056 = vmatprep.subr.bf16.mxu0 0
      %1057 = vmatpush1.bf16.msra.mxu0 %v1036
      %1058 = vmatprep.subr.bf16.mxu0 0
      %1059 = vmatpush1.bf16.msra.mxu0 %v1037
      %1060 = vmatprep.subr.bf16.mxu0 0
      %1061 = vmatpush1.bf16.msra.mxu0 %v1038
      %1062 = vmatprep.subr.bf16.mxu0 0
      %1063 = vmatpush1.bf16.msra.mxu0 %v1039
      %1064 = vmatprep.subr.bf16.mxu0 0
      %1065 = vmatpush1.bf16.msra.mxu0 0
      %1066 = vmatprep.subr.bf16.mxu0 0
      %1067 = vmatpush1.bf16.msra.mxu0 0
      %1068 = vmatprep.subr.bf16.mxu0 0
      %1069 = vmatpush1.bf16.msra.mxu0 0
      %1070 = vmatprep.subr.bf16.mxu0 0
      %1071 = vmatpush1.bf16.msra.mxu0 0
      %1072 = vmatprep.subr.bf16.mxu0 0
      %1073 = vmatpush1.bf16.msra.mxu0 0
      %1074 = vmatprep.subr.bf16.mxu0 0
      %1075 = vmatpush1.bf16.msra.mxu0 0
      %1076 = vmatprep.subr.bf16.mxu0 0
      %1077 = vmatpush1.bf16.msra.mxu0 0
      %1078 = vmatprep.subr.bf16.mxu0 0
      %1079 = vmatpush1.bf16.msra.mxu0 0
      %1080 = vmatprep.mubr.bf16.mxu0 0
      %1081 = vmatmul.mubr.bf16.gmra.mrb[0].mxu0 %v992
      %v1082 = vpop.f32.mrb[0].mxu0
      %v1083 = vadd.f32 0.0, %v1082
      %v1084 = vpop.f32.mrb[0].mxu0
      %v1085 = vpop.f32.mrb[0].mxu0
      %v1086 = vadd.f32 0.0, %v1085
      %v1087 = vpop.f32.mrb[0].mxu0
      %1088 = vmatprep.mubr.bf16.mxu0 0
      %1089 = vmatmul.mubr.bf16.gmra.mrb[0].mxu0 %v993
      %v1090 = vpop.f32.mrb[0].mxu0
      %v1091 = vadd.f32 0.0, %v1090
      %v1092 = vpop.f32.mrb[0].mxu0
      %v1093 = vpop.f32.mrb[0].mxu0
      %v1094 = vadd.f32 0.0, %v1093
      %v1095 = vpop.f32.mrb[0].mxu0
      %1096 = vmatprep.mubr.bf16.mxu0 0
      %1097 = vmatmul.mubr.bf16.gmra.mrb[0].mxu0 %v994
      %v1098 = vpop.f32.mrb[0].mxu0
      %v1099 = vadd.f32 0.0, %v1098
      %v1100 = vpop.f32.mrb[0].mxu0
      %v1101 = vpop.f32.mrb[0].mxu0
      %v1102 = vadd.f32 0.0, %v1101
      %v1103 = vpop.f32.mrb[0].mxu0
      %1104 = vmatprep.mubr.bf16.mxu0 0
      %1105 = vmatmul.mubr.bf16.gmra.mrb[0].mxu0 %v995
      %v1106 = vpop.f32.mrb[0].mxu0
      %v1107 = vadd.f32 0.0, %v1106
      %v1108 = vpop.f32.mrb[0].mxu0
      %v1109 = vpop.f32.mrb[0].mxu0
      %v1110 = vadd.f32 0.0, %v1109
      %v1111 = vpop.f32.mrb[0].mxu0
      %1112 = vdwg.mxu0
      %v1113 = vadd.f32 %v878, %v1083
      %v1114 = vadd.f32 %v881, %v1086
      %v1115 = vadd.f32 %v886, %v1091
      %v1116 = vadd.f32 %v889, %v1094
      %v1117 = vadd.f32 %v894, %v1099
      %v1118 = vadd.f32 %v897, %v1102
      %v1119 = vadd.f32 %v902, %v1107
      %v1120 = vadd.f32 %v905, %v1110
      %v1121 = vld [vmem:[%s423] sm:$0xf]
      %v1122 = vld [vmem:[%s423 + $0x8] sm:$0xf]
      %v1123 = vld [vmem:[%s423 + $0x10] sm:$0xf]
      %v1124 = vld [vmem:[%s423 + $0x18] sm:$0xf]
      %v1125 = vld [vmem:[%s423 + $0x20] sm:$0xf]
      %v1126 = vld [vmem:[%s423 + $0x28] sm:$0xf]
      %v1127 = vld [vmem:[%s423 + $0x30] sm:$0xf]
      %v1128 = vld [vmem:[%s423 + $0x38] sm:$0xf]
      %s1129 = scalar_lea.vmem %s3, 192
      %v1130 = vld [vmem:[%s1129] sm:$0xf]
      %v1131 = vld [vmem:[%s1129 + $0x4] sm:$0xf]
      %v1132 = vld [vmem:[%s1129 + $0x8] sm:$0xf]
      %v1133 = vld [vmem:[%s1129 + $0xc] sm:$0xf]
      %v1134 = vld [vmem:[%s1129 + $0x10] sm:$0xf]
      %v1135 = vld [vmem:[%s1129 + $0x14] sm:$0xf]
      %v1136 = vld [vmem:[%s1129 + $0x18] sm:$0xf]
      %v1137 = vld [vmem:[%s1129 + $0x1c] sm:$0xf]
      %v1138 = vld [vmem:[%s1129 + $0x20] sm:$0xf]
      %v1139 = vld [vmem:[%s1129 + $0x24] sm:$0xf]
      %v1140 = vld [vmem:[%s1129 + $0x28] sm:$0xf]
      %v1141 = vld [vmem:[%s1129 + $0x2c] sm:$0xf]
      %v1142 = vld [vmem:[%s1129 + $0x30] sm:$0xf]
      %v1143 = vld [vmem:[%s1129 + $0x34] sm:$0xf]
      %v1144 = vld [vmem:[%s1129 + $0x38] sm:$0xf]
      %v1145 = vld [vmem:[%s1129 + $0x3c] sm:$0xf]
      %v1154 = vunpack.c.l.b16 %v1121
      %v1155 = vunpack.c.l.b16 %v1122
      %v1156 = vunpack.c.l.b16 %v1123
      %v1157 = vunpack.c.l.b16 %v1124
      %v1158 = vunpack.c.l.b16 %v1125
      %v1159 = vunpack.c.l.b16 %v1126
      %v1160 = vunpack.c.l.b16 %v1127
      %v1161 = vunpack.c.l.b16 %v1128
      %v1162 = vpack.c.b16 %v1155, %v1154
      %v1163 = vpack.c.b16 %v1157, %v1156
      %v1164 = vpack.c.b16 %v1159, %v1158
      %v1165 = vpack.c.b16 %v1161, %v1160
      %v1186 = vunpack.c.l.b16 %v1130
      %v1187 = vunpack.c.l.b16 %v1131
      %v1188 = vunpack.c.l.b16 %v1132
      %v1189 = vunpack.c.l.b16 %v1133
      %v1190 = vunpack.c.l.b16 %v1134
      %v1191 = vunpack.c.l.b16 %v1135
      %v1192 = vunpack.c.l.b16 %v1136
      %v1193 = vunpack.c.l.b16 %v1137
      %v1194 = vunpack.c.l.b16 %v1138
      %v1195 = vunpack.c.l.b16 %v1139
      %v1196 = vunpack.c.l.b16 %v1140
      %v1197 = vunpack.c.l.b16 %v1141
      %v1198 = vunpack.c.l.b16 %v1142
      %v1199 = vunpack.c.l.b16 %v1143
      %v1200 = vunpack.c.l.b16 %v1144
      %v1201 = vunpack.c.l.b16 %v1145
      %v1202 = vpack.c.b16 %v1187, %v1186
      %v1203 = vpack.c.b16 %v1189, %v1188
      %v1204 = vpack.c.b16 %v1191, %v1190
      %v1205 = vpack.c.b16 %v1193, %v1192
      %v1206 = vpack.c.b16 %v1195, %v1194
      %v1207 = vpack.c.b16 %v1197, %v1196
      %v1208 = vpack.c.b16 %v1199, %v1198
      %v1209 = vpack.c.b16 %v1201, %v1200
      %1218 = vmatprep.subr.bf16.mxu0 0
      %1219 = vmatpush1.bf16.msra.mxu0 %v1202
      %1220 = vmatprep.subr.bf16.mxu0 0
      %1221 = vmatpush1.bf16.msra.mxu0 %v1203
      %1222 = vmatprep.subr.bf16.mxu0 0
      %1223 = vmatpush1.bf16.msra.mxu0 %v1204
      %1224 = vmatprep.subr.bf16.mxu0 0
      %1225 = vmatpush1.bf16.msra.mxu0 %v1205
      %1226 = vmatprep.subr.bf16.mxu0 0
      %1227 = vmatpush1.bf16.msra.mxu0 %v1206
      %1228 = vmatprep.subr.bf16.mxu0 0
      %1229 = vmatpush1.bf16.msra.mxu0 %v1207
      %1230 = vmatprep.subr.bf16.mxu0 0
      %1231 = vmatpush1.bf16.msra.mxu0 %v1208
      %1232 = vmatprep.subr.bf16.mxu0 0
      %1233 = vmatpush1.bf16.msra.mxu0 %v1209
      %1234 = vmatprep.subr.bf16.mxu0 0
      %1235 = vmatpush1.bf16.msra.mxu0 0
      %1236 = vmatprep.subr.bf16.mxu0 0
      %1237 = vmatpush1.bf16.msra.mxu0 0
      %1238 = vmatprep.subr.bf16.mxu0 0
      %1239 = vmatpush1.bf16.msra.mxu0 0
      %1240 = vmatprep.subr.bf16.mxu0 0
      %1241 = vmatpush1.bf16.msra.mxu0 0
      %1242 = vmatprep.subr.bf16.mxu0 0
      %1243 = vmatpush1.bf16.msra.mxu0 0
      %1244 = vmatprep.subr.bf16.mxu0 0
      %1245 = vmatpush1.bf16.msra.mxu0 0
      %1246 = vmatprep.subr.bf16.mxu0 0
      %1247 = vmatpush1.bf16.msra.mxu0 0
      %1248 = vmatprep.subr.bf16.mxu0 0
      %1249 = vmatpush1.bf16.msra.mxu0 0
      %1250 = vmatprep.mubr.bf16.mxu0 0
      %1251 = vmatmul.mubr.bf16.gmra.mrb[0].mxu0 %v1162
      %v1252 = vpop.f32.mrb[0].mxu0
      %v1253 = vadd.f32 0.0, %v1252
      %v1254 = vpop.f32.mrb[0].mxu0
      %v1255 = vpop.f32.mrb[0].mxu0
      %v1256 = vadd.f32 0.0, %v1255
      %v1257 = vpop.f32.mrb[0].mxu0
      %1258 = vmatprep.mubr.bf16.mxu0 0
      %1259 = vmatmul.mubr.bf16.gmra.mrb[0].mxu0 %v1163
      %v1260 = vpop.f32.mrb[0].mxu0
      %v1261 = vadd.f32 0.0, %v1260
      %v1262 = vpop.f32.mrb[0].mxu0
      %v1263 = vpop.f32.mrb[0].mxu0
      %v1264 = vadd.f32 0.0, %v1263
      %v1265 = vpop.f32.mrb[0].mxu0
      %1266 = vmatprep.mubr.bf16.mxu0 0
      %1267 = vmatmul.mubr.bf16.gmra.mrb[0].mxu0 %v1164
      %v1268 = vpop.f32.mrb[0].mxu0
      %v1269 = vadd.f32 0.0, %v1268
      %v1270 = vpop.f32.mrb[0].mxu0
      %v1271 = vpop.f32.mrb[0].mxu0
      %v1272 = vadd.f32 0.0, %v1271
      %v1273 = vpop.f32.mrb[0].mxu0
      %1274 = vmatprep.mubr.bf16.mxu0 0
      %1275 = vmatmul.mubr.bf16.gmra.mrb[0].mxu0 %v1165
      %v1276 = vpop.f32.mrb[0].mxu0
      %v1277 = vadd.f32 0.0, %v1276
      %v1278 = vpop.f32.mrb[0].mxu0
      %v1279 = vpop.f32.mrb[0].mxu0
      %v1280 = vadd.f32 0.0, %v1279
      %v1281 = vpop.f32.mrb[0].mxu0
      %1282 = vdwg.mxu0
      %v1283 = vadd.f32 %v1113, %v1253
      %v1284 = vadd.f32 %v1114, %v1256
      %v1285 = vadd.f32 %v1115, %v1261
      %v1286 = vadd.f32 %v1116, %v1264
      %v1287 = vadd.f32 %v1117, %v1269
      %v1288 = vadd.f32 %v1118, %v1272
      %v1289 = vadd.f32 %v1119, %v1277
      %v1290 = vadd.f32 %v1120, %v1280
      %v1291 = vld [vmem:[%s423] sm:$0xf]
      %v1292 = vld [vmem:[%s423 + $0x4] sm:$0x1]
      %v1293 = vld [vmem:[%s423 + $0x8] sm:$0xf]
      %v1294 = vld [vmem:[%s423 + $0xc] sm:$0x1]
      %v1295 = vld [vmem:[%s423 + $0x10] sm:$0xf]
      %v1296 = vld [vmem:[%s423 + $0x14] sm:$0x1]
      %v1297 = vld [vmem:[%s423 + $0x18] sm:$0xf]
      %v1298 = vld [vmem:[%s423 + $0x1c] sm:$0x1]
      %v1299 = vld [vmem:[%s423 + $0x20] sm:$0xf]
      %v1300 = vld [vmem:[%s423 + $0x24] sm:$0x1]
      %v1301 = vld [vmem:[%s423 + $0x28] sm:$0xf]
      %v1302 = vld [vmem:[%s423 + $0x2c] sm:$0x1]
      %v1303 = vld [vmem:[%s423 + $0x30] sm:$0xf]
      %v1304 = vld [vmem:[%s423 + $0x34] sm:$0x1]
      %v1305 = vld [vmem:[%s423 + $0x38] sm:$0xf]
      %v1306 = vld [vmem:[%s423 + $0x3c] sm:$0x1]
      %v1308 = vshrl.u32 %v1291, 16
      %v1310 = vrot.slane %v1308, 4
      %v1311 = vshll.u32 %v1291, 16
      %v1313 = vrot.slane %v1311, 5
      %v1314 = vor.u32 %v1310, %v1313
      %v1315 = vrot.slane %v1314, 4
      %v1317 = vshll.u32 %v1292, 16
      %v1319 = vrot.slane %v1317, 5
      %v1320 = vsel %vm512, %v1315, %v1319
      %v1322 = vshrl.u32 %v1293, 16
      %v1324 = vrot.slane %v1322, 4
      %v1325 = vshll.u32 %v1293, 16
      %v1327 = vrot.slane %v1325, 5
      %v1328 = vor.u32 %v1324, %v1327
      %v1329 = vrot.slane %v1328, 4
      %v1331 = vshll.u32 %v1294, 16
      %v1333 = vrot.slane %v1331, 5
      %v1334 = vsel %vm512, %v1329, %v1333
      %v1336 = vshrl.u32 %v1295, 16
      %v1338 = vrot.slane %v1336, 4
      %v1339 = vshll.u32 %v1295, 16
      %v1341 = vrot.slane %v1339, 5
      %v1342 = vor.u32 %v1338, %v1341
      %v1343 = vrot.slane %v1342, 4
      %v1345 = vshll.u32 %v1296, 16
      %v1347 = vrot.slane %v1345, 5
      %v1348 = vsel %vm512, %v1343, %v1347
      %v1350 = vshrl.u32 %v1297, 16
      %v1352 = vrot.slane %v1350, 4
      %v1353 = vshll.u32 %v1297, 16
      %v1355 = vrot.slane %v1353, 5
      %v1356 = vor.u32 %v1352, %v1355
      %v1357 = vrot.slane %v1356, 4
      %v1359 = vshll.u32 %v1298, 16
      %v1361 = vrot.slane %v1359, 5
      %v1362 = vsel %vm512, %v1357, %v1361
      %v1364 = vshrl.u32 %v1299, 16
      %v1366 = vrot.slane %v1364, 4
      %v1367 = vshll.u32 %v1299, 16
      %v1369 = vrot.slane %v1367, 5
      %v1370 = vor.u32 %v1366, %v1369
      %v1371 = vrot.slane %v1370, 4
      %v1373 = vshll.u32 %v1300, 16
      %v1375 = vrot.slane %v1373, 5
      %v1376 = vsel %vm512, %v1371, %v1375
      %v1378 = vshrl.u32 %v1301, 16
      %v1380 = vrot.slane %v1378, 4
      %v1381 = vshll.u32 %v1301, 16
      %v1383 = vrot.slane %v1381, 5
      %v1384 = vor.u32 %v1380, %v1383
      %v1385 = vrot.slane %v1384, 4
      %v1387 = vshll.u32 %v1302, 16
      %v1389 = vrot.slane %v1387, 5
      %v1390 = vsel %vm512, %v1385, %v1389
      %v1392 = vshrl.u32 %v1303, 16
      %v1394 = vrot.slane %v1392, 4
      %v1395 = vshll.u32 %v1303, 16
      %v1397 = vrot.slane %v1395, 5
      %v1398 = vor.u32 %v1394, %v1397
      %v1399 = vrot.slane %v1398, 4
      %v1401 = vshll.u32 %v1304, 16
      %v1403 = vrot.slane %v1401, 5
      %v1404 = vsel %vm512, %v1399, %v1403
      %v1406 = vshrl.u32 %v1305, 16
      %v1408 = vrot.slane %v1406, 4
      %v1409 = vshll.u32 %v1305, 16
      %v1411 = vrot.slane %v1409, 5
      %v1412 = vor.u32 %v1408, %v1411
      %v1413 = vrot.slane %v1412, 4
      %v1415 = vshll.u32 %v1306, 16
      %v1417 = vrot.slane %v1415, 5
      %v1418 = vsel %vm512, %v1413, %v1417
      %s1419 = scalar_lea.vmem %s3, 256
      %v1420 = vld [vmem:[%s1419] sm:$0xf]
      %v1421 = vld [vmem:[%s1419 + $0x4] sm:$0xf]
      %v1422 = vld [vmem:[%s1419 + $0x8] sm:$0xf]
      %v1423 = vld [vmem:[%s1419 + $0xc] sm:$0xf]
      %v1424 = vld [vmem:[%s1419 + $0x10] sm:$0xf]
      %v1425 = vld [vmem:[%s1419 + $0x14] sm:$0xf]
      %v1426 = vld [vmem:[%s1419 + $0x18] sm:$0xf]
      %v1427 = vld [vmem:[%s1419 + $0x1c] sm:$0xf]
      %v1428 = vld [vmem:[%s1419 + $0x20] sm:$0xf]
      %v1429 = vld [vmem:[%s1419 + $0x24] sm:$0xf]
      %v1430 = vld [vmem:[%s1419 + $0x28] sm:$0xf]
      %v1431 = vld [vmem:[%s1419 + $0x2c] sm:$0xf]
      %v1432 = vld [vmem:[%s1419 + $0x30] sm:$0xf]
      %v1433 = vld [vmem:[%s1419 + $0x34] sm:$0xf]
      %v1434 = vld [vmem:[%s1419 + $0x38] sm:$0xf]
      %v1435 = vld [vmem:[%s1419 + $0x3c] sm:$0xf]
      %v1436 = vunpack.c.l.b16 %v1320
      %v1437 = vunpack.c.l.b16 %v1334
      %v1438 = vunpack.c.l.b16 %v1348
      %v1439 = vunpack.c.l.b16 %v1362
      %v1440 = vunpack.c.l.b16 %v1376
      %v1441 = vunpack.c.l.b16 %v1390
      %v1442 = vunpack.c.l.b16 %v1404
      %v1443 = vunpack.c.l.b16 %v1418
      %v1444 = vpack.c.b16 %v1437, %v1436
      %v1445 = vpack.c.b16 %v1439, %v1438
      %v1446 = vpack.c.b16 %v1441, %v1440
      %v1447 = vpack.c.b16 %v1443, %v1442
      %v1468 = vunpack.c.l.b16 %v1420
      %v1469 = vunpack.c.l.b16 %v1421
      %v1470 = vunpack.c.l.b16 %v1422
      %v1471 = vunpack.c.l.b16 %v1423
      %v1472 = vunpack.c.l.b16 %v1424
      %v1473 = vunpack.c.l.b16 %v1425
      %v1474 = vunpack.c.l.b16 %v1426
      %v1475 = vunpack.c.l.b16 %v1427
      %v1476 = vunpack.c.l.b16 %v1428
      %v1477 = vunpack.c.l.b16 %v1429
      %v1478 = vunpack.c.l.b16 %v1430
      %v1479 = vunpack.c.l.b16 %v1431
      %v1480 = vunpack.c.l.b16 %v1432
      %v1481 = vunpack.c.l.b16 %v1433
      %v1482 = vunpack.c.l.b16 %v1434
      %v1483 = vunpack.c.l.b16 %v1435
      %v1484 = vpack.c.b16 %v1469, %v1468
      %v1485 = vpack.c.b16 %v1471, %v1470
      %v1486 = vpack.c.b16 %v1473, %v1472
      %v1487 = vpack.c.b16 %v1475, %v1474
      %v1488 = vpack.c.b16 %v1477, %v1476
      %v1489 = vpack.c.b16 %v1479, %v1478
      %v1490 = vpack.c.b16 %v1481, %v1480
      %v1491 = vpack.c.b16 %v1483, %v1482
      %1500 = vmatprep.subr.bf16.mxu0 0
      %1501 = vmatpush1.bf16.msra.mxu0 %v1484
      %1502 = vmatprep.subr.bf16.mxu0 0
      %1503 = vmatpush1.bf16.msra.mxu0 %v1485
      %1504 = vmatprep.subr.bf16.mxu0 0
      %1505 = vmatpush1.bf16.msra.mxu0 %v1486
      %1506 = vmatprep.subr.bf16.mxu0 0
      %1507 = vmatpush1.bf16.msra.mxu0 %v1487
      %1508 = vmatprep.subr.bf16.mxu0 0
      %1509 = vmatpush1.bf16.msra.mxu0 %v1488
      %1510 = vmatprep.subr.bf16.mxu0 0
      %1511 = vmatpush1.bf16.msra.mxu0 %v1489
      %1512 = vmatprep.subr.bf16.mxu0 0
      %1513 = vmatpush1.bf16.msra.mxu0 %v1490
      %1514 = vmatprep.subr.bf16.mxu0 0
      %1515 = vmatpush1.bf16.msra.mxu0 %v1491
      %1516 = vmatprep.subr.bf16.mxu0 0
      %1517 = vmatpush1.bf16.msra.mxu0 0
      %1518 = vmatprep.subr.bf16.mxu0 0
      %1519 = vmatpush1.bf16.msra.mxu0 0
      %1520 = vmatprep.subr.bf16.mxu0 0
      %1521 = vmatpush1.bf16.msra.mxu0 0
      %1522 = vmatprep.subr.bf16.mxu0 0
      %1523 = vmatpush1.bf16.msra.mxu0 0
      %1524 = vmatprep.subr.bf16.mxu0 0
      %1525 = vmatpush1.bf16.msra.mxu0 0
      %1526 = vmatprep.subr.bf16.mxu0 0
      %1527 = vmatpush1.bf16.msra.mxu0 0
      %1528 = vmatprep.subr.bf16.mxu0 0
      %1529 = vmatpush1.bf16.msra.mxu0 0
      %1530 = vmatprep.subr.bf16.mxu0 0
      %1531 = vmatpush1.bf16.msra.mxu0 0
      %1532 = vmatprep.mubr.bf16.mxu0 0
      %1533 = vmatmul.mubr.bf16.gmra.mrb[0].mxu0 %v1444
      %v1534 = vpop.f32.mrb[0].mxu0
      %v1535 = vadd.f32 0.0, %v1534
      %v1536 = vpop.f32.mrb[0].mxu0
      %v1537 = vpop.f32.mrb[0].mxu0
      %v1538 = vadd.f32 0.0, %v1537
      %v1539 = vpop.f32.mrb[0].mxu0
      %1540 = vmatprep.mubr.bf16.mxu0 0
      %1541 = vmatmul.mubr.bf16.gmra.mrb[0].mxu0 %v1445
      %v1542 = vpop.f32.mrb[0].mxu0
      %v1543 = vadd.f32 0.0, %v1542
      %v1544 = vpop.f32.mrb[0].mxu0
      %v1545 = vpop.f32.mrb[0].mxu0
      %v1546 = vadd.f32 0.0, %v1545
      %v1547 = vpop.f32.mrb[0].mxu0
      %1548 = vmatprep.mubr.bf16.mxu0 0
      %1549 = vmatmul.mubr.bf16.gmra.mrb[0].mxu0 %v1446
      %v1550 = vpop.f32.mrb[0].mxu0
      %v1551 = vadd.f32 0.0, %v1550
      %v1552 = vpop.f32.mrb[0].mxu0
      %v1553 = vpop.f32.mrb[0].mxu0
      %v1554 = vadd.f32 0.0, %v1553
      %v1555 = vpop.f32.mrb[0].mxu0
      %1556 = vmatprep.mubr.bf16.mxu0 0
      %1557 = vmatmul.mubr.bf16.gmra.mrb[0].mxu0 %v1447
      %v1558 = vpop.f32.mrb[0].mxu0
      %v1559 = vadd.f32 0.0, %v1558
      %v1560 = vpop.f32.mrb[0].mxu0
      %v1561 = vpop.f32.mrb[0].mxu0
      %v1562 = vadd.f32 0.0, %v1561
      %v1563 = vpop.f32.mrb[0].mxu0
      %1564 = vdwg.mxu0
      %v1565 = vadd.f32 %v1283, %v1535
      %v1566 = vadd.f32 %v1284, %v1538
      %v1567 = vadd.f32 %v1285, %v1543
      %v1568 = vadd.f32 %v1286, %v1546
      %v1569 = vadd.f32 %v1287, %v1551
      %v1570 = vadd.f32 %v1288, %v1554
      %v1571 = vadd.f32 %v1289, %v1559
      %v1572 = vadd.f32 %v1290, %v1562
      %v1573 = vld [vmem:[%s423] sm:$0xe]
      %v1574 = vld [vmem:[%s423 + $0x8] sm:$0xe]
      %v1575 = vld [vmem:[%s423 + $0x10] sm:$0xe]
      %v1576 = vld [vmem:[%s423 + $0x18] sm:$0xe]
      %v1577 = vld [vmem:[%s423 + $0x20] sm:$0xe]
      %v1578 = vld [vmem:[%s423 + $0x28] sm:$0xe]
      %v1579 = vld [vmem:[%s423 + $0x30] sm:$0xe]
      %v1580 = vld [vmem:[%s423 + $0x38] sm:$0xe]
      %v1597 = vrot.slane %v1573, 5
      %v1598 = vrot.slane %v1597, 4
      %v1599 = vrot.slane %v1292, 5
      %v1600 = vsel %vm934, %v1598, %v1599
      %v1601 = vrot.slane %v1574, 5
      %v1602 = vrot.slane %v1601, 4
      %v1603 = vrot.slane %v1294, 5
      %v1604 = vsel %vm934, %v1602, %v1603
      %v1605 = vrot.slane %v1575, 5
      %v1606 = vrot.slane %v1605, 4
      %v1607 = vrot.slane %v1296, 5
      %v1608 = vsel %vm934, %v1606, %v1607
      %v1609 = vrot.slane %v1576, 5
      %v1610 = vrot.slane %v1609, 4
      %v1611 = vrot.slane %v1298, 5
      %v1612 = vsel %vm934, %v1610, %v1611
      %v1613 = vrot.slane %v1577, 5
      %v1614 = vrot.slane %v1613, 4
      %v1615 = vrot.slane %v1300, 5
      %v1616 = vsel %vm934, %v1614, %v1615
      %v1617 = vrot.slane %v1578, 5
      %v1618 = vrot.slane %v1617, 4
      %v1619 = vrot.slane %v1302, 5
      %v1620 = vsel %vm934, %v1618, %v1619
      %v1621 = vrot.slane %v1579, 5
      %v1622 = vrot.slane %v1621, 4
      %v1623 = vrot.slane %v1304, 5
      %v1624 = vsel %vm934, %v1622, %v1623
      %v1625 = vrot.slane %v1580, 5
      %v1626 = vrot.slane %v1625, 4
      %v1627 = vrot.slane %v1306, 5
      %v1628 = vsel %vm934, %v1626, %v1627
      %s1629 = scalar_lea.vmem %s3, 320
      %v1630 = vld [vmem:[%s1629] sm:$0xf]
      %v1631 = vld [vmem:[%s1629 + $0x4] sm:$0xf]
      %v1632 = vld [vmem:[%s1629 + $0x8] sm:$0xf]
      %v1633 = vld [vmem:[%s1629 + $0xc] sm:$0xf]
      %v1634 = vld [vmem:[%s1629 + $0x10] sm:$0xf]
      %v1635 = vld [vmem:[%s1629 + $0x14] sm:$0xf]
      %v1636 = vld [vmem:[%s1629 + $0x18] sm:$0xf]
      %v1637 = vld [vmem:[%s1629 + $0x1c] sm:$0xf]
      %v1638 = vld [vmem:[%s1629 + $0x20] sm:$0xf]
      %v1639 = vld [vmem:[%s1629 + $0x24] sm:$0xf]
      %v1640 = vld [vmem:[%s1629 + $0x28] sm:$0xf]
      %v1641 = vld [vmem:[%s1629 + $0x2c] sm:$0xf]
      %v1642 = vld [vmem:[%s1629 + $0x30] sm:$0xf]
      %v1643 = vld [vmem:[%s1629 + $0x34] sm:$0xf]
      %v1644 = vld [vmem:[%s1629 + $0x38] sm:$0xf]
      %v1645 = vld [vmem:[%s1629 + $0x3c] sm:$0xf]
      %v1646 = vunpack.c.l.b16 %v1600
      %v1647 = vunpack.c.l.b16 %v1604
      %v1648 = vunpack.c.l.b16 %v1608
      %v1649 = vunpack.c.l.b16 %v1612
      %v1650 = vunpack.c.l.b16 %v1616
      %v1651 = vunpack.c.l.b16 %v1620
      %v1652 = vunpack.c.l.b16 %v1624
      %v1653 = vunpack.c.l.b16 %v1628
      %v1654 = vpack.c.b16 %v1647, %v1646
      %v1655 = vpack.c.b16 %v1649, %v1648
      %v1656 = vpack.c.b16 %v1651, %v1650
      %v1657 = vpack.c.b16 %v1653, %v1652
      %v1678 = vunpack.c.l.b16 %v1630
      %v1679 = vunpack.c.l.b16 %v1631
      %v1680 = vunpack.c.l.b16 %v1632
      %v1681 = vunpack.c.l.b16 %v1633
      %v1682 = vunpack.c.l.b16 %v1634
      %v1683 = vunpack.c.l.b16 %v1635
      %v1684 = vunpack.c.l.b16 %v1636
      %v1685 = vunpack.c.l.b16 %v1637
      %v1686 = vunpack.c.l.b16 %v1638
      %v1687 = vunpack.c.l.b16 %v1639
      %v1688 = vunpack.c.l.b16 %v1640
      %v1689 = vunpack.c.l.b16 %v1641
      %v1690 = vunpack.c.l.b16 %v1642
      %v1691 = vunpack.c.l.b16 %v1643
      %v1692 = vunpack.c.l.b16 %v1644
      %v1693 = vunpack.c.l.b16 %v1645
      %v1694 = vpack.c.b16 %v1679, %v1678
      %v1695 = vpack.c.b16 %v1681, %v1680
      %v1696 = vpack.c.b16 %v1683, %v1682
      %v1697 = vpack.c.b16 %v1685, %v1684
      %v1698 = vpack.c.b16 %v1687, %v1686
      %v1699 = vpack.c.b16 %v1689, %v1688
      %v1700 = vpack.c.b16 %v1691, %v1690
      %v1701 = vpack.c.b16 %v1693, %v1692
      %1710 = vmatprep.subr.bf16.mxu0 0
      %1711 = vmatpush1.bf16.msra.mxu0 %v1694
      %1712 = vmatprep.subr.bf16.mxu0 0
      %1713 = vmatpush1.bf16.msra.mxu0 %v1695
      %1714 = vmatprep.subr.bf16.mxu0 0
      %1715 = vmatpush1.bf16.msra.mxu0 %v1696
      %1716 = vmatprep.subr.bf16.mxu0 0
      %1717 = vmatpush1.bf16.msra.mxu0 %v1697
      %1718 = vmatprep.subr.bf16.mxu0 0
      %1719 = vmatpush1.bf16.msra.mxu0 %v1698
      %1720 = vmatprep.subr.bf16.mxu0 0
      %1721 = vmatpush1.bf16.msra.mxu0 %v1699
      %1722 = vmatprep.subr.bf16.mxu0 0
      %1723 = vmatpush1.bf16.msra.mxu0 %v1700
      %1724 = vmatprep.subr.bf16.mxu0 0
      %1725 = vmatpush1.bf16.msra.mxu0 %v1701
      %1726 = vmatprep.subr.bf16.mxu0 0
      %1727 = vmatpush1.bf16.msra.mxu0 0
      %1728 = vmatprep.subr.bf16.mxu0 0
      %1729 = vmatpush1.bf16.msra.mxu0 0
      %1730 = vmatprep.subr.bf16.mxu0 0
      %1731 = vmatpush1.bf16.msra.mxu0 0
      %1732 = vmatprep.subr.bf16.mxu0 0
      %1733 = vmatpush1.bf16.msra.mxu0 0
      %1734 = vmatprep.subr.bf16.mxu0 0
      %1735 = vmatpush1.bf16.msra.mxu0 0
      %1736 = vmatprep.subr.bf16.mxu0 0
      %1737 = vmatpush1.bf16.msra.mxu0 0
      %1738 = vmatprep.subr.bf16.mxu0 0
      %1739 = vmatpush1.bf16.msra.mxu0 0
      %1740 = vmatprep.subr.bf16.mxu0 0
      %1741 = vmatpush1.bf16.msra.mxu0 0
      %1742 = vmatprep.mubr.bf16.mxu0 0
      %1743 = vmatmul.mubr.bf16.gmra.mrb[0].mxu0 %v1654
      %v1744 = vpop.f32.mrb[0].mxu0
      %v1745 = vadd.f32 0.0, %v1744
      %v1746 = vpop.f32.mrb[0].mxu0
      %v1747 = vpop.f32.mrb[0].mxu0
      %v1748 = vadd.f32 0.0, %v1747
      %v1749 = vpop.f32.mrb[0].mxu0
      %1750 = vmatprep.mubr.bf16.mxu0 0
      %1751 = vmatmul.mubr.bf16.gmra.mrb[0].mxu0 %v1655
      %v1752 = vpop.f32.mrb[0].mxu0
      %v1753 = vadd.f32 0.0, %v1752
      %v1754 = vpop.f32.mrb[0].mxu0
      %v1755 = vpop.f32.mrb[0].mxu0
      %v1756 = vadd.f32 0.0, %v1755
      %v1757 = vpop.f32.mrb[0].mxu0
      %1758 = vmatprep.mubr.bf16.mxu0 0
      %1759 = vmatmul.mubr.bf16.gmra.mrb[0].mxu0 %v1656
      %v1760 = vpop.f32.mrb[0].mxu0
      %v1761 = vadd.f32 0.0, %v1760
      %v1762 = vpop.f32.mrb[0].mxu0
      %v1763 = vpop.f32.mrb[0].mxu0
      %v1764 = vadd.f32 0.0, %v1763
      %v1765 = vpop.f32.mrb[0].mxu0
      %1766 = vmatprep.mubr.bf16.mxu0 0
      %1767 = vmatmul.mubr.bf16.gmra.mrb[0].mxu0 %v1657
      %v1768 = vpop.f32.mrb[0].mxu0
      %v1769 = vadd.f32 0.0, %v1768
      %v1770 = vpop.f32.mrb[0].mxu0
      %v1771 = vpop.f32.mrb[0].mxu0
      %v1772 = vadd.f32 0.0, %v1771
      %v1773 = vpop.f32.mrb[0].mxu0
      %1774 = vdwg.mxu0
      %v1775 = vadd.f32 %v1565, %v1745
      %v1776 = vadd.f32 %v1566, %v1748
      %v1777 = vadd.f32 %v1567, %v1753
      %v1778 = vadd.f32 %v1568, %v1756
      %v1779 = vadd.f32 %v1569, %v1761
      %v1780 = vadd.f32 %v1570, %v1764
      %v1781 = vadd.f32 %v1571, %v1769
      %v1782 = vadd.f32 %v1572, %v1772
      %s1783 = scalar_lea.vmem [#allocation2], 16
      %v1784 = vld [vmem:[%s1783] sm:$0xf]
      %v1785 = vld [vmem:[%s1783 + $0x8] sm:$0xf]
      %v1786 = vld [vmem:[%s1783 + $0x10] sm:$0xf]
      %v1787 = vld [vmem:[%s1783 + $0x18] sm:$0xf]
      %v1788 = vld [vmem:[%s1783 + $0x20] sm:$0xf]
      %v1789 = vld [vmem:[%s1783 + $0x28] sm:$0xf]
      %v1790 = vld [vmem:[%s1783 + $0x30] sm:$0xf]
      %v1791 = vld [vmem:[%s1783 + $0x38] sm:$0xf]
      %s1792 = scalar_lea.vmem %s3, 384
      %v1793 = vld [vmem:[%s1792] sm:$0xf]
      %v1794 = vld [vmem:[%s1792 + $0x4] sm:$0xf]
      %v1795 = vld [vmem:[%s1792 + $0x8] sm:$0xf]
      %v1796 = vld [vmem:[%s1792 + $0xc] sm:$0xf]
      %v1797 = vld [vmem:[%s1792 + $0x10] sm:$0xf]
      %v1798 = vld [vmem:[%s1792 + $0x14] sm:$0xf]
      %v1799 = vld [vmem:[%s1792 + $0x18] sm:$0xf]
      %v1800 = vld [vmem:[%s1792 + $0x1c] sm:$0xf]
      %v1801 = vld [vmem:[%s1792 + $0x20] sm:$0xf]
      %v1802 = vld [vmem:[%s1792 + $0x24] sm:$0xf]
      %v1803 = vld [vmem:[%s1792 + $0x28] sm:$0xf]
      %v1804 = vld [vmem:[%s1792 + $0x2c] sm:$0xf]
      %v1805 = vld [vmem:[%s1792 + $0x30] sm:$0xf]
      %v1806 = vld [vmem:[%s1792 + $0x34] sm:$0xf]
      %v1807 = vld [vmem:[%s1792 + $0x38] sm:$0xf]
      %v1808 = vld [vmem:[%s1792 + $0x3c] sm:$0xf]
      %v1817 = vunpack.c.l.b16 %v1784
      %v1818 = vunpack.c.l.b16 %v1785
      %v1819 = vunpack.c.l.b16 %v1786
      %v1820 = vunpack.c.l.b16 %v1787
      %v1821 = vunpack.c.l.b16 %v1788
      %v1822 = vunpack.c.l.b16 %v1789
      %v1823 = vunpack.c.l.b16 %v1790
      %v1824 = vunpack.c.l.b16 %v1791
      %v1825 = vpack.c.b16 %v1818, %v1817
      %v1826 = vpack.c.b16 %v1820, %v1819
      %v1827 = vpack.c.b16 %v1822, %v1821
      %v1828 = vpack.c.b16 %v1824, %v1823
      %v1849 = vunpack.c.l.b16 %v1793
      %v1850 = vunpack.c.l.b16 %v1794
      %v1851 = vunpack.c.l.b16 %v1795
      %v1852 = vunpack.c.l.b16 %v1796
      %v1853 = vunpack.c.l.b16 %v1797
      %v1854 = vunpack.c.l.b16 %v1798
      %v1855 = vunpack.c.l.b16 %v1799
      %v1856 = vunpack.c.l.b16 %v1800
      %v1857 = vunpack.c.l.b16 %v1801
      %v1858 = vunpack.c.l.b16 %v1802
      %v1859 = vunpack.c.l.b16 %v1803
      %v1860 = vunpack.c.l.b16 %v1804
      %v1861 = vunpack.c.l.b16 %v1805
      %v1862 = vunpack.c.l.b16 %v1806
      %v1863 = vunpack.c.l.b16 %v1807
      %v1864 = vunpack.c.l.b16 %v1808
      %v1865 = vpack.c.b16 %v1850, %v1849
      %v1866 = vpack.c.b16 %v1852, %v1851
      %v1867 = vpack.c.b16 %v1854, %v1853
      %v1868 = vpack.c.b16 %v1856, %v1855
      %v1869 = vpack.c.b16 %v1858, %v1857
      %v1870 = vpack.c.b16 %v1860, %v1859
      %v1871 = vpack.c.b16 %v1862, %v1861
      %v1872 = vpack.c.b16 %v1864, %v1863
      %1881 = vmatprep.subr.bf16.mxu0 0
      %1882 = vmatpush1.bf16.msra.mxu0 %v1865
      %1883 = vmatprep.subr.bf16.mxu0 0
      %1884 = vmatpush1.bf16.msra.mxu0 %v1866
      %1885 = vmatprep.subr.bf16.mxu0 0
      %1886 = vmatpush1.bf16.msra.mxu0 %v1867
      %1887 = vmatprep.subr.bf16.mxu0 0
      %1888 = vmatpush1.bf16.msra.mxu0 %v1868
      %1889 = vmatprep.subr.bf16.mxu0 0
      %1890 = vmatpush1.bf16.msra.mxu0 %v1869
      %1891 = vmatprep.subr.bf16.mxu0 0
      %1892 = vmatpush1.bf16.msra.mxu0 %v1870
      %1893 = vmatprep.subr.bf16.mxu0 0
      %1894 = vmatpush1.bf16.msra.mxu0 %v1871
      %1895 = vmatprep.subr.bf16.mxu0 0
      %1896 = vmatpush1.bf16.msra.mxu0 %v1872
      %1897 = vmatprep.subr.bf16.mxu0 0
      %1898 = vmatpush1.bf16.msra.mxu0 0
      %1899 = vmatprep.subr.bf16.mxu0 0
      %1900 = vmatpush1.bf16.msra.mxu0 0
      %1901 = vmatprep.subr.bf16.mxu0 0
      %1902 = vmatpush1.bf16.msra.mxu0 0
      %1903 = vmatprep.subr.bf16.mxu0 0
      %1904 = vmatpush1.bf16.msra.mxu0 0
      %1905 = vmatprep.subr.bf16.mxu0 0
      %1906 = vmatpush1.bf16.msra.mxu0 0
      %1907 = vmatprep.subr.bf16.mxu0 0
      %1908 = vmatpush1.bf16.msra.mxu0 0
      %1909 = vmatprep.subr.bf16.mxu0 0
      %1910 = vmatpush1.bf16.msra.mxu0 0
      %1911 = vmatprep.subr.bf16.mxu0 0
      %1912 = vmatpush1.bf16.msra.mxu0 0
      %1913 = vmatprep.mubr.bf16.mxu0 0
      %1914 = vmatmul.mubr.bf16.gmra.mrb[0].mxu0 %v1825
      %v1915 = vpop.f32.mrb[0].mxu0
      %v1916 = vadd.f32 0.0, %v1915
      %v1917 = vpop.f32.mrb[0].mxu0
      %v1918 = vpop.f32.mrb[0].mxu0
      %v1919 = vadd.f32 0.0, %v1918
      %v1920 = vpop.f32.mrb[0].mxu0
      %1921 = vmatprep.mubr.bf16.mxu0 0
      %1922 = vmatmul.mubr.bf16.gmra.mrb[0].mxu0 %v1826
      %v1923 = vpop.f32.mrb[0].mxu0
      %v1924 = vadd.f32 0.0, %v1923
      %v1925 = vpop.f32.mrb[0].mxu0
      %v1926 = vpop.f32.mrb[0].mxu0
      %v1927 = vadd.f32 0.0, %v1926
      %v1928 = vpop.f32.mrb[0].mxu0
      %1929 = vmatprep.mubr.bf16.mxu0 0
      %1930 = vmatmul.mubr.bf16.gmra.mrb[0].mxu0 %v1827
      %v1931 = vpop.f32.mrb[0].mxu0
      %v1932 = vadd.f32 0.0, %v1931
      %v1933 = vpop.f32.mrb[0].mxu0
      %v1934 = vpop.f32.mrb[0].mxu0
      %v1935 = vadd.f32 0.0, %v1934
      %v1936 = vpop.f32.mrb[0].mxu0
      %1937 = vmatprep.mubr.bf16.mxu0 0
      %1938 = vmatmul.mubr.bf16.gmra.mrb[0].mxu0 %v1828
      %v1939 = vpop.f32.mrb[0].mxu0
      %v1940 = vadd.f32 0.0, %v1939
      %v1941 = vpop.f32.mrb[0].mxu0
      %v1942 = vpop.f32.mrb[0].mxu0
      %v1943 = vadd.f32 0.0, %v1942
      %v1944 = vpop.f32.mrb[0].mxu0
      %1945 = vdwg.mxu0
      %v1946 = vadd.f32 %v1775, %v1916
      %v1947 = vadd.f32 %v1776, %v1919
      %v1948 = vadd.f32 %v1777, %v1924
      %v1949 = vadd.f32 %v1778, %v1927
      %v1950 = vadd.f32 %v1779, %v1932
      %v1951 = vadd.f32 %v1780, %v1935
      %v1952 = vadd.f32 %v1781, %v1940
      %v1953 = vadd.f32 %v1782, %v1943
      %v1954 = vld [vmem:[%s1783] sm:$0xf]
      %v1955 = vld [vmem:[%s1783 + $0x4] sm:$0x1]
      %v1956 = vld [vmem:[%s1783 + $0x8] sm:$0xf]
      %v1957 = vld [vmem:[%s1783 + $0xc] sm:$0x1]
      %v1958 = vld [vmem:[%s1783 + $0x10] sm:$0xf]
      %v1959 = vld [vmem:[%s1783 + $0x14] sm:$0x1]
      %v1960 = vld [vmem:[%s1783 + $0x18] sm:$0xf]
      %v1961 = vld [vmem:[%s1783 + $0x1c] sm:$0x1]
      %v1962 = vld [vmem:[%s1783 + $0x20] sm:$0xf]
      %v1963 = vld [vmem:[%s1783 + $0x24] sm:$0x1]
      %v1964 = vld [vmem:[%s1783 + $0x28] sm:$0xf]
      %v1965 = vld [vmem:[%s1783 + $0x2c] sm:$0x1]
      %v1966 = vld [vmem:[%s1783 + $0x30] sm:$0xf]
      %v1967 = vld [vmem:[%s1783 + $0x34] sm:$0x1]
      %v1968 = vld [vmem:[%s1783 + $0x38] sm:$0xf]
      %v1969 = vld [vmem:[%s1783 + $0x3c] sm:$0x1]
      %v1971 = vshrl.u32 %v1954, 16
      %v1973 = vrot.slane %v1971, 4
      %v1974 = vshll.u32 %v1954, 16
      %v1976 = vrot.slane %v1974, 5
      %v1977 = vor.u32 %v1973, %v1976
      %v1978 = vrot.slane %v1977, 4
      %v1980 = vshll.u32 %v1955, 16
      %v1982 = vrot.slane %v1980, 5
      %v1983 = vsel %vm512, %v1978, %v1982
      %v1985 = vshrl.u32 %v1956, 16
      %v1987 = vrot.slane %v1985, 4
      %v1988 = vshll.u32 %v1956, 16
      %v1990 = vrot.slane %v1988, 5
      %v1991 = vor.u32 %v1987, %v1990
      %v1992 = vrot.slane %v1991, 4
      %v1994 = vshll.u32 %v1957, 16
      %v1996 = vrot.slane %v1994, 5
      %v1997 = vsel %vm512, %v1992, %v1996
      %v1999 = vshrl.u32 %v1958, 16
      %v2001 = vrot.slane %v1999, 4
      %v2002 = vshll.u32 %v1958, 16
      %v2004 = vrot.slane %v2002, 5
      %v2005 = vor.u32 %v2001, %v2004
      %v2006 = vrot.slane %v2005, 4
      %v2008 = vshll.u32 %v1959, 16
      %v2010 = vrot.slane %v2008, 5
      %v2011 = vsel %vm512, %v2006, %v2010
      %v2013 = vshrl.u32 %v1960, 16
      %v2015 = vrot.slane %v2013, 4
      %v2016 = vshll.u32 %v1960, 16
      %v2018 = vrot.slane %v2016, 5
      %v2019 = vor.u32 %v2015, %v2018
      %v2020 = vrot.slane %v2019, 4
      %v2022 = vshll.u32 %v1961, 16
      %v2024 = vrot.slane %v2022, 5
      %v2025 = vsel %vm512, %v2020, %v2024
      %v2027 = vshrl.u32 %v1962, 16
      %v2029 = vrot.slane %v2027, 4
      %v2030 = vshll.u32 %v1962, 16
      %v2032 = vrot.slane %v2030, 5
      %v2033 = vor.u32 %v2029, %v2032
      %v2034 = vrot.slane %v2033, 4
      %v2036 = vshll.u32 %v1963, 16
      %v2038 = vrot.slane %v2036, 5
      %v2039 = vsel %vm512, %v2034, %v2038
      %v2041 = vshrl.u32 %v1964, 16
      %v2043 = vrot.slane %v2041, 4
      %v2044 = vshll.u32 %v1964, 16
      %v2046 = vrot.slane %v2044, 5
      %v2047 = vor.u32 %v2043, %v2046
      %v2048 = vrot.slane %v2047, 4
      %v2050 = vshll.u32 %v1965, 16
      %v2052 = vrot.slane %v2050, 5
      %v2053 = vsel %vm512, %v2048, %v2052
      %v2055 = vshrl.u32 %v1966, 16
      %v2057 = vrot.slane %v2055, 4
      %v2058 = vshll.u32 %v1966, 16
      %v2060 = vrot.slane %v2058, 5
      %v2061 = vor.u32 %v2057, %v2060
      %v2062 = vrot.slane %v2061, 4
      %v2064 = vshll.u32 %v1967, 16
      %v2066 = vrot.slane %v2064, 5
      %v2067 = vsel %vm512, %v2062, %v2066
      %v2069 = vshrl.u32 %v1968, 16
      %v2071 = vrot.slane %v2069, 4
      %v2072 = vshll.u32 %v1968, 16
      %v2074 = vrot.slane %v2072, 5
      %v2075 = vor.u32 %v2071, %v2074
      %v2076 = vrot.slane %v2075, 4
      %v2078 = vshll.u32 %v1969, 16
      %v2080 = vrot.slane %v2078, 5
      %v2081 = vsel %vm512, %v2076, %v2080
      %s2082 = scalar_lea.vmem %s3, 448
      %v2083 = vld [vmem:[%s2082] sm:$0xf]
      %v2084 = vld [vmem:[%s2082 + $0x4] sm:$0xf]
      %v2085 = vld [vmem:[%s2082 + $0x8] sm:$0xf]
      %v2086 = vld [vmem:[%s2082 + $0xc] sm:$0xf]
      %v2087 = vld [vmem:[%s2082 + $0x10] sm:$0xf]
      %v2088 = vld [vmem:[%s2082 + $0x14] sm:$0xf]
      %v2089 = vld [vmem:[%s2082 + $0x18] sm:$0xf]
      %v2090 = vld [vmem:[%s2082 + $0x1c] sm:$0xf]
      %v2091 = vld [vmem:[%s2082 + $0x20] sm:$0xf]
      %v2092 = vld [vmem:[%s2082 + $0x24] sm:$0xf]
      %v2093 = vld [vmem:[%s2082 + $0x28] sm:$0xf]
      %v2094 = vld [vmem:[%s2082 + $0x2c] sm:$0xf]
      %v2095 = vld [vmem:[%s2082 + $0x30] sm:$0xf]
      %v2096 = vld [vmem:[%s2082 + $0x34] sm:$0xf]
      %v2097 = vld [vmem:[%s2082 + $0x38] sm:$0xf]
      %v2098 = vld [vmem:[%s2082 + $0x3c] sm:$0xf]
      %v2099 = vunpack.c.l.b16 %v1983
      %v2100 = vunpack.c.l.b16 %v1997
      %v2101 = vunpack.c.l.b16 %v2011
      %v2102 = vunpack.c.l.b16 %v2025
      %v2103 = vunpack.c.l.b16 %v2039
      %v2104 = vunpack.c.l.b16 %v2053
      %v2105 = vunpack.c.l.b16 %v2067
      %v2106 = vunpack.c.l.b16 %v2081
      %v2107 = vpack.c.b16 %v2100, %v2099
      %v2108 = vpack.c.b16 %v2102, %v2101
      %v2109 = vpack.c.b16 %v2104, %v2103
      %v2110 = vpack.c.b16 %v2106, %v2105
      %v2131 = vunpack.c.l.b16 %v2083
      %v2132 = vunpack.c.l.b16 %v2084
      %v2133 = vunpack.c.l.b16 %v2085
      %v2134 = vunpack.c.l.b16 %v2086
      %v2135 = vunpack.c.l.b16 %v2087
      %v2136 = vunpack.c.l.b16 %v2088
      %v2137 = vunpack.c.l.b16 %v2089
      %v2138 = vunpack.c.l.b16 %v2090
      %v2139 = vunpack.c.l.b16 %v2091
      %v2140 = vunpack.c.l.b16 %v2092
      %v2141 = vunpack.c.l.b16 %v2093
      %v2142 = vunpack.c.l.b16 %v2094
      %v2143 = vunpack.c.l.b16 %v2095
      %v2144 = vunpack.c.l.b16 %v2096
      %v2145 = vunpack.c.l.b16 %v2097
      %v2146 = vunpack.c.l.b16 %v2098
      %v2147 = vpack.c.b16 %v2132, %v2131
      %v2148 = vpack.c.b16 %v2134, %v2133
      %v2149 = vpack.c.b16 %v2136, %v2135
      %v2150 = vpack.c.b16 %v2138, %v2137
      %v2151 = vpack.c.b16 %v2140, %v2139
      %v2152 = vpack.c.b16 %v2142, %v2141
      %v2153 = vpack.c.b16 %v2144, %v2143
      %v2154 = vpack.c.b16 %v2146, %v2145
      %2163 = vmatprep.subr.bf16.mxu0 0
      %2164 = vmatpush1.bf16.msra.mxu0 %v2147
      %2165 = vmatprep.subr.bf16.mxu0 0
      %2166 = vmatpush1.bf16.msra.mxu0 %v2148
      %2167 = vmatprep.subr.bf16.mxu0 0
      %2168 = vmatpush1.bf16.msra.mxu0 %v2149
      %2169 = vmatprep.subr.bf16.mxu0 0
      %2170 = vmatpush1.bf16.msra.mxu0 %v2150
      %2171 = vmatprep.subr.bf16.mxu0 0
      %2172 = vmatpush1.bf16.msra.mxu0 %v2151
      %2173 = vmatprep.subr.bf16.mxu0 0
      %2174 = vmatpush1.bf16.msra.mxu0 %v2152
      %2175 = vmatprep.subr.bf16.mxu0 0
      %2176 = vmatpush1.bf16.msra.mxu0 %v2153
      %2177 = vmatprep.subr.bf16.mxu0 0
      %2178 = vmatpush1.bf16.msra.mxu0 %v2154
      %2179 = vmatprep.subr.bf16.mxu0 0
      %2180 = vmatpush1.bf16.msra.mxu0 0
      %2181 = vmatprep.subr.bf16.mxu0 0
      %2182 = vmatpush1.bf16.msra.mxu0 0
      %2183 = vmatprep.subr.bf16.mxu0 0
      %2184 = vmatpush1.bf16.msra.mxu0 0
      %2185 = vmatprep.subr.bf16.mxu0 0
      %2186 = vmatpush1.bf16.msra.mxu0 0
      %2187 = vmatprep.subr.bf16.mxu0 0
      %2188 = vmatpush1.bf16.msra.mxu0 0
      %2189 = vmatprep.subr.bf16.mxu0 0
      %2190 = vmatpush1.bf16.msra.mxu0 0
      %2191 = vmatprep.subr.bf16.mxu0 0
      %2192 = vmatpush1.bf16.msra.mxu0 0
      %2193 = vmatprep.subr.bf16.mxu0 0
      %2194 = vmatpush1.bf16.msra.mxu0 0
      %2195 = vmatprep.mubr.bf16.mxu0 0
      %2196 = vmatmul.mubr.bf16.gmra.mrb[0].mxu0 %v2107
      %v2197 = vpop.f32.mrb[0].mxu0
      %v2198 = vadd.f32 0.0, %v2197
      %v2199 = vpop.f32.mrb[0].mxu0
      %v2200 = vpop.f32.mrb[0].mxu0
      %v2201 = vadd.f32 0.0, %v2200
      %v2202 = vpop.f32.mrb[0].mxu0
      %2203 = vmatprep.mubr.bf16.mxu0 0
      %2204 = vmatmul.mubr.bf16.gmra.mrb[0].mxu0 %v2108
      %v2205 = vpop.f32.mrb[0].mxu0
      %v2206 = vadd.f32 0.0, %v2205
      %v2207 = vpop.f32.mrb[0].mxu0
      %v2208 = vpop.f32.mrb[0].mxu0
      %v2209 = vadd.f32 0.0, %v2208
      %v2210 = vpop.f32.mrb[0].mxu0
      %2211 = vmatprep.mubr.bf16.mxu0 0
      %2212 = vmatmul.mubr.bf16.gmra.mrb[0].mxu0 %v2109
      %v2213 = vpop.f32.mrb[0].mxu0
      %v2214 = vadd.f32 0.0, %v2213
      %v2215 = vpop.f32.mrb[0].mxu0
      %v2216 = vpop.f32.mrb[0].mxu0
      %v2217 = vadd.f32 0.0, %v2216
      %v2218 = vpop.f32.mrb[0].mxu0
      %2219 = vmatprep.mubr.bf16.mxu0 0
      %2220 = vmatmul.mubr.bf16.gmra.mrb[0].mxu0 %v2110
      %v2221 = vpop.f32.mrb[0].mxu0
      %v2222 = vadd.f32 0.0, %v2221
      %v2223 = vpop.f32.mrb[0].mxu0
      %v2224 = vpop.f32.mrb[0].mxu0
      %v2225 = vadd.f32 0.0, %v2224
      %v2226 = vpop.f32.mrb[0].mxu0
      %2227 = vdwg.mxu0
      %v2228 = vadd.f32 %v1946, %v2198
      %v2229 = vadd.f32 %v1947, %v2201
      %v2230 = vadd.f32 %v1948, %v2206
      %v2231 = vadd.f32 %v1949, %v2209
      %v2232 = vadd.f32 %v1950, %v2214
      %v2233 = vadd.f32 %v1951, %v2217
      %v2234 = vadd.f32 %v1952, %v2222
      %v2235 = vadd.f32 %v1953, %v2225
      %v2236 = vld [vmem:[%s1783] sm:$0xe]
      %v2237 = vld [vmem:[%s1783 + $0x8] sm:$0xe]
      %v2238 = vld [vmem:[%s1783 + $0x10] sm:$0xe]
      %v2239 = vld [vmem:[%s1783 + $0x18] sm:$0xe]
      %v2240 = vld [vmem:[%s1783 + $0x20] sm:$0xe]
      %v2241 = vld [vmem:[%s1783 + $0x28] sm:$0xe]
      %v2242 = vld [vmem:[%s1783 + $0x30] sm:$0xe]
      %v2243 = vld [vmem:[%s1783 + $0x38] sm:$0xe]
      %v2260 = vrot.slane %v2236, 5
      %v2261 = vrot.slane %v2260, 4
      %v2262 = vrot.slane %v1955, 5
      %v2263 = vsel %vm934, %v2261, %v2262
      %v2264 = vrot.slane %v2237, 5
      %v2265 = vrot.slane %v2264, 4
      %v2266 = vrot.slane %v1957, 5
      %v2267 = vsel %vm934, %v2265, %v2266
      %v2268 = vrot.slane %v2238, 5
      %v2269 = vrot.slane %v2268, 4
      %v2270 = vrot.slane %v1959, 5
      %v2271 = vsel %vm934, %v2269, %v2270
      %v2272 = vrot.slane %v2239, 5
      %v2273 = vrot.slane %v2272, 4
      %v2274 = vrot.slane %v1961, 5
      %v2275 = vsel %vm934, %v2273, %v2274
      %v2276 = vrot.slane %v2240, 5
      %v2277 = vrot.slane %v2276, 4
      %v2278 = vrot.slane %v1963, 5
      %v2279 = vsel %vm934, %v2277, %v2278
      %v2280 = vrot.slane %v2241, 5
      %v2281 = vrot.slane %v2280, 4
      %v2282 = vrot.slane %v1965, 5
      %v2283 = vsel %vm934, %v2281, %v2282
      %v2284 = vrot.slane %v2242, 5
      %v2285 = vrot.slane %v2284, 4
      %v2286 = vrot.slane %v1967, 5
      %v2287 = vsel %vm934, %v2285, %v2286
      %v2288 = vrot.slane %v2243, 5
      %v2289 = vrot.slane %v2288, 4
      %v2290 = vrot.slane %v1969, 5
      %v2291 = vsel %vm934, %v2289, %v2290
      %s2292 = scalar_lea.vmem %s3, 512
      %v2293 = vld [vmem:[%s2292] sm:$0xf]
      %v2294 = vld [vmem:[%s2292 + $0x4] sm:$0xf]
      %v2295 = vld [vmem:[%s2292 + $0x8] sm:$0xf]
      %v2296 = vld [vmem:[%s2292 + $0xc] sm:$0xf]
      %v2297 = vld [vmem:[%s2292 + $0x10] sm:$0xf]
      %v2298 = vld [vmem:[%s2292 + $0x14] sm:$0xf]
      %v2299 = vld [vmem:[%s2292 + $0x18] sm:$0xf]
      %v2300 = vld [vmem:[%s2292 + $0x1c] sm:$0xf]
      %v2301 = vld [vmem:[%s2292 + $0x20] sm:$0xf]
      %v2302 = vld [vmem:[%s2292 + $0x24] sm:$0xf]
      %v2303 = vld [vmem:[%s2292 + $0x28] sm:$0xf]
      %v2304 = vld [vmem:[%s2292 + $0x2c] sm:$0xf]
      %v2305 = vld [vmem:[%s2292 + $0x30] sm:$0xf]
      %v2306 = vld [vmem:[%s2292 + $0x34] sm:$0xf]
      %v2307 = vld [vmem:[%s2292 + $0x38] sm:$0xf]
      %v2308 = vld [vmem:[%s2292 + $0x3c] sm:$0xf]
      %v2309 = vunpack.c.l.b16 %v2263
      %v2310 = vunpack.c.l.b16 %v2267
      %v2311 = vunpack.c.l.b16 %v2271
      %v2312 = vunpack.c.l.b16 %v2275
      %v2313 = vunpack.c.l.b16 %v2279
      %v2314 = vunpack.c.l.b16 %v2283
      %v2315 = vunpack.c.l.b16 %v2287
      %v2316 = vunpack.c.l.b16 %v2291
      %v2317 = vpack.c.b16 %v2310, %v2309
      %v2318 = vpack.c.b16 %v2312, %v2311
      %v2319 = vpack.c.b16 %v2314, %v2313
      %v2320 = vpack.c.b16 %v2316, %v2315
      %v2341 = vunpack.c.l.b16 %v2293
      %v2342 = vunpack.c.l.b16 %v2294
      %v2343 = vunpack.c.l.b16 %v2295
      %v2344 = vunpack.c.l.b16 %v2296
      %v2345 = vunpack.c.l.b16 %v2297
      %v2346 = vunpack.c.l.b16 %v2298
      %v2347 = vunpack.c.l.b16 %v2299
      %v2348 = vunpack.c.l.b16 %v2300
      %v2349 = vunpack.c.l.b16 %v2301
      %v2350 = vunpack.c.l.b16 %v2302
      %v2351 = vunpack.c.l.b16 %v2303
      %v2352 = vunpack.c.l.b16 %v2304
      %v2353 = vunpack.c.l.b16 %v2305
      %v2354 = vunpack.c.l.b16 %v2306
      %v2355 = vunpack.c.l.b16 %v2307
      %v2356 = vunpack.c.l.b16 %v2308
      %v2357 = vpack.c.b16 %v2342, %v2341
      %v2358 = vpack.c.b16 %v2344, %v2343
      %v2359 = vpack.c.b16 %v2346, %v2345
      %v2360 = vpack.c.b16 %v2348, %v2347
      %v2361 = vpack.c.b16 %v2350, %v2349
      %v2362 = vpack.c.b16 %v2352, %v2351
      %v2363 = vpack.c.b16 %v2354, %v2353
      %v2364 = vpack.c.b16 %v2356, %v2355
      %2373 = vmatprep.subr.bf16.mxu0 0
      %2374 = vmatpush1.bf16.msra.mxu0 %v2357
      %2375 = vmatprep.subr.bf16.mxu0 0
      %2376 = vmatpush1.bf16.msra.mxu0 %v2358
      %2377 = vmatprep.subr.bf16.mxu0 0
      %2378 = vmatpush1.bf16.msra.mxu0 %v2359
      %2379 = vmatprep.subr.bf16.mxu0 0
      %2380 = vmatpush1.bf16.msra.mxu0 %v2360
      %2381 = vmatprep.subr.bf16.mxu0 0
      %2382 = vmatpush1.bf16.msra.mxu0 %v2361
      %2383 = vmatprep.subr.bf16.mxu0 0
      %2384 = vmatpush1.bf16.msra.mxu0 %v2362
      %2385 = vmatprep.subr.bf16.mxu0 0
      %2386 = vmatpush1.bf16.msra.mxu0 %v2363
      %2387 = vmatprep.subr.bf16.mxu0 0
      %2388 = vmatpush1.bf16.msra.mxu0 %v2364
      %2389 = vmatprep.subr.bf16.mxu0 0
      %2390 = vmatpush1.bf16.msra.mxu0 0
      %2391 = vmatprep.subr.bf16.mxu0 0
      %2392 = vmatpush1.bf16.msra.mxu0 0
      %2393 = vmatprep.subr.bf16.mxu0 0
      %2394 = vmatpush1.bf16.msra.mxu0 0
      %2395 = vmatprep.subr.bf16.mxu0 0
      %2396 = vmatpush1.bf16.msra.mxu0 0
      %2397 = vmatprep.subr.bf16.mxu0 0
      %2398 = vmatpush1.bf16.msra.mxu0 0
      %2399 = vmatprep.subr.bf16.mxu0 0
      %2400 = vmatpush1.bf16.msra.mxu0 0
      %2401 = vmatprep.subr.bf16.mxu0 0
      %2402 = vmatpush1.bf16.msra.mxu0 0
      %2403 = vmatprep.subr.bf16.mxu0 0
      %2404 = vmatpush1.bf16.msra.mxu0 0
      %2405 = vmatprep.mubr.bf16.mxu0 0
      %2406 = vmatmul.mubr.bf16.gmra.mrb[0].mxu0 %v2317
      %v2407 = vpop.f32.mrb[0].mxu0
      %v2408 = vadd.f32 0.0, %v2407
      %v2409 = vpop.f32.mrb[0].mxu0
      %v2410 = vpop.f32.mrb[0].mxu0
      %v2411 = vadd.f32 0.0, %v2410
      %v2412 = vpop.f32.mrb[0].mxu0
      %2413 = vmatprep.mubr.bf16.mxu0 0
      %2414 = vmatmul.mubr.bf16.gmra.mrb[0].mxu0 %v2318
      %v2415 = vpop.f32.mrb[0].mxu0
      %v2416 = vadd.f32 0.0, %v2415
      %v2417 = vpop.f32.mrb[0].mxu0
      %v2418 = vpop.f32.mrb[0].mxu0
      %v2419 = vadd.f32 0.0, %v2418
      %v2420 = vpop.f32.mrb[0].mxu0
      %2421 = vmatprep.mubr.bf16.mxu0 0
      %2422 = vmatmul.mubr.bf16.gmra.mrb[0].mxu0 %v2319
      %v2423 = vpop.f32.mrb[0].mxu0
      %v2424 = vadd.f32 0.0, %v2423
      %v2425 = vpop.f32.mrb[0].mxu0
      %v2426 = vpop.f32.mrb[0].mxu0
      %v2427 = vadd.f32 0.0, %v2426
      %v2428 = vpop.f32.mrb[0].mxu0
      %2429 = vmatprep.mubr.bf16.mxu0 0
      %2430 = vmatmul.mubr.bf16.gmra.mrb[0].mxu0 %v2320
      %v2431 = vpop.f32.mrb[0].mxu0
      %v2432 = vadd.f32 0.0, %v2431
      %v2433 = vpop.f32.mrb[0].mxu0
      %v2434 = vpop.f32.mrb[0].mxu0
      %v2435 = vadd.f32 0.0, %v2434
      %v2436 = vpop.f32.mrb[0].mxu0
      %2437 = vdwg.mxu0
      %v2438 = vadd.f32 %v2228, %v2408
      %v2439 = vadd.f32 %v2229, %v2411
      %v2440 = vadd.f32 %v2230, %v2416
      %v2441 = vadd.f32 %v2231, %v2419
      %v2442 = vadd.f32 %v2232, %v2424
      %v2443 = vadd.f32 %v2233, %v2427
      %v2444 = vadd.f32 %v2234, %v2432
      %v2445 = vadd.f32 %v2235, %v2435
      %v2446 = vpack.c.bf16 %v2439, %v2438
      %v2447 = vpack.c.bf16 %v2441, %v2440
      %v2448 = vpack.c.bf16 %v2443, %v2442
      %v2449 = vpack.c.bf16 %v2445, %v2444
      %v2454 = vunpack.c.l.b16 %v2446
      %v2455 = vunpack.c.h.b16 %v2446
      %v2456 = vunpack.c.l.b16 %v2447
      %v2457 = vunpack.c.h.b16 %v2447
      %v2458 = vunpack.c.l.b16 %v2448
      %v2459 = vunpack.c.h.b16 %v2448
      %v2460 = vunpack.c.l.b16 %v2449
      %v2461 = vunpack.c.h.b16 %v2449
      %v2462 = vpack.c.b16 %v2454, %v2454
      %v2463 = vpack.c.b16 %v2455, %v2455
      %v2464 = vpack.c.b16 %v2456, %v2456
      %v2465 = vpack.c.b16 %v2457, %v2457
      %v2466 = vpack.c.b16 %v2458, %v2458
      %v2467 = vpack.c.b16 %v2459, %v2459
      %v2468 = vpack.c.b16 %v2460, %v2460
      %v2469 = vpack.c.b16 %v2461, %v2461
      %2478 = vst [vmem:[%s231] sm:$0xf] %v2462
      %2479 = vst [vmem:[%s231 + $0x4] sm:$0xf] %v2463
      %2480 = vst [vmem:[%s231 + $0x8] sm:$0xf] %v2464
      %2481 = vst [vmem:[%s231 + $0xc] sm:$0xf] %v2465
      %2482 = vst [vmem:[%s231 + $0x10] sm:$0xf] %v2466
      %2483 = vst [vmem:[%s231 + $0x14] sm:$0xf] %v2467
      %2484 = vst [vmem:[%s231 + $0x18] sm:$0xf] %v2468
      %2485 = vst [vmem:[%s231 + $0x1c] sm:$0xf] %v2469
      %v2486 = vadd.f32 %v2438, %v2439
      %v2487 = vadd.f32 %v2486, %v2440
      %v2488 = vadd.f32 %v2487, %v2441
      %v2489 = vadd.f32 %v2488, %v2442
      %v2490 = vadd.f32 %v2489, %v2443
      %v2491 = vadd.f32 %v2490, %v2444
      %v2492 = vadd.f32 %v2491, %v2445
      %v2493 = vrot.slane %v2492, 4
      %v2494 = vadd.f32 %v2492, %v2493
      %v2495 = vrot.slane %v2494, 2
      %v2496 = vadd.f32 %v2494, %v2495
      %v2497 = vrot.slane %v2496, 1
      %v2498 = vadd.f32 %v2496, %v2497
      %v2499 = vmul.f32 %v2438, %v2438
      %v2500 = vmul.f32 %v2439, %v2439
      %v2501 = vmul.f32 %v2440, %v2440
      %v2502 = vmul.f32 %v2441, %v2441
      %v2503 = vmul.f32 %v2442, %v2442
      %v2504 = vmul.f32 %v2443, %v2443
      %v2505 = vmul.f32 %v2444, %v2444
      %v2506 = vmul.f32 %v2445, %v2445
      %v2507 = vadd.f32 %v2499, %v2500
      %v2508 = vadd.f32 %v2507, %v2501
      %v2509 = vadd.f32 %v2508, %v2502
      %v2510 = vadd.f32 %v2509, %v2503
      %v2511 = vadd.f32 %v2510, %v2504
      %v2512 = vadd.f32 %v2511, %v2505
      %v2513 = vadd.f32 %v2512, %v2506
      %v2514 = vrot.slane %v2513, 4
      %v2515 = vadd.f32 %v2513, %v2514
      %v2516 = vrot.slane %v2515, 2
      %v2517 = vadd.f32 %v2515, %v2516
      %v2518 = vrot.slane %v2517, 1
      %v2519 = vadd.f32 %v2517, %v2518
      %vm2520 = vcmask 1040384
      %v2521 = vsel %vm2520, %v2498, %v2519
      %2522 = vst [vmem:[%s235] sm:$0x3] %v2521
      %p2523 = scmp.lt.s32.totalorder %s17, 1
      %s2524 = scalar_select %p2523, %s17, 1
      %s2525 = smul.addr %s2524, 8
      %s2526 = smul.addr %s2525, 4
      %s2527 = scalar_lea.vmem %s4, %s2526
      %p2528 = scmp.lt.s32.totalorder %s17, 1
      %s2529 = scalar_select %p2528, %s17, 1
      %s2530 = smul.addr %s2529, 2
      %s2531 = scalar_lea.vmem %s5, %s2530
      // Predicated region
      $region37: #{bottleneck_forward.5} parent=35 // pred_check
        %p2532 = pneg %p124
      $region38: #{bottleneck_forward.5} parent=35 // pred_check_branch
        %2534 = sbr.rel (%p2532) target = $region40
      $region39: #{bottleneck_forward.5} parent=35 // pred_region
        _
      $region40: #{bottleneck_forward.5} parent=35 // pred_fallthru
        _
      // Predicated region
      $region41: #{bottleneck_forward.5} parent=35 // pred_check
        %p2535 = pneg %p150
      $region42: #{bottleneck_forward.5} parent=35 // pred_check_branch
        %2537 = sbr.rel (%p2535) target = $region44
      $region43: #{bottleneck_forward.5} parent=35 // pred_region
        _
      $region44: #{bottleneck_forward.5} parent=35 // pred_fallthru
        _
    $region36: #{bottleneck_forward.5} parent=5 // pred_fallthru
      _
    %p2538 = scmp.le.s32.totalorder 2, %s12
    // Predicated region
    $region45: #{bottleneck_forward.5} parent=5 // pred_check
      %p2539 = pneg %p2538
    $region46: #{bottleneck_forward.5} parent=5 // pred_check_branch
      %2541 = sbr.rel (%p2539) target = $region48
    $region47: #{bottleneck_forward.5} parent=5 // pred_region
      %s2542 = ssub.s32 %s12, 2
      // Predicated region
      $region49: #{bottleneck_forward.5} parent=47 // pred_check
        %p2543 = pneg %p130
      $region50: #{bottleneck_forward.5} parent=47 // pred_check_branch
        %2545 = sbr.rel (%p2543) target = $region52
      $region51: #{bottleneck_forward.5} parent=47 // pred_region
        %p2546 = scmp.lt.s32.totalorder %s18, 1
        %s2547 = scalar_select %p2546, %s18, 1
        %s2548 = smul.addr %s2547, 8
        %s2549 = smul.addr %s2548, 4
        %s2550 = scalar_lea.vmem %s4, %s2549
      $region52: #{bottleneck_forward.5} parent=47 // pred_fallthru
        _
      // Predicated region
      $region53: #{bottleneck_forward.5} parent=47 // pred_check
        %p2551 = pneg %p156
      $region54: #{bottleneck_forward.5} parent=47 // pred_check_branch
        %2553 = sbr.rel (%p2551) target = $region56
      $region55: #{bottleneck_forward.5} parent=47 // pred_region
        %p2554 = scmp.lt.s32.totalorder %s18, 1
        %s2555 = scalar_select %p2554, %s18, 1
        %s2556 = smul.addr %s2555, 2
        %s2557 = scalar_lea.vmem %s5, %s2556
      $region56: #{bottleneck_forward.5} parent=47 // pred_fallthru
        _
    $region48: #{bottleneck_forward.5} parent=5 // pred_fallthru
      _
  $region6: #{bottleneck_forward.5} parent=0 // loop_footer
    %s16 = sadd.s32 1, %s12
  $region7: #{bottleneck_forward.5} parent=0 // loop_footer_branch
    %11 = sbr.rel target = $region3
  $region8: #{bottleneck_forward.5} parent=0 // loop_exit
    _

</llo_original>
